<compile_context>
chip_gen: v7x
topology: tpu7x:2x2x1
jax: 0.10.0
libtpu: 0.0.40
codegen_flags: <defaults>
</compile_context>

<pallas_src>
import math

import jax
import jax.numpy as jnp
from jax.experimental import pallas as pl
from jax.experimental.pallas import tpu as pltpu

# ----------------------------- config (small, synthetic) -----------------------------
VOCAB = 64            # vocab_size
VOCAB_PAD = 128       # lane-dense padded vocab for the kernel output
HIDDEN = 64           # gpt hidden size (small stand-in for 768)
N_HEADS = 4
HEAD_DIM = HIDDEN // N_HEADS
N_LAYERS = 2
MAX_LEN = 32
EPS = 1e-5
NEG_INF = -1e30


# --------------------------------- fused Pallas kernel --------------------------------
def _make_kernel(bg, s_src, s_trg):
    """Build the fused kernel for a batch group of `bg` sequences (static shapes)."""
    s_tot = s_src + s_trg

    def kernel(
        # inputs
        x_ref, bias_ref,
        ln1_g_ref, ln1_b_ref, attn_w_ref, attn_b_ref,
        proj_w_ref, proj_b_ref, ln2_g_ref, ln2_b_ref,
        fc_w_ref, fc_b_ref, fcp_w_ref, fcp_b_ref,
        lnf_g_ref, lnf_b_ref, out_w_ref, out_b_ref,
        # output
        logits_ref,
        # scratch (bf16)
        qf_s, kf_s, vf_s, attn_s,
    ):
        def ln(x, g, b):
            mu = jnp.mean(x, axis=-1, keepdims=True)
            xc = x - mu
            var = jnp.mean(xc * xc, axis=-1, keepdims=True)
            return xc * jax.lax.rsqrt(var + EPS) * g + b

        def mm(a, b):  # (M,K)@(K,N): bf16 operands on the MXU, f32 accumulation
            return jnp.dot(a.astype(jnp.bfloat16), b.astype(jnp.bfloat16),
                           preferred_element_type=jnp.float32)

        def mm_t(a, b):  # a @ b.T (contract last dims of both), bf16 operands, f32 acc
            return jax.lax.dot_general(
                a.astype(jnp.bfloat16), b.astype(jnp.bfloat16),
                dimension_numbers=(((1,), (1,)), ((), ())),
                preferred_element_type=jnp.float32)

        def gelu(y):  # GPT-2 "gelu_new" (tanh approximation), f32 elementwise (v5e-safe)
            c = math.sqrt(2.0 / math.pi)
            return 0.5 * y * (1.0 + jnp.tanh(c * (y + 0.044715 * y * y * y)))

        h = x_ref[...]                                    # (bg*s_tot, H) f32 residual
        for li in range(N_LAYERS):
            # --- attention block (pre-LN); 1/sqrt(head_dim) already folded into W_q ---
            qkv = mm(ln(h, ln1_g_ref[li], ln1_b_ref[li]), attn_w_ref[li]) + attn_b_ref[li]
            qkv_b = qkv.astype(jnp.bfloat16)              # single cast; fold reads bf16
            # (batch, head)-major fold into rows: rows ordered (b, head, t).
            for b in range(bg):
                rs = b * s_tot
                for hh in range(N_HEADS):
                    lo = hh * HEAD_DIM
                    rf = (b * N_HEADS + hh) * s_tot
                    qf_s[rf:rf + s_tot, :] = qkv_b[rs:rs + s_tot, lo:lo + HEAD_DIM]
                    kf_s[rf:rf + s_tot, :] = qkv_b[rs:rs + s_tot,
                                                   HIDDEN + lo:HIDDEN + lo + HEAD_DIM]
                    vf_s[rf:rf + s_tot, :] = qkv_b[rs:rs + s_tot,
                                                   2 * HIDDEN + lo:2 * HIDDEN + lo + HEAD_DIM]
            # One MXU matmul for all (batch, head) blocks; bias is the causal +
            # block-diagonal (batch, head) additive mask.
            s = mm_t(qf_s[...], kf_s[...]) + bias_ref[...]
            s = s - jnp.max(s, axis=-1, keepdims=True)
            p = jnp.exp(s)
            p = p * pl.reciprocal(jnp.sum(p, axis=-1, keepdims=True), approx=True)
            of = mm(p, vf_s[...]).astype(jnp.bfloat16)    # (bg*nh*s_tot, hd)
            for b in range(bg):                            # un-fold back to (b, t) x H
                rs = b * s_tot
                for hh in range(N_HEADS):
                    rf = (b * N_HEADS + hh) * s_tot
                    attn_s[rs:rs + s_tot,
                           hh * HEAD_DIM:(hh + 1) * HEAD_DIM] = of[rf:rf + s_tot, :]
            h = h + mm(attn_s[...], proj_w_ref[li]) + proj_b_ref[li]

            # --- MLP block (pre-LN) ---
            m = gelu(mm(ln(h, ln2_g_ref[li], ln2_b_ref[li]), fc_w_ref[li]) + fc_b_ref[li])
            h = h + mm(m, fcp_w_ref[li]) + fcp_b_ref[li]

        # Final LN + fc_out; only the trg rows are written out (lane-dense 128-wide).
        hf = ln(h, lnf_g_ref[...], lnf_b_ref[...])
        logits = mm(hf, out_w_ref[...]) + out_b_ref[...]   # (bg*s_tot, VOCAB_PAD)
        for b in range(bg):
            logits_ref[b * s_trg:(b + 1) * s_trg, :] = \
                logits[b * s_tot + s_src:b * s_tot + s_tot, :]

    return kernel


# ------------------------------- wrapper / glue ----------------------------------------
def _attn_bias(bg, s_tot):
    """Additive mask for (batch, head)-folded causal attention over [src; trg]."""
    r = bg * N_HEADS * s_tot
    idx = jnp.arange(r)
    b_idx = idx // (N_HEADS * s_tot)
    h_idx = (idx // s_tot) % N_HEADS
    t_idx = idx % s_tot
    ok = ((b_idx[:, None] == b_idx[None, :])
          & (h_idx[:, None] == h_idx[None, :])
          & (t_idx[None, :] <= t_idx[:, None]))
    return jnp.where(ok, 0.0, NEG_INF).astype(jnp.float32)


def _full_spec(arr):
    """Whole-array block, identical for every grid step (kept VMEM-resident)."""
    if arr.ndim == 2:
        return pl.BlockSpec(arr.shape, lambda g: (0, 0))
    return pl.BlockSpec(arr.shape, lambda g: (0, 0, 0))


def chatbot_forward(params, src_ids, trg_ids, num_batch_splits=1):
    # num_batch_splits=1 folds the whole batch into one grid step (best on 1-TC v5e/v6e);
    # set 2 on v7x so both TensorCores get a batch half.
    B, s_src = src_ids.shape
    _, s_trg = trg_ids.shape
    s_tot = s_src + s_trg
    assert B % num_batch_splits == 0
    bg = B // num_batch_splits

    # Merged causal pass over the concatenated sequence [src; trg] (== past_key_values).
    ids = jnp.concatenate([src_ids, trg_ids], axis=1)                   # (B, s_tot)
    x = params["wte"][ids] + params["wpe"][:s_tot][None]                # embedding glue in JAX
    x = x.reshape(B * s_tot, HIDDEN).astype(jnp.float32)

    bias = _attn_bias(bg, s_tot)                                        # (bg*nh*s_tot,)^2

    weights = [
        params["ln1_g"], params["ln1_b"], params["c_attn_w"], params["c_attn_b"],
        params["c_proj_w"], params["c_proj_b"], params["ln2_g"], params["ln2_b"],
        params["mlp_fc_w"], params["mlp_fc_b"], params["mlp_proj_w"], params["mlp_proj_b"],
        params["ln_f_g"], params["ln_f_b"], params["fc_out_w"], params["fc_out_b"],
    ]
    inputs = [x, bias] + weights

    in_specs = (
        [pl.BlockSpec((bg * s_tot, HIDDEN), lambda g: (g, 0))]
        + [_full_spec(a) for a in [bias] + weights]
    )

    grid_spec = pltpu.PrefetchScalarGridSpec(
        num_scalar_prefetch=0,
        grid=(num_batch_splits,),
        in_specs=in_specs,
        out_specs=pl.BlockSpec((bg * s_trg, VOCAB_PAD), lambda g: (g, 0)),
        scratch_shapes=[
            pltpu.VMEM((bg * N_HEADS * s_tot, HEAD_DIM), jnp.bfloat16),  # folded Q
            pltpu.VMEM((bg * N_HEADS * s_tot, HEAD_DIM), jnp.bfloat16),  # folded K
            pltpu.VMEM((bg * N_HEADS * s_tot, HEAD_DIM), jnp.bfloat16),  # folded V
            pltpu.VMEM((bg * s_tot, HIDDEN), jnp.bfloat16),              # merged attn out
        ],
    )

    out = pl.pallas_call(
        _make_kernel(bg, s_src, s_trg),
        out_shape=jax.ShapeDtypeStruct((B * s_trg, VOCAB_PAD), jnp.float32),
        grid_spec=grid_spec,
        compiler_params=pltpu.CompilerParams(dimension_semantics=("parallel",)),
    )(*inputs)

    return out[:, :VOCAB].reshape(B, s_trg, VOCAB)


# ----------------------------- parameters (deterministic) -----------------------------
def init_params(key):
    def w(kk, shape, scale=0.02):
        return scale * jax.random.normal(kk, shape, jnp.float32)

    k = jax.random.split(key, 8)
    L, H = N_LAYERS, HIDDEN

    attn_w = w(k[2], (L, H, 3 * H))
    # Fold the 1/sqrt(head_dim) attention scale into the Q columns (free at init).
    attn_w = attn_w.at[:, :, :H].multiply(1.0 / math.sqrt(HEAD_DIM))

    params = {
        "wte": w(k[0], (VOCAB, H)),
        "wpe": w(k[1], (MAX_LEN, H)),
        "ln1_g": jnp.ones((L, 1, H), jnp.float32),
        "ln1_b": jnp.zeros((L, 1, H), jnp.float32),
        "c_attn_w": attn_w.astype(jnp.bfloat16),
        "c_attn_b": jnp.zeros((L, 1, 3 * H), jnp.float32),
        "c_proj_w": w(k[3], (L, H, H)).astype(jnp.bfloat16),
        "c_proj_b": jnp.zeros((L, 1, H), jnp.float32),
        "ln2_g": jnp.ones((L, 1, H), jnp.float32),
        "ln2_b": jnp.zeros((L, 1, H), jnp.float32),
        "mlp_fc_w": w(k[4], (L, H, 4 * H)).astype(jnp.bfloat16),
        "mlp_fc_b": jnp.zeros((L, 1, 4 * H), jnp.float32),
        "mlp_proj_w": w(k[5], (L, 4 * H, H)).astype(jnp.bfloat16),
        "mlp_proj_b": jnp.zeros((L, 1, H), jnp.float32),
        "ln_f_g": jnp.ones((1, H), jnp.float32),
        "ln_f_b": jnp.zeros((1, H), jnp.float32),
        "fc_out_b": jnp.zeros((1, VOCAB_PAD), jnp.float32),
    }
    fco = w(k[6], (H, VOCAB))   # nn.Linear(hidden, vocab), padded to lane-dense 128
    params["fc_out_w"] = jnp.pad(fco, ((0, 0), (0, VOCAB_PAD - VOCAB))).astype(jnp.bfloat16)
    return params


# --------------------------------------- main -----------------------------------------
if __name__ == "__main__":
    key = jax.random.PRNGKey(0)
    pkey, skey, tkey = jax.random.split(key, 3)
    params = init_params(pkey)

    B, S_SRC, S_TRG = 2, 8, 8
    src_ids = jax.random.randint(skey, (B, S_SRC), 0, VOCAB, dtype=jnp.int32)
    trg_ids = jax.random.randint(tkey, (B, S_TRG), 0, VOCAB, dtype=jnp.int32)

    fwd = jax.jit(chatbot_forward)
    logits = fwd(params, src_ids, trg_ids)
    jax.block_until_ready(logits)

    assert logits.shape == (B, S_TRG, VOCAB), logits.shape
    assert logits.dtype == jnp.float32
    assert bool(jnp.all(jnp.isfinite(logits)))
    print("KERNEL_OK")
</pallas_src>

<mosaic_0001>
module attributes {stable_mosaic.version = 11 : i64} {
  func.func @kernel(%arg0: i32, %arg1: memref<32x64xf32, #tpu.memory_space<vmem>>, %arg2: memref<128x128xf32, #tpu.memory_space<vmem>>, %arg3: memref<2x1x64xf32, #tpu.memory_space<vmem>>, %arg4: memref<2x1x64xf32, #tpu.memory_space<vmem>>, %arg5: memref<2x64x192xbf16, #tpu.memory_space<vmem>>, %arg6: memref<2x1x192xf32, #tpu.memory_space<vmem>>, %arg7: memref<2x64x64xbf16, #tpu.memory_space<vmem>>, %arg8: memref<2x1x64xf32, #tpu.memory_space<vmem>>, %arg9: memref<2x1x64xf32, #tpu.memory_space<vmem>>, %arg10: memref<2x1x64xf32, #tpu.memory_space<vmem>>, %arg11: memref<2x64x256xbf16, #tpu.memory_space<vmem>>, %arg12: memref<2x1x256xf32, #tpu.memory_space<vmem>>, %arg13: memref<2x256x64xbf16, #tpu.memory_space<vmem>>, %arg14: memref<2x1x64xf32, #tpu.memory_space<vmem>>, %arg15: memref<1x64xf32, #tpu.memory_space<vmem>>, %arg16: memref<1x64xf32, #tpu.memory_space<vmem>>, %arg17: memref<64x128xbf16, #tpu.memory_space<vmem>>, %arg18: memref<1x128xf32, #tpu.memory_space<vmem>>, %arg19: memref<16x128xf32, #tpu.memory_space<vmem>>, %arg20: memref<128x16xbf16, #tpu.memory_space<vmem>>, %arg21: memref<128x16xbf16, #tpu.memory_space<vmem>>, %arg22: memref<128x16xbf16, #tpu.memory_space<vmem>>, %arg23: memref<32x64xbf16, #tpu.memory_space<vmem>>) attributes {dimension_semantics = [#tpu.dimension_semantics<parallel>], iteration_bounds = array<i64: 1>, scalar_prefetch = 0 : i64, scratch_operands = 4 : i64, tpu.core_type = #tpu.core_type<tc>, window_params = [{transform_indices = @transform_0, window_bounds = array<i64: 32, 64>}, {pipeline_mode = #tpu.pipeline_mode<synchronous>, transform_indices = @transform_1, window_bounds = array<i64: 128, 128>}, {pipeline_mode = #tpu.pipeline_mode<synchronous>, transform_indices = @transform_2, window_bounds = array<i64: 2, 1, 64>}, {pipeline_mode = #tpu.pipeline_mode<synchronous>, transform_indices = @transform_3, window_bounds = array<i64: 2, 1, 64>}, {pipeline_mode = #tpu.pipeline_mode<synchronous>, transform_indices = @transform_4, window_bounds = array<i64: 2, 64, 192>}, {pipeline_mode = #tpu.pipeline_mode<synchronous>, transform_indices = @transform_5, window_bounds = array<i64: 2, 1, 192>}, {pipeline_mode = #tpu.pipeline_mode<synchronous>, transform_indices = @transform_6, window_bounds = array<i64: 2, 64, 64>}, {pipeline_mode = #tpu.pipeline_mode<synchronous>, transform_indices = @transform_7, window_bounds = array<i64: 2, 1, 64>}, {pipeline_mode = #tpu.pipeline_mode<synchronous>, transform_indices = @transform_8, window_bounds = array<i64: 2, 1, 64>}, {pipeline_mode = #tpu.pipeline_mode<synchronous>, transform_indices = @transform_9, window_bounds = array<i64: 2, 1, 64>}, {pipeline_mode = #tpu.pipeline_mode<synchronous>, transform_indices = @transform_10, window_bounds = array<i64: 2, 64, 256>}, {pipeline_mode = #tpu.pipeline_mode<synchronous>, transform_indices = @transform_11, window_bounds = array<i64: 2, 1, 256>}, {pipeline_mode = #tpu.pipeline_mode<synchronous>, transform_indices = @transform_12, window_bounds = array<i64: 2, 256, 64>}, {pipeline_mode = #tpu.pipeline_mode<synchronous>, transform_indices = @transform_13, window_bounds = array<i64: 2, 1, 64>}, {pipeline_mode = #tpu.pipeline_mode<synchronous>, transform_indices = @transform_14, window_bounds = array<i64: 1, 64>}, {pipeline_mode = #tpu.pipeline_mode<synchronous>, transform_indices = @transform_15, window_bounds = array<i64: 1, 64>}, {pipeline_mode = #tpu.pipeline_mode<synchronous>, transform_indices = @transform_16, window_bounds = array<i64: 64, 128>}, {pipeline_mode = #tpu.pipeline_mode<synchronous>, transform_indices = @transform_17, window_bounds = array<i64: 1, 128>}, {transform_indices = @transform_18, window_bounds = array<i64: 16, 128>}]} {
    %c0 = arith.constant 0 : index
    %c0_0 = arith.constant 0 : index
    %0 = vector.load %arg1[%c0, %c0_0] : memref<32x64xf32, #tpu.memory_space<vmem>>, vector<32x64xf32>
    %c0_1 = arith.constant 0 : index
    %c0_2 = arith.constant 0 : index
    %c0_3 = arith.constant 0 : index
    %1 = vector.load %arg3[%c0_1, %c0_2, %c0_3] : memref<2x1x64xf32, #tpu.memory_space<vmem>>, vector<1x1x64xf32>
    %2 = vector.shape_cast %1 : vector<1x1x64xf32> to vector<1x64xf32>
    %c0_4 = arith.constant 0 : index
    %c0_5 = arith.constant 0 : index
    %c0_6 = arith.constant 0 : index
    %3 = vector.load %arg4[%c0_4, %c0_5, %c0_6] : memref<2x1x64xf32, #tpu.memory_space<vmem>>, vector<1x1x64xf32>
    %4 = vector.shape_cast %3 : vector<1x1x64xf32> to vector<1x64xf32>
    %cst = arith.constant dense<0.000000e+00> : vector<32xf32>
    %5 = vector.multi_reduction <add>, %0, %cst [1] : vector<32x64xf32> to vector<32xf32>
    %6 = vector.shape_cast %5 : vector<32xf32> to vector<32x1xf32>
    %cst_7 = arith.constant 6.400000e+01 : f32
    %7 = vector.broadcast %cst_7 : f32 to vector<32x1xf32>
    %8 = arith.divf %6, %7 : vector<32x1xf32>
    %9 = vector.broadcast %8 : vector<32x1xf32> to vector<32x64xf32>
    %10 = arith.subf %0, %9 : vector<32x64xf32>
    %11 = arith.mulf %10, %10 : vector<32x64xf32>
    %cst_8 = arith.constant dense<0.000000e+00> : vector<32xf32>
    %12 = vector.multi_reduction <add>, %11, %cst_8 [1] : vector<32x64xf32> to vector<32xf32>
    %13 = vector.shape_cast %12 : vector<32xf32> to vector<32x1xf32>
    %cst_9 = arith.constant 6.400000e+01 : f32
    %14 = vector.broadcast %cst_9 : f32 to vector<32x1xf32>
    %15 = arith.divf %13, %14 : vector<32x1xf32>
    %cst_10 = arith.constant 9.99999974E-6 : f32
    %16 = vector.broadcast %cst_10 : f32 to vector<32x1xf32>
    %17 = arith.addf %15, %16 : vector<32x1xf32>
    %18 = math.rsqrt %17 : vector<32x1xf32>
    %19 = vector.broadcast %18 : vector<32x1xf32> to vector<32x64xf32>
    %20 = arith.mulf %10, %19 : vector<32x64xf32>
    %21 = vector.broadcast %2 : vector<1x64xf32> to vector<32x64xf32>
    %22 = arith.mulf %20, %21 : vector<32x64xf32>
    %23 = vector.broadcast %4 : vector<1x64xf32> to vector<32x64xf32>
    %24 = arith.addf %22, %23 : vector<32x64xf32>
    %c0_11 = arith.constant 0 : index
    %c0_12 = arith.constant 0 : index
    %c0_13 = arith.constant 0 : index
    %25 = vector.load %arg5[%c0_11, %c0_12, %c0_13] : memref<2x64x192xbf16, #tpu.memory_space<vmem>>, vector<1x64x192xbf16>
    %26 = vector.shape_cast %25 : vector<1x64x192xbf16> to vector<64x192xbf16>
    %27 = arith.truncf %24 : vector<32x64xf32> to vector<32x64xbf16>
    %cst_14 = arith.constant dense<0.000000e+00> : vector<32x192xf32>
    %28 = tpu.matmul %27, %26, %cst_14 {dimension_numbers = #tpu.dot_dimension_numbers<[1], [0], [0], [1], [0, 0, 1, 1], [], []>} : vector<32x64xbf16>, vector<64x192xbf16>, vector<32x192xf32> -> vector<32x192xf32>
    %c0_15 = arith.constant 0 : index
    %c0_16 = arith.constant 0 : index
    %c0_17 = arith.constant 0 : index
    %29 = vector.load %arg6[%c0_15, %c0_16, %c0_17] : memref<2x1x192xf32, #tpu.memory_space<vmem>>, vector<1x1x192xf32>
    %30 = vector.shape_cast %29 : vector<1x1x192xf32> to vector<1x192xf32>
    %31 = vector.broadcast %30 : vector<1x192xf32> to vector<32x192xf32>
    %32 = arith.addf %28, %31 : vector<32x192xf32>
    %33 = arith.truncf %32 : vector<32x192xf32> to vector<32x192xbf16>
    %34 = vector.extract_strided_slice %33 {offsets = [0, 0], sizes = [16, 16], strides = [1, 1]} : vector<32x192xbf16> to vector<16x16xbf16>
    %c0_18 = arith.constant 0 : index
    %c0_19 = arith.constant 0 : index
    %35 = vector.load %arg20[%c0_18, %c0_19] : memref<128x16xbf16, #tpu.memory_space<vmem>>, vector<16x16xbf16>
    tpu.vector_store %arg20[%c0_18, %c0_19], %34 {strides = array<i32>} : memref<128x16xbf16, #tpu.memory_space<vmem>>, vector<16x16xbf16>,
    %36 = vector.extract_strided_slice %33 {offsets = [0, 64], sizes = [16, 16], strides = [1, 1]} : vector<32x192xbf16> to vector<16x16xbf16>
    %c0_20 = arith.constant 0 : index
    %c0_21 = arith.constant 0 : index
    %37 = vector.load %arg21[%c0_20, %c0_21] : memref<128x16xbf16, #tpu.memory_space<vmem>>, vector<16x16xbf16>
    tpu.vector_store %arg21[%c0_20, %c0_21], %36 {strides = array<i32>} : memref<128x16xbf16, #tpu.memory_space<vmem>>, vector<16x16xbf16>,
    %38 = vector.extract_strided_slice %33 {offsets = [0, 128], sizes = [16, 16], strides = [1, 1]} : vector<32x192xbf16> to vector<16x16xbf16>
    %c0_22 = arith.constant 0 : index
    %c0_23 = arith.constant 0 : index
    %39 = vector.load %arg22[%c0_22, %c0_23] : memref<128x16xbf16, #tpu.memory_space<vmem>>, vector<16x16xbf16>
    tpu.vector_store %arg22[%c0_22, %c0_23], %38 {strides = array<i32>} : memref<128x16xbf16, #tpu.memory_space<vmem>>, vector<16x16xbf16>,
    %40 = vector.extract_strided_slice %33 {offsets = [0, 16], sizes = [16, 16], strides = [1, 1]} : vector<32x192xbf16> to vector<16x16xbf16>
    %c16 = arith.constant 16 : index
    %c0_24 = arith.constant 0 : index
    %41 = vector.load %arg20[%c16, %c0_24] : memref<128x16xbf16, #tpu.memory_space<vmem>>, vector<16x16xbf16>
    tpu.vector_store %arg20[%c16, %c0_24], %40 {strides = array<i32>} : memref<128x16xbf16, #tpu.memory_space<vmem>>, vector<16x16xbf16>,
    %42 = vector.extract_strided_slice %33 {offsets = [0, 80], sizes = [16, 16], strides = [1, 1]} : vector<32x192xbf16> to vector<16x16xbf16>
    %c16_25 = arith.constant 16 : index
    %c0_26 = arith.constant 0 : index
    %43 = vector.load %arg21[%c16_25, %c0_26] : memref<128x16xbf16, #tpu.memory_space<vmem>>, vector<16x16xbf16>
    tpu.vector_store %arg21[%c16_25, %c0_26], %42 {strides = array<i32>} : memref<128x16xbf16, #tpu.memory_space<vmem>>, vector<16x16xbf16>,
    %44 = vector.extract_strided_slice %33 {offsets = [0, 144], sizes = [16, 16], strides = [1, 1]} : vector<32x192xbf16> to vector<16x16xbf16>
    %c16_27 = arith.constant 16 : index
    %c0_28 = arith.constant 0 : index
    %45 = vector.load %arg22[%c16_27, %c0_28] : memref<128x16xbf16, #tpu.memory_space<vmem>>, vector<16x16xbf16>
    tpu.vector_store %arg22[%c16_27, %c0_28], %44 {strides = array<i32>} : memref<128x16xbf16, #tpu.memory_space<vmem>>, vector<16x16xbf16>,
    %46 = vector.extract_strided_slice %33 {offsets = [0, 32], sizes = [16, 16], strides = [1, 1]} : vector<32x192xbf16> to vector<16x16xbf16>
    %c32 = arith.constant 32 : index
    %c0_29 = arith.constant 0 : index
    %47 = vector.load %arg20[%c32, %c0_29] : memref<128x16xbf16, #tpu.memory_space<vmem>>, vector<16x16xbf16>
    tpu.vector_store %arg20[%c32, %c0_29], %46 {strides = array<i32>} : memref<128x16xbf16, #tpu.memory_space<vmem>>, vector<16x16xbf16>,
    %48 = vector.extract_strided_slice %33 {offsets = [0, 96], sizes = [16, 16], strides = [1, 1]} : vector<32x192xbf16> to vector<16x16xbf16>
    %c32_30 = arith.constant 32 : index
    %c0_31 = arith.constant 0 : index
    %49 = vector.load %arg21[%c32_30, %c0_31] : memref<128x16xbf16, #tpu.memory_space<vmem>>, vector<16x16xbf16>
    tpu.vector_store %arg21[%c32_30, %c0_31], %48 {strides = array<i32>} : memref<128x16xbf16, #tpu.memory_space<vmem>>, vector<16x16xbf16>,
    %50 = vector.extract_strided_slice %33 {offsets = [0, 160], sizes = [16, 16], strides = [1, 1]} : vector<32x192xbf16> to vector<16x16xbf16>
    %c32_32 = arith.constant 32 : index
    %c0_33 = arith.constant 0 : index
    %51 = vector.load %arg22[%c32_32, %c0_33] : memref<128x16xbf16, #tpu.memory_space<vmem>>, vector<16x16xbf16>
    tpu.vector_store %arg22[%c32_32, %c0_33], %50 {strides = array<i32>} : memref<128x16xbf16, #tpu.memory_space<vmem>>, vector<16x16xbf16>,
    %52 = vector.extract_strided_slice %33 {offsets = [0, 48], sizes = [16, 16], strides = [1, 1]} : vector<32x192xbf16> to vector<16x16xbf16>
    %c48 = arith.constant 48 : index
    %c0_34 = arith.constant 0 : index
    %53 = vector.load %arg20[%c48, %c0_34] : memref<128x16xbf16, #tpu.memory_space<vmem>>, vector<16x16xbf16>
    tpu.vector_store %arg20[%c48, %c0_34], %52 {strides = array<i32>} : memref<128x16xbf16, #tpu.memory_space<vmem>>, vector<16x16xbf16>,
    %54 = vector.extract_strided_slice %33 {offsets = [0, 112], sizes = [16, 16], strides = [1, 1]} : vector<32x192xbf16> to vector<16x16xbf16>
    %c48_35 = arith.constant 48 : index
    %c0_36 = arith.constant 0 : index
    %55 = vector.load %arg21[%c48_35, %c0_36] : memref<128x16xbf16, #tpu.memory_space<vmem>>, vector<16x16xbf16>
    tpu.vector_store %arg21[%c48_35, %c0_36], %54 {strides = array<i32>} : memref<128x16xbf16, #tpu.memory_space<vmem>>, vector<16x16xbf16>,
    %56 = vector.extract_strided_slice %33 {offsets = [0, 176], sizes = [16, 16], strides = [1, 1]} : vector<32x192xbf16> to vector<16x16xbf16>
    %c48_37 = arith.constant 48 : index
    %c0_38 = arith.constant 0 : index
    %57 = vector.load %arg22[%c48_37, %c0_38] : memref<128x16xbf16, #tpu.memory_space<vmem>>, vector<16x16xbf16>
    tpu.vector_store %arg22[%c48_37, %c0_38], %56 {strides = array<i32>} : memref<128x16xbf16, #tpu.memory_space<vmem>>, vector<16x16xbf16>,
    %58 = vector.extract_strided_slice %33 {offsets = [16, 0], sizes = [16, 16], strides = [1, 1]} : vector<32x192xbf16> to vector<16x16xbf16>
    %c64 = arith.constant 64 : index
    %c0_39 = arith.constant 0 : index
    %59 = vector.load %arg20[%c64, %c0_39] : memref<128x16xbf16, #tpu.memory_space<vmem>>, vector<16x16xbf16>
    tpu.vector_store %arg20[%c64, %c0_39], %58 {strides = array<i32>} : memref<128x16xbf16, #tpu.memory_space<vmem>>, vector<16x16xbf16>,
    %60 = vector.extract_strided_slice %33 {offsets = [16, 64], sizes = [16, 16], strides = [1, 1]} : vector<32x192xbf16> to vector<16x16xbf16>
    %c64_40 = arith.constant 64 : index
    %c0_41 = arith.constant 0 : index
    %61 = vector.load %arg21[%c64_40, %c0_41] : memref<128x16xbf16, #tpu.memory_space<vmem>>, vector<16x16xbf16>
    tpu.vector_store %arg21[%c64_40, %c0_41], %60 {strides = array<i32>} : memref<128x16xbf16, #tpu.memory_space<vmem>>, vector<16x16xbf16>,
    %62 = vector.extract_strided_slice %33 {offsets = [16, 128], sizes = [16, 16], strides = [1, 1]} : vector<32x192xbf16> to vector<16x16xbf16>
    %c64_42 = arith.constant 64 : index
    %c0_43 = arith.constant 0 : index
    %63 = vector.load %arg22[%c64_42, %c0_43] : memref<128x16xbf16, #tpu.memory_space<vmem>>, vector<16x16xbf16>
    tpu.vector_store %arg22[%c64_42, %c0_43], %62 {strides = array<i32>} : memref<128x16xbf16, #tpu.memory_space<vmem>>, vector<16x16xbf16>,
    %64 = vector.extract_strided_slice %33 {offsets = [16, 16], sizes = [16, 16], strides = [1, 1]} : vector<32x192xbf16> to vector<16x16xbf16>
    %c80 = arith.constant 80 : index
    %c0_44 = arith.constant 0 : index
    %65 = vector.load %arg20[%c80, %c0_44] : memref<128x16xbf16, #tpu.memory_space<vmem>>, vector<16x16xbf16>
    tpu.vector_store %arg20[%c80, %c0_44], %64 {strides = array<i32>} : memref<128x16xbf16, #tpu.memory_space<vmem>>, vector<16x16xbf16>,
    %66 = vector.extract_strided_slice %33 {offsets = [16, 80], sizes = [16, 16], strides = [1, 1]} : vector<32x192xbf16> to vector<16x16xbf16>
    %c80_45 = arith.constant 80 : index
    %c0_46 = arith.constant 0 : index
    %67 = vector.load %arg21[%c80_45, %c0_46] : memref<128x16xbf16, #tpu.memory_space<vmem>>, vector<16x16xbf16>
    tpu.vector_store %arg21[%c80_45, %c0_46], %66 {strides = array<i32>} : memref<128x16xbf16, #tpu.memory_space<vmem>>, vector<16x16xbf16>,
    %68 = vector.extract_strided_slice %33 {offsets = [16, 144], sizes = [16, 16], strides = [1, 1]} : vector<32x192xbf16> to vector<16x16xbf16>
    %c80_47 = arith.constant 80 : index
    %c0_48 = arith.constant 0 : index
    %69 = vector.load %arg22[%c80_47, %c0_48] : memref<128x16xbf16, #tpu.memory_space<vmem>>, vector<16x16xbf16>
    tpu.vector_store %arg22[%c80_47, %c0_48], %68 {strides = array<i32>} : memref<128x16xbf16, #tpu.memory_space<vmem>>, vector<16x16xbf16>,
    %70 = vector.extract_strided_slice %33 {offsets = [16, 32], sizes = [16, 16], strides = [1, 1]} : vector<32x192xbf16> to vector<16x16xbf16>
    %c96 = arith.constant 96 : index
    %c0_49 = arith.constant 0 : index
    %71 = vector.load %arg20[%c96, %c0_49] : memref<128x16xbf16, #tpu.memory_space<vmem>>, vector<16x16xbf16>
    tpu.vector_store %arg20[%c96, %c0_49], %70 {strides = array<i32>} : memref<128x16xbf16, #tpu.memory_space<vmem>>, vector<16x16xbf16>,
    %72 = vector.extract_strided_slice %33 {offsets = [16, 96], sizes = [16, 16], strides = [1, 1]} : vector<32x192xbf16> to vector<16x16xbf16>
    %c96_50 = arith.constant 96 : index
    %c0_51 = arith.constant 0 : index
    %73 = vector.load %arg21[%c96_50, %c0_51] : memref<128x16xbf16, #tpu.memory_space<vmem>>, vector<16x16xbf16>
    tpu.vector_store %arg21[%c96_50, %c0_51], %72 {strides = array<i32>} : memref<128x16xbf16, #tpu.memory_space<vmem>>, vector<16x16xbf16>,
    %74 = vector.extract_strided_slice %33 {offsets = [16, 160], sizes = [16, 16], strides = [1, 1]} : vector<32x192xbf16> to vector<16x16xbf16>
    %c96_52 = arith.constant 96 : index
    %c0_53 = arith.constant 0 : index
    %75 = vector.load %arg22[%c96_52, %c0_53] : memref<128x16xbf16, #tpu.memory_space<vmem>>, vector<16x16xbf16>
    tpu.vector_store %arg22[%c96_52, %c0_53], %74 {strides = array<i32>} : memref<128x16xbf16, #tpu.memory_space<vmem>>, vector<16x16xbf16>,
    %76 = vector.extract_strided_slice %33 {offsets = [16, 48], sizes = [16, 16], strides = [1, 1]} : vector<32x192xbf16> to vector<16x16xbf16>
    %c112 = arith.constant 112 : index
    %c0_54 = arith.constant 0 : index
    %77 = vector.load %arg20[%c112, %c0_54] : memref<128x16xbf16, #tpu.memory_space<vmem>>, vector<16x16xbf16>
    tpu.vector_store %arg20[%c112, %c0_54], %76 {strides = array<i32>} : memref<128x16xbf16, #tpu.memory_space<vmem>>, vector<16x16xbf16>,
    %78 = vector.extract_strided_slice %33 {offsets = [16, 112], sizes = [16, 16], strides = [1, 1]} : vector<32x192xbf16> to vector<16x16xbf16>
    %c112_55 = arith.constant 112 : index
    %c0_56 = arith.constant 0 : index
    %79 = vector.load %arg21[%c112_55, %c0_56] : memref<128x16xbf16, #tpu.memory_space<vmem>>, vector<16x16xbf16>
    tpu.vector_store %arg21[%c112_55, %c0_56], %78 {strides = array<i32>} : memref<128x16xbf16, #tpu.memory_space<vmem>>, vector<16x16xbf16>,
    %80 = vector.extract_strided_slice %33 {offsets = [16, 176], sizes = [16, 16], strides = [1, 1]} : vector<32x192xbf16> to vector<16x16xbf16>
    %c112_57 = arith.constant 112 : index
    %c0_58 = arith.constant 0 : index
    %81 = vector.load %arg22[%c112_57, %c0_58] : memref<128x16xbf16, #tpu.memory_space<vmem>>, vector<16x16xbf16>
    tpu.vector_store %arg22[%c112_57, %c0_58], %80 {strides = array<i32>} : memref<128x16xbf16, #tpu.memory_space<vmem>>, vector<16x16xbf16>,
    %c0_59 = arith.constant 0 : index
    %c0_60 = arith.constant 0 : index
    %82 = vector.load %arg20[%c0_59, %c0_60] : memref<128x16xbf16, #tpu.memory_space<vmem>>, vector<128x16xbf16>
    %c0_61 = arith.constant 0 : index
    %c0_62 = arith.constant 0 : index
    %83 = vector.load %arg21[%c0_61, %c0_62] : memref<128x16xbf16, #tpu.memory_space<vmem>>, vector<128x16xbf16>
    %cst_63 = arith.constant dense<0.000000e+00> : vector<128x128xf32>
    %84 = tpu.matmul %82, %83, %cst_63 {dimension_numbers = #tpu.dot_dimension_numbers<[1], [1], [0], [0], [0, 0, 1, 0], [], []>} : vector<128x16xbf16>, vector<128x16xbf16>, vector<128x128xf32> -> vector<128x128xf32>
    %c0_64 = arith.constant 0 : index
    %c0_65 = arith.constant 0 : index
    %85 = vector.load %arg2[%c0_64, %c0_65] : memref<128x128xf32, #tpu.memory_space<vmem>>, vector<128x128xf32>
    %86 = arith.addf %84, %85 : vector<128x128xf32>
    %cst_66 = arith.constant dense<0xFF800000> : vector<128xf32>
    %87 = vector.multi_reduction <maximumf>, %86, %cst_66 [1] : vector<128x128xf32> to vector<128xf32>
    %88 = vector.shape_cast %87 : vector<128xf32> to vector<128x1xf32>
    %89 = vector.broadcast %88 : vector<128x1xf32> to vector<128x128xf32>
    %90 = arith.subf %86, %89 : vector<128x128xf32>
    %91 = math.exp %90 : vector<128x128xf32>
    %cst_67 = arith.constant dense<0.000000e+00> : vector<128xf32>
    %92 = vector.multi_reduction <add>, %91, %cst_67 [1] : vector<128x128xf32> to vector<128xf32>
    %93 = vector.shape_cast %92 : vector<128xf32> to vector<128x1xf32>
    %94 = tpu.reciprocal %93 {approx = true} : vector<128x1xf32> -> vector<128x1xf32>
    %95 = vector.broadcast %94 : vector<128x1xf32> to vector<128x128xf32>
    %96 = arith.mulf %91, %95 : vector<128x128xf32>
    %c0_68 = arith.constant 0 : index
    %c0_69 = arith.constant 0 : index
    %97 = vector.load %arg22[%c0_68, %c0_69] : memref<128x16xbf16, #tpu.memory_space<vmem>>, vector<128x16xbf16>
    %98 = arith.truncf %96 : vector<128x128xf32> to vector<128x128xbf16>
    %cst_70 = arith.constant dense<0.000000e+00> : vector<128x16xf32>
    %99 = tpu.matmul %98, %97, %cst_70 {dimension_numbers = #tpu.dot_dimension_numbers<[1], [0], [0], [1], [0, 0, 1, 1], [], []>} : vector<128x128xbf16>, vector<128x16xbf16>, vector<128x16xf32> -> vector<128x16xf32>
    %100 = arith.truncf %99 : vector<128x16xf32> to vector<128x16xbf16>
    %101 = vector.extract_strided_slice %100 {offsets = [0, 0], sizes = [16, 16], strides = [1, 1]} : vector<128x16xbf16> to vector<16x16xbf16>
    %c0_71 = arith.constant 0 : index
    %c0_72 = arith.constant 0 : index
    %102 = vector.load %arg23[%c0_71, %c0_72] : memref<32x64xbf16, #tpu.memory_space<vmem>>, vector<16x16xbf16>
    tpu.vector_store %arg23[%c0_71, %c0_72], %101 {strides = array<i32>} : memref<32x64xbf16, #tpu.memory_space<vmem>>, vector<16x16xbf16>,
    %103 = vector.extract_strided_slice %100 {offsets = [16, 0], sizes = [16, 16], strides = [1, 1]} : vector<128x16xbf16> to vector<16x16xbf16>
    %c0_73 = arith.constant 0 : index
    %c16_74 = arith.constant 16 : index
    %104 = vector.load %arg23[%c0_73, %c16_74] : memref<32x64xbf16, #tpu.memory_space<vmem>>, vector<16x16xbf16>
    tpu.vector_store %arg23[%c0_73, %c16_74], %103 {strides = array<i32>} : memref<32x64xbf16, #tpu.memory_space<vmem>>, vector<16x16xbf16>,
    %105 = vector.extract_strided_slice %100 {offsets = [32, 0], sizes = [16, 16], strides = [1, 1]} : vector<128x16xbf16> to vector<16x16xbf16>
    %c0_75 = arith.constant 0 : index
    %c32_76 = arith.constant 32 : index
    %106 = vector.load %arg23[%c0_75, %c32_76] : memref<32x64xbf16, #tpu.memory_space<vmem>>, vector<16x16xbf16>
    tpu.vector_store %arg23[%c0_75, %c32_76], %105 {strides = array<i32>} : memref<32x64xbf16, #tpu.memory_space<vmem>>, vector<16x16xbf16>,
    %107 = vector.extract_strided_slice %100 {offsets = [48, 0], sizes = [16, 16], strides = [1, 1]} : vector<128x16xbf16> to vector<16x16xbf16>
    %c0_77 = arith.constant 0 : index
    %c48_78 = arith.constant 48 : index
    %108 = vector.load %arg23[%c0_77, %c48_78] : memref<32x64xbf16, #tpu.memory_space<vmem>>, vector<16x16xbf16>
    tpu.vector_store %arg23[%c0_77, %c48_78], %107 {strides = array<i32>} : memref<32x64xbf16, #tpu.memory_space<vmem>>, vector<16x16xbf16>,
    %109 = vector.extract_strided_slice %100 {offsets = [64, 0], sizes = [16, 16], strides = [1, 1]} : vector<128x16xbf16> to vector<16x16xbf16>
    %c16_79 = arith.constant 16 : index
    %c0_80 = arith.constant 0 : index
    %110 = vector.load %arg23[%c16_79, %c0_80] : memref<32x64xbf16, #tpu.memory_space<vmem>>, vector<16x16xbf16>
    tpu.vector_store %arg23[%c16_79, %c0_80], %109 {strides = array<i32>} : memref<32x64xbf16, #tpu.memory_space<vmem>>, vector<16x16xbf16>,
    %111 = vector.extract_strided_slice %100 {offsets = [80, 0], sizes = [16, 16], strides = [1, 1]} : vector<128x16xbf16> to vector<16x16xbf16>
    %c16_81 = arith.constant 16 : index
    %c16_82 = arith.constant 16 : index
    %112 = vector.load %arg23[%c16_81, %c16_82] : memref<32x64xbf16, #tpu.memory_space<vmem>>, vector<16x16xbf16>
    tpu.vector_store %arg23[%c16_81, %c16_82], %111 {strides = array<i32>} : memref<32x64xbf16, #tpu.memory_space<vmem>>, vector<16x16xbf16>,
    %113 = vector.extract_strided_slice %100 {offsets = [96, 0], sizes = [16, 16], strides = [1, 1]} : vector<128x16xbf16> to vector<16x16xbf16>
    %c16_83 = arith.constant 16 : index
    %c32_84 = arith.constant 32 : index
    %114 = vector.load %arg23[%c16_83, %c32_84] : memref<32x64xbf16, #tpu.memory_space<vmem>>, vector<16x16xbf16>
    tpu.vector_store %arg23[%c16_83, %c32_84], %113 {strides = array<i32>} : memref<32x64xbf16, #tpu.memory_space<vmem>>, vector<16x16xbf16>,
    %115 = vector.extract_strided_slice %100 {offsets = [112, 0], sizes = [16, 16], strides = [1, 1]} : vector<128x16xbf16> to vector<16x16xbf16>
    %c16_85 = arith.constant 16 : index
    %c48_86 = arith.constant 48 : index
    %116 = vector.load %arg23[%c16_85, %c48_86] : memref<32x64xbf16, #tpu.memory_space<vmem>>, vector<16x16xbf16>
    tpu.vector_store %arg23[%c16_85, %c48_86], %115 {strides = array<i32>} : memref<32x64xbf16, #tpu.memory_space<vmem>>, vector<16x16xbf16>,
    %c0_87 = arith.constant 0 : index
    %c0_88 = arith.constant 0 : index
    %117 = vector.load %arg23[%c0_87, %c0_88] : memref<32x64xbf16, #tpu.memory_space<vmem>>, vector<32x64xbf16>
    %c0_89 = arith.constant 0 : index
    %c0_90 = arith.constant 0 : index
    %c0_91 = arith.constant 0 : index
    %118 = vector.load %arg7[%c0_89, %c0_90, %c0_91] : memref<2x64x64xbf16, #tpu.memory_space<vmem>>, vector<1x64x64xbf16>
    %119 = vector.shape_cast %118 : vector<1x64x64xbf16> to vector<64x64xbf16>
    %cst_92 = arith.constant dense<0.000000e+00> : vector<32x64xf32>
    %120 = tpu.matmul %117, %119, %cst_92 {dimension_numbers = #tpu.dot_dimension_numbers<[1], [0], [0], [1], [0, 0, 1, 1], [], []>} : vector<32x64xbf16>, vector<64x64xbf16>, vector<32x64xf32> -> vector<32x64xf32>
    %121 = arith.addf %0, %120 : vector<32x64xf32>
    %c0_93 = arith.constant 0 : index
    %c0_94 = arith.constant 0 : index
    %c0_95 = arith.constant 0 : index
    %122 = vector.load %arg8[%c0_93, %c0_94, %c0_95] : memref<2x1x64xf32, #tpu.memory_space<vmem>>, vector<1x1x64xf32>
    %123 = vector.shape_cast %122 : vector<1x1x64xf32> to vector<1x64xf32>
    %124 = vector.broadcast %123 : vector<1x64xf32> to vector<32x64xf32>
    %125 = arith.addf %121, %124 : vector<32x64xf32>
    %c0_96 = arith.constant 0 : index
    %c0_97 = arith.constant 0 : index
    %c0_98 = arith.constant 0 : index
    %126 = vector.load %arg9[%c0_96, %c0_97, %c0_98] : memref<2x1x64xf32, #tpu.memory_space<vmem>>, vector<1x1x64xf32>
    %127 = vector.shape_cast %126 : vector<1x1x64xf32> to vector<1x64xf32>
    %c0_99 = arith.constant 0 : index
    %c0_100 = arith.constant 0 : index
    %c0_101 = arith.constant 0 : index
    %128 = vector.load %arg10[%c0_99, %c0_100, %c0_101] : memref<2x1x64xf32, #tpu.memory_space<vmem>>, vector<1x1x64xf32>
    %129 = vector.shape_cast %128 : vector<1x1x64xf32> to vector<1x64xf32>
    %cst_102 = arith.constant dense<0.000000e+00> : vector<32xf32>
    %130 = vector.multi_reduction <add>, %125, %cst_102 [1] : vector<32x64xf32> to vector<32xf32>
    %131 = vector.shape_cast %130 : vector<32xf32> to vector<32x1xf32>
    %cst_103 = arith.constant 6.400000e+01 : f32
    %132 = vector.broadcast %cst_103 : f32 to vector<32x1xf32>
    %133 = arith.divf %131, %132 : vector<32x1xf32>
    %134 = vector.broadcast %133 : vector<32x1xf32> to vector<32x64xf32>
    %135 = arith.subf %125, %134 : vector<32x64xf32>
    %136 = arith.mulf %135, %135 : vector<32x64xf32>
    %cst_104 = arith.constant dense<0.000000e+00> : vector<32xf32>
    %137 = vector.multi_reduction <add>, %136, %cst_104 [1] : vector<32x64xf32> to vector<32xf32>
    %138 = vector.shape_cast %137 : vector<32xf32> to vector<32x1xf32>
    %cst_105 = arith.constant 6.400000e+01 : f32
    %139 = vector.broadcast %cst_105 : f32 to vector<32x1xf32>
    %140 = arith.divf %138, %139 : vector<32x1xf32>
    %cst_106 = arith.constant 9.99999974E-6 : f32
    %141 = vector.broadcast %cst_106 : f32 to vector<32x1xf32>
    %142 = arith.addf %140, %141 : vector<32x1xf32>
    %143 = math.rsqrt %142 : vector<32x1xf32>
    %144 = vector.broadcast %143 : vector<32x1xf32> to vector<32x64xf32>
    %145 = arith.mulf %135, %144 : vector<32x64xf32>
    %146 = vector.broadcast %127 : vector<1x64xf32> to vector<32x64xf32>
    %147 = arith.mulf %145, %146 : vector<32x64xf32>
    %148 = vector.broadcast %129 : vector<1x64xf32> to vector<32x64xf32>
    %149 = arith.addf %147, %148 : vector<32x64xf32>
    %c0_107 = arith.constant 0 : index
    %c0_108 = arith.constant 0 : index
    %c0_109 = arith.constant 0 : index
    %150 = vector.load %arg11[%c0_107, %c0_108, %c0_109] : memref<2x64x256xbf16, #tpu.memory_space<vmem>>, vector<1x64x256xbf16>
    %151 = vector.shape_cast %150 : vector<1x64x256xbf16> to vector<64x256xbf16>
    %152 = arith.truncf %149 : vector<32x64xf32> to vector<32x64xbf16>
    %cst_110 = arith.constant dense<0.000000e+00> : vector<32x256xf32>
    %153 = tpu.matmul %152, %151, %cst_110 {dimension_numbers = #tpu.dot_dimension_numbers<[1], [0], [0], [1], [0, 0, 1, 1], [], []>} : vector<32x64xbf16>, vector<64x256xbf16>, vector<32x256xf32> -> vector<32x256xf32>
    %c0_111 = arith.constant 0 : index
    %c0_112 = arith.constant 0 : index
    %c0_113 = arith.constant 0 : index
    %154 = vector.load %arg12[%c0_111, %c0_112, %c0_113] : memref<2x1x256xf32, #tpu.memory_space<vmem>>, vector<1x1x256xf32>
    %155 = vector.shape_cast %154 : vector<1x1x256xf32> to vector<1x256xf32>
    %156 = vector.broadcast %155 : vector<1x256xf32> to vector<32x256xf32>
    %157 = arith.addf %153, %156 : vector<32x256xf32>
    %cst_114 = arith.constant 5.000000e-01 : f32
    %158 = vector.broadcast %cst_114 : f32 to vector<32x256xf32>
    %159 = arith.mulf %158, %157 : vector<32x256xf32>
    %cst_115 = arith.constant 4.471500e-02 : f32
    %160 = vector.broadcast %cst_115 : f32 to vector<32x256xf32>
    %161 = arith.mulf %160, %157 : vector<32x256xf32>
    %162 = arith.mulf %161, %157 : vector<32x256xf32>
    %163 = arith.mulf %162, %157 : vector<32x256xf32>
    %164 = arith.addf %157, %163 : vector<32x256xf32>
    %cst_116 = arith.constant 0.797884583 : f32
    %165 = vector.broadcast %cst_116 : f32 to vector<32x256xf32>
    %166 = arith.mulf %165, %164 : vector<32x256xf32>
    %167 = math.tanh %166 : vector<32x256xf32>
    %cst_117 = arith.constant 1.000000e+00 : f32
    %168 = vector.broadcast %cst_117 : f32 to vector<32x256xf32>
    %169 = arith.addf %168, %167 : vector<32x256xf32>
    %170 = arith.mulf %159, %169 : vector<32x256xf32>
    %c0_118 = arith.constant 0 : index
    %c0_119 = arith.constant 0 : index
    %c0_120 = arith.constant 0 : index
    %171 = vector.load %arg13[%c0_118, %c0_119, %c0_120] : memref<2x256x64xbf16, #tpu.memory_space<vmem>>, vector<1x256x64xbf16>
    %172 = vector.shape_cast %171 : vector<1x256x64xbf16> to vector<256x64xbf16>
    %173 = arith.truncf %170 : vector<32x256xf32> to vector<32x256xbf16>
    %cst_121 = arith.constant dense<0.000000e+00> : vector<32x64xf32>
    %174 = tpu.matmul %173, %172, %cst_121 {dimension_numbers = #tpu.dot_dimension_numbers<[1], [0], [0], [1], [0, 0, 1, 1], [], []>} : vector<32x256xbf16>, vector<256x64xbf16>, vector<32x64xf32> -> vector<32x64xf32>
    %175 = arith.addf %125, %174 : vector<32x64xf32>
    %c0_122 = arith.constant 0 : index
    %c0_123 = arith.constant 0 : index
    %c0_124 = arith.constant 0 : index
    %176 = vector.load %arg14[%c0_122, %c0_123, %c0_124] : memref<2x1x64xf32, #tpu.memory_space<vmem>>, vector<1x1x64xf32>
    %177 = vector.shape_cast %176 : vector<1x1x64xf32> to vector<1x64xf32>
    %178 = vector.broadcast %177 : vector<1x64xf32> to vector<32x64xf32>
    %179 = arith.addf %175, %178 : vector<32x64xf32>
    %c1 = arith.constant 1 : index
    %c0_125 = arith.constant 0 : index
    %c0_126 = arith.constant 0 : index
    %180 = vector.load %arg3[%c1, %c0_125, %c0_126] : memref<2x1x64xf32, #tpu.memory_space<vmem>>, vector<1x1x64xf32>
    %181 = vector.shape_cast %180 : vector<1x1x64xf32> to vector<1x64xf32>
    %c1_127 = arith.constant 1 : index
    %c0_128 = arith.constant 0 : index
    %c0_129 = arith.constant 0 : index
    %182 = vector.load %arg4[%c1_127, %c0_128, %c0_129] : memref<2x1x64xf32, #tpu.memory_space<vmem>>, vector<1x1x64xf32>
    %183 = vector.shape_cast %182 : vector<1x1x64xf32> to vector<1x64xf32>
    %cst_130 = arith.constant dense<0.000000e+00> : vector<32xf32>
    %184 = vector.multi_reduction <add>, %179, %cst_130 [1] : vector<32x64xf32> to vector<32xf32>
    %185 = vector.shape_cast %184 : vector<32xf32> to vector<32x1xf32>
    %cst_131 = arith.constant 6.400000e+01 : f32
    %186 = vector.broadcast %cst_131 : f32 to vector<32x1xf32>
    %187 = arith.divf %185, %186 : vector<32x1xf32>
    %188 = vector.broadcast %187 : vector<32x1xf32> to vector<32x64xf32>
    %189 = arith.subf %179, %188 : vector<32x64xf32>
    %190 = arith.mulf %189, %189 : vector<32x64xf32>
    %cst_132 = arith.constant dense<0.000000e+00> : vector<32xf32>
    %191 = vector.multi_reduction <add>, %190, %cst_132 [1] : vector<32x64xf32> to vector<32xf32>
    %192 = vector.shape_cast %191 : vector<32xf32> to vector<32x1xf32>
    %cst_133 = arith.constant 6.400000e+01 : f32
    %193 = vector.broadcast %cst_133 : f32 to vector<32x1xf32>
    %194 = arith.divf %192, %193 : vector<32x1xf32>
    %cst_134 = arith.constant 9.99999974E-6 : f32
    %195 = vector.broadcast %cst_134 : f32 to vector<32x1xf32>
    %196 = arith.addf %194, %195 : vector<32x1xf32>
    %197 = math.rsqrt %196 : vector<32x1xf32>
    %198 = vector.broadcast %197 : vector<32x1xf32> to vector<32x64xf32>
    %199 = arith.mulf %189, %198 : vector<32x64xf32>
    %200 = vector.broadcast %181 : vector<1x64xf32> to vector<32x64xf32>
    %201 = arith.mulf %199, %200 : vector<32x64xf32>
    %202 = vector.broadcast %183 : vector<1x64xf32> to vector<32x64xf32>
    %203 = arith.addf %201, %202 : vector<32x64xf32>
    %c1_135 = arith.constant 1 : index
    %c0_136 = arith.constant 0 : index
    %c0_137 = arith.constant 0 : index
    %204 = vector.load %arg5[%c1_135, %c0_136, %c0_137] : memref<2x64x192xbf16, #tpu.memory_space<vmem>>, vector<1x64x192xbf16>
    %205 = vector.shape_cast %204 : vector<1x64x192xbf16> to vector<64x192xbf16>
    %206 = arith.truncf %203 : vector<32x64xf32> to vector<32x64xbf16>
    %cst_138 = arith.constant dense<0.000000e+00> : vector<32x192xf32>
    %207 = tpu.matmul %206, %205, %cst_138 {dimension_numbers = #tpu.dot_dimension_numbers<[1], [0], [0], [1], [0, 0, 1, 1], [], []>} : vector<32x64xbf16>, vector<64x192xbf16>, vector<32x192xf32> -> vector<32x192xf32>
    %c1_139 = arith.constant 1 : index
    %c0_140 = arith.constant 0 : index
    %c0_141 = arith.constant 0 : index
    %208 = vector.load %arg6[%c1_139, %c0_140, %c0_141] : memref<2x1x192xf32, #tpu.memory_space<vmem>>, vector<1x1x192xf32>
    %209 = vector.shape_cast %208 : vector<1x1x192xf32> to vector<1x192xf32>
    %210 = vector.broadcast %209 : vector<1x192xf32> to vector<32x192xf32>
    %211 = arith.addf %207, %210 : vector<32x192xf32>
    %212 = arith.truncf %211 : vector<32x192xf32> to vector<32x192xbf16>
    %213 = vector.extract_strided_slice %212 {offsets = [0, 0], sizes = [16, 16], strides = [1, 1]} : vector<32x192xbf16> to vector<16x16xbf16>
    %c0_142 = arith.constant 0 : index
    %c0_143 = arith.constant 0 : index
    %214 = vector.load %arg20[%c0_142, %c0_143] : memref<128x16xbf16, #tpu.memory_space<vmem>>, vector<16x16xbf16>
    tpu.vector_store %arg20[%c0_142, %c0_143], %213 {strides = array<i32>} : memref<128x16xbf16, #tpu.memory_space<vmem>>, vector<16x16xbf16>,
    %215 = vector.extract_strided_slice %212 {offsets = [0, 64], sizes = [16, 16], strides = [1, 1]} : vector<32x192xbf16> to vector<16x16xbf16>
    %c0_144 = arith.constant 0 : index
    %c0_145 = arith.constant 0 : index
    %216 = vector.load %arg21[%c0_144, %c0_145] : memref<128x16xbf16, #tpu.memory_space<vmem>>, vector<16x16xbf16>
    tpu.vector_store %arg21[%c0_144, %c0_145], %215 {strides = array<i32>} : memref<128x16xbf16, #tpu.memory_space<vmem>>, vector<16x16xbf16>,
    %217 = vector.extract_strided_slice %212 {offsets = [0, 128], sizes = [16, 16], strides = [1, 1]} : vector<32x192xbf16> to vector<16x16xbf16>
    %c0_146 = arith.constant 0 : index
    %c0_147 = arith.constant 0 : index
    %218 = vector.load %arg22[%c0_146, %c0_147] : memref<128x16xbf16, #tpu.memory_space<vmem>>, vector<16x16xbf16>
    tpu.vector_store %arg22[%c0_146, %c0_147], %217 {strides = array<i32>} : memref<128x16xbf16, #tpu.memory_space<vmem>>, vector<16x16xbf16>,
    %219 = vector.extract_strided_slice %212 {offsets = [0, 16], sizes = [16, 16], strides = [1, 1]} : vector<32x192xbf16> to vector<16x16xbf16>
    %c16_148 = arith.constant 16 : index
    %c0_149 = arith.constant 0 : index
    %220 = vector.load %arg20[%c16_148, %c0_149] : memref<128x16xbf16, #tpu.memory_space<vmem>>, vector<16x16xbf16>
    tpu.vector_store %arg20[%c16_148, %c0_149], %219 {strides = array<i32>} : memref<128x16xbf16, #tpu.memory_space<vmem>>, vector<16x16xbf16>,
    %221 = vector.extract_strided_slice %212 {offsets = [0, 80], sizes = [16, 16], strides = [1, 1]} : vector<32x192xbf16> to vector<16x16xbf16>
    %c16_150 = arith.constant 16 : index
    %c0_151 = arith.constant 0 : index
    %222 = vector.load %arg21[%c16_150, %c0_151] : memref<128x16xbf16, #tpu.memory_space<vmem>>, vector<16x16xbf16>
    tpu.vector_store %arg21[%c16_150, %c0_151], %221 {strides = array<i32>} : memref<128x16xbf16, #tpu.memory_space<vmem>>, vector<16x16xbf16>,
    %223 = vector.extract_strided_slice %212 {offsets = [0, 144], sizes = [16, 16], strides = [1, 1]} : vector<32x192xbf16> to vector<16x16xbf16>
    %c16_152 = arith.constant 16 : index
    %c0_153 = arith.constant 0 : index
    %224 = vector.load %arg22[%c16_152, %c0_153] : memref<128x16xbf16, #tpu.memory_space<vmem>>, vector<16x16xbf16>
    tpu.vector_store %arg22[%c16_152, %c0_153], %223 {strides = array<i32>} : memref<128x16xbf16, #tpu.memory_space<vmem>>, vector<16x16xbf16>,
    %225 = vector.extract_strided_slice %212 {offsets = [0, 32], sizes = [16, 16], strides = [1, 1]} : vector<32x192xbf16> to vector<16x16xbf16>
    %c32_154 = arith.constant 32 : index
    %c0_155 = arith.constant 0 : index
    %226 = vector.load %arg20[%c32_154, %c0_155] : memref<128x16xbf16, #tpu.memory_space<vmem>>, vector<16x16xbf16>
    tpu.vector_store %arg20[%c32_154, %c0_155], %225 {strides = array<i32>} : memref<128x16xbf16, #tpu.memory_space<vmem>>, vector<16x16xbf16>,
    %227 = vector.extract_strided_slice %212 {offsets = [0, 96], sizes = [16, 16], strides = [1, 1]} : vector<32x192xbf16> to vector<16x16xbf16>
    %c32_156 = arith.constant 32 : index
    %c0_157 = arith.constant 0 : index
    %228 = vector.load %arg21[%c32_156, %c0_157] : memref<128x16xbf16, #tpu.memory_space<vmem>>, vector<16x16xbf16>
    tpu.vector_store %arg21[%c32_156, %c0_157], %227 {strides = array<i32>} : memref<128x16xbf16, #tpu.memory_space<vmem>>, vector<16x16xbf16>,
    %229 = vector.extract_strided_slice %212 {offsets = [0, 160], sizes = [16, 16], strides = [1, 1]} : vector<32x192xbf16> to vector<16x16xbf16>
    %c32_158 = arith.constant 32 : index
    %c0_159 = arith.constant 0 : index
    %230 = vector.load %arg22[%c32_158, %c0_159] : memref<128x16xbf16, #tpu.memory_space<vmem>>, vector<16x16xbf16>
    tpu.vector_store %arg22[%c32_158, %c0_159], %229 {strides = array<i32>} : memref<128x16xbf16, #tpu.memory_space<vmem>>, vector<16x16xbf16>,
    %231 = vector.extract_strided_slice %212 {offsets = [0, 48], sizes = [16, 16], strides = [1, 1]} : vector<32x192xbf16> to vector<16x16xbf16>
    %c48_160 = arith.constant 48 : index
    %c0_161 = arith.constant 0 : index
    %232 = vector.load %arg20[%c48_160, %c0_161] : memref<128x16xbf16, #tpu.memory_space<vmem>>, vector<16x16xbf16>
    tpu.vector_store %arg20[%c48_160, %c0_161], %231 {strides = array<i32>} : memref<128x16xbf16, #tpu.memory_space<vmem>>, vector<16x16xbf16>,
    %233 = vector.extract_strided_slice %212 {offsets = [0, 112], sizes = [16, 16], strides = [1, 1]} : vector<32x192xbf16> to vector<16x16xbf16>
    %c48_162 = arith.constant 48 : index
    %c0_163 = arith.constant 0 : index
    %234 = vector.load %arg21[%c48_162, %c0_163] : memref<128x16xbf16, #tpu.memory_space<vmem>>, vector<16x16xbf16>
    tpu.vector_store %arg21[%c48_162, %c0_163], %233 {strides = array<i32>} : memref<128x16xbf16, #tpu.memory_space<vmem>>, vector<16x16xbf16>,
    %235 = vector.extract_strided_slice %212 {offsets = [0, 176], sizes = [16, 16], strides = [1, 1]} : vector<32x192xbf16> to vector<16x16xbf16>
    %c48_164 = arith.constant 48 : index
    %c0_165 = arith.constant 0 : index
    %236 = vector.load %arg22[%c48_164, %c0_165] : memref<128x16xbf16, #tpu.memory_space<vmem>>, vector<16x16xbf16>
    tpu.vector_store %arg22[%c48_164, %c0_165], %235 {strides = array<i32>} : memref<128x16xbf16, #tpu.memory_space<vmem>>, vector<16x16xbf16>,
    %237 = vector.extract_strided_slice %212 {offsets = [16, 0], sizes = [16, 16], strides = [1, 1]} : vector<32x192xbf16> to vector<16x16xbf16>
    %c64_166 = arith.constant 64 : index
    %c0_167 = arith.constant 0 : index
    %238 = vector.load %arg20[%c64_166, %c0_167] : memref<128x16xbf16, #tpu.memory_space<vmem>>, vector<16x16xbf16>
    tpu.vector_store %arg20[%c64_166, %c0_167], %237 {strides = array<i32>} : memref<128x16xbf16, #tpu.memory_space<vmem>>, vector<16x16xbf16>,
    %239 = vector.extract_strided_slice %212 {offsets = [16, 64], sizes = [16, 16], strides = [1, 1]} : vector<32x192xbf16> to vector<16x16xbf16>
    %c64_168 = arith.constant 64 : index
    %c0_169 = arith.constant 0 : index
    %240 = vector.load %arg21[%c64_168, %c0_169] : memref<128x16xbf16, #tpu.memory_space<vmem>>, vector<16x16xbf16>
    tpu.vector_store %arg21[%c64_168, %c0_169], %239 {strides = array<i32>} : memref<128x16xbf16, #tpu.memory_space<vmem>>, vector<16x16xbf16>,
    %241 = vector.extract_strided_slice %212 {offsets = [16, 128], sizes = [16, 16], strides = [1, 1]} : vector<32x192xbf16> to vector<16x16xbf16>
    %c64_170 = arith.constant 64 : index
    %c0_171 = arith.constant 0 : index
    %242 = vector.load %arg22[%c64_170, %c0_171] : memref<128x16xbf16, #tpu.memory_space<vmem>>, vector<16x16xbf16>
    tpu.vector_store %arg22[%c64_170, %c0_171], %241 {strides = array<i32>} : memref<128x16xbf16, #tpu.memory_space<vmem>>, vector<16x16xbf16>,
    %243 = vector.extract_strided_slice %212 {offsets = [16, 16], sizes = [16, 16], strides = [1, 1]} : vector<32x192xbf16> to vector<16x16xbf16>
    %c80_172 = arith.constant 80 : index
    %c0_173 = arith.constant 0 : index
    %244 = vector.load %arg20[%c80_172, %c0_173] : memref<128x16xbf16, #tpu.memory_space<vmem>>, vector<16x16xbf16>
    tpu.vector_store %arg20[%c80_172, %c0_173], %243 {strides = array<i32>} : memref<128x16xbf16, #tpu.memory_space<vmem>>, vector<16x16xbf16>,
    %245 = vector.extract_strided_slice %212 {offsets = [16, 80], sizes = [16, 16], strides = [1, 1]} : vector<32x192xbf16> to vector<16x16xbf16>
    %c80_174 = arith.constant 80 : index
    %c0_175 = arith.constant 0 : index
    %246 = vector.load %arg21[%c80_174, %c0_175] : memref<128x16xbf16, #tpu.memory_space<vmem>>, vector<16x16xbf16>
    tpu.vector_store %arg21[%c80_174, %c0_175], %245 {strides = array<i32>} : memref<128x16xbf16, #tpu.memory_space<vmem>>, vector<16x16xbf16>,
    %247 = vector.extract_strided_slice %212 {offsets = [16, 144], sizes = [16, 16], strides = [1, 1]} : vector<32x192xbf16> to vector<16x16xbf16>
    %c80_176 = arith.constant 80 : index
    %c0_177 = arith.constant 0 : index
    %248 = vector.load %arg22[%c80_176, %c0_177] : memref<128x16xbf16, #tpu.memory_space<vmem>>, vector<16x16xbf16>
    tpu.vector_store %arg22[%c80_176, %c0_177], %247 {strides = array<i32>} : memref<128x16xbf16, #tpu.memory_space<vmem>>, vector<16x16xbf16>,
    %249 = vector.extract_strided_slice %212 {offsets = [16, 32], sizes = [16, 16], strides = [1, 1]} : vector<32x192xbf16> to vector<16x16xbf16>
    %c96_178 = arith.constant 96 : index
    %c0_179 = arith.constant 0 : index
    %250 = vector.load %arg20[%c96_178, %c0_179] : memref<128x16xbf16, #tpu.memory_space<vmem>>, vector<16x16xbf16>
    tpu.vector_store %arg20[%c96_178, %c0_179], %249 {strides = array<i32>} : memref<128x16xbf16, #tpu.memory_space<vmem>>, vector<16x16xbf16>,
    %251 = vector.extract_strided_slice %212 {offsets = [16, 96], sizes = [16, 16], strides = [1, 1]} : vector<32x192xbf16> to vector<16x16xbf16>
    %c96_180 = arith.constant 96 : index
    %c0_181 = arith.constant 0 : index
    %252 = vector.load %arg21[%c96_180, %c0_181] : memref<128x16xbf16, #tpu.memory_space<vmem>>, vector<16x16xbf16>
    tpu.vector_store %arg21[%c96_180, %c0_181], %251 {strides = array<i32>} : memref<128x16xbf16, #tpu.memory_space<vmem>>, vector<16x16xbf16>,
    %253 = vector.extract_strided_slice %212 {offsets = [16, 160], sizes = [16, 16], strides = [1, 1]} : vector<32x192xbf16> to vector<16x16xbf16>
    %c96_182 = arith.constant 96 : index
    %c0_183 = arith.constant 0 : index
    %254 = vector.load %arg22[%c96_182, %c0_183] : memref<128x16xbf16, #tpu.memory_space<vmem>>, vector<16x16xbf16>
    tpu.vector_store %arg22[%c96_182, %c0_183], %253 {strides = array<i32>} : memref<128x16xbf16, #tpu.memory_space<vmem>>, vector<16x16xbf16>,
    %255 = vector.extract_strided_slice %212 {offsets = [16, 48], sizes = [16, 16], strides = [1, 1]} : vector<32x192xbf16> to vector<16x16xbf16>
    %c112_184 = arith.constant 112 : index
    %c0_185 = arith.constant 0 : index
    %256 = vector.load %arg20[%c112_184, %c0_185] : memref<128x16xbf16, #tpu.memory_space<vmem>>, vector<16x16xbf16>
    tpu.vector_store %arg20[%c112_184, %c0_185], %255 {strides = array<i32>} : memref<128x16xbf16, #tpu.memory_space<vmem>>, vector<16x16xbf16>,
    %257 = vector.extract_strided_slice %212 {offsets = [16, 112], sizes = [16, 16], strides = [1, 1]} : vector<32x192xbf16> to vector<16x16xbf16>
    %c112_186 = arith.constant 112 : index
    %c0_187 = arith.constant 0 : index
    %258 = vector.load %arg21[%c112_186, %c0_187] : memref<128x16xbf16, #tpu.memory_space<vmem>>, vector<16x16xbf16>
    tpu.vector_store %arg21[%c112_186, %c0_187], %257 {strides = array<i32>} : memref<128x16xbf16, #tpu.memory_space<vmem>>, vector<16x16xbf16>,
    %259 = vector.extract_strided_slice %212 {offsets = [16, 176], sizes = [16, 16], strides = [1, 1]} : vector<32x192xbf16> to vector<16x16xbf16>
    %c112_188 = arith.constant 112 : index
    %c0_189 = arith.constant 0 : index
    %260 = vector.load %arg22[%c112_188, %c0_189] : memref<128x16xbf16, #tpu.memory_space<vmem>>, vector<16x16xbf16>
    tpu.vector_store %arg22[%c112_188, %c0_189], %259 {strides = array<i32>} : memref<128x16xbf16, #tpu.memory_space<vmem>>, vector<16x16xbf16>,
    %c0_190 = arith.constant 0 : index
    %c0_191 = arith.constant 0 : index
    %261 = vector.load %arg20[%c0_190, %c0_191] : memref<128x16xbf16, #tpu.memory_space<vmem>>, vector<128x16xbf16>
    %c0_192 = arith.constant 0 : index
    %c0_193 = arith.constant 0 : index
    %262 = vector.load %arg21[%c0_192, %c0_193] : memref<128x16xbf16, #tpu.memory_space<vmem>>, vector<128x16xbf16>
    %cst_194 = arith.constant dense<0.000000e+00> : vector<128x128xf32>
    %263 = tpu.matmul %261, %262, %cst_194 {dimension_numbers = #tpu.dot_dimension_numbers<[1], [1], [0], [0], [0, 0, 1, 0], [], []>} : vector<128x16xbf16>, vector<128x16xbf16>, vector<128x128xf32> -> vector<128x128xf32>
    %c0_195 = arith.constant 0 : index
    %c0_196 = arith.constant 0 : index
    %264 = vector.load %arg2[%c0_195, %c0_196] : memref<128x128xf32, #tpu.memory_space<vmem>>, vector<128x128xf32>
    %265 = arith.addf %263, %264 : vector<128x128xf32>
    %cst_197 = arith.constant dense<0xFF800000> : vector<128xf32>
    %266 = vector.multi_reduction <maximumf>, %265, %cst_197 [1] : vector<128x128xf32> to vector<128xf32>
    %267 = vector.shape_cast %266 : vector<128xf32> to vector<128x1xf32>
    %268 = vector.broadcast %267 : vector<128x1xf32> to vector<128x128xf32>
    %269 = arith.subf %265, %268 : vector<128x128xf32>
    %270 = math.exp %269 : vector<128x128xf32>
    %cst_198 = arith.constant dense<0.000000e+00> : vector<128xf32>
    %271 = vector.multi_reduction <add>, %270, %cst_198 [1] : vector<128x128xf32> to vector<128xf32>
    %272 = vector.shape_cast %271 : vector<128xf32> to vector<128x1xf32>
    %273 = tpu.reciprocal %272 {approx = true} : vector<128x1xf32> -> vector<128x1xf32>
    %274 = vector.broadcast %273 : vector<128x1xf32> to vector<128x128xf32>
    %275 = arith.mulf %270, %274 : vector<128x128xf32>
    %c0_199 = arith.constant 0 : index
    %c0_200 = arith.constant 0 : index
    %276 = vector.load %arg22[%c0_199, %c0_200] : memref<128x16xbf16, #tpu.memory_space<vmem>>, vector<128x16xbf16>
    %277 = arith.truncf %275 : vector<128x128xf32> to vector<128x128xbf16>
    %cst_201 = arith.constant dense<0.000000e+00> : vector<128x16xf32>
    %278 = tpu.matmul %277, %276, %cst_201 {dimension_numbers = #tpu.dot_dimension_numbers<[1], [0], [0], [1], [0, 0, 1, 1], [], []>} : vector<128x128xbf16>, vector<128x16xbf16>, vector<128x16xf32> -> vector<128x16xf32>
    %279 = arith.truncf %278 : vector<128x16xf32> to vector<128x16xbf16>
    %280 = vector.extract_strided_slice %279 {offsets = [0, 0], sizes = [16, 16], strides = [1, 1]} : vector<128x16xbf16> to vector<16x16xbf16>
    %c0_202 = arith.constant 0 : index
    %c0_203 = arith.constant 0 : index
    %281 = vector.load %arg23[%c0_202, %c0_203] : memref<32x64xbf16, #tpu.memory_space<vmem>>, vector<16x16xbf16>
    tpu.vector_store %arg23[%c0_202, %c0_203], %280 {strides = array<i32>} : memref<32x64xbf16, #tpu.memory_space<vmem>>, vector<16x16xbf16>,
    %282 = vector.extract_strided_slice %279 {offsets = [16, 0], sizes = [16, 16], strides = [1, 1]} : vector<128x16xbf16> to vector<16x16xbf16>
    %c0_204 = arith.constant 0 : index
    %c16_205 = arith.constant 16 : index
    %283 = vector.load %arg23[%c0_204, %c16_205] : memref<32x64xbf16, #tpu.memory_space<vmem>>, vector<16x16xbf16>
    tpu.vector_store %arg23[%c0_204, %c16_205], %282 {strides = array<i32>} : memref<32x64xbf16, #tpu.memory_space<vmem>>, vector<16x16xbf16>,
    %284 = vector.extract_strided_slice %279 {offsets = [32, 0], sizes = [16, 16], strides = [1, 1]} : vector<128x16xbf16> to vector<16x16xbf16>
    %c0_206 = arith.constant 0 : index
    %c32_207 = arith.constant 32 : index
    %285 = vector.load %arg23[%c0_206, %c32_207] : memref<32x64xbf16, #tpu.memory_space<vmem>>, vector<16x16xbf16>
    tpu.vector_store %arg23[%c0_206, %c32_207], %284 {strides = array<i32>} : memref<32x64xbf16, #tpu.memory_space<vmem>>, vector<16x16xbf16>,
    %286 = vector.extract_strided_slice %279 {offsets = [48, 0], sizes = [16, 16], strides = [1, 1]} : vector<128x16xbf16> to vector<16x16xbf16>
    %c0_208 = arith.constant 0 : index
    %c48_209 = arith.constant 48 : index
    %287 = vector.load %arg23[%c0_208, %c48_209] : memref<32x64xbf16, #tpu.memory_space<vmem>>, vector<16x16xbf16>
    tpu.vector_store %arg23[%c0_208, %c48_209], %286 {strides = array<i32>} : memref<32x64xbf16, #tpu.memory_space<vmem>>, vector<16x16xbf16>,
    %288 = vector.extract_strided_slice %279 {offsets = [64, 0], sizes = [16, 16], strides = [1, 1]} : vector<128x16xbf16> to vector<16x16xbf16>
    %c16_210 = arith.constant 16 : index
    %c0_211 = arith.constant 0 : index
    %289 = vector.load %arg23[%c16_210, %c0_211] : memref<32x64xbf16, #tpu.memory_space<vmem>>, vector<16x16xbf16>
    tpu.vector_store %arg23[%c16_210, %c0_211], %288 {strides = array<i32>} : memref<32x64xbf16, #tpu.memory_space<vmem>>, vector<16x16xbf16>,
    %290 = vector.extract_strided_slice %279 {offsets = [80, 0], sizes = [16, 16], strides = [1, 1]} : vector<128x16xbf16> to vector<16x16xbf16>
    %c16_212 = arith.constant 16 : index
    %c16_213 = arith.constant 16 : index
    %291 = vector.load %arg23[%c16_212, %c16_213] : memref<32x64xbf16, #tpu.memory_space<vmem>>, vector<16x16xbf16>
    tpu.vector_store %arg23[%c16_212, %c16_213], %290 {strides = array<i32>} : memref<32x64xbf16, #tpu.memory_space<vmem>>, vector<16x16xbf16>,
    %292 = vector.extract_strided_slice %279 {offsets = [96, 0], sizes = [16, 16], strides = [1, 1]} : vector<128x16xbf16> to vector<16x16xbf16>
    %c16_214 = arith.constant 16 : index
    %c32_215 = arith.constant 32 : index
    %293 = vector.load %arg23[%c16_214, %c32_215] : memref<32x64xbf16, #tpu.memory_space<vmem>>, vector<16x16xbf16>
    tpu.vector_store %arg23[%c16_214, %c32_215], %292 {strides = array<i32>} : memref<32x64xbf16, #tpu.memory_space<vmem>>, vector<16x16xbf16>,
    %294 = vector.extract_strided_slice %279 {offsets = [112, 0], sizes = [16, 16], strides = [1, 1]} : vector<128x16xbf16> to vector<16x16xbf16>
    %c16_216 = arith.constant 16 : index
    %c48_217 = arith.constant 48 : index
    %295 = vector.load %arg23[%c16_216, %c48_217] : memref<32x64xbf16, #tpu.memory_space<vmem>>, vector<16x16xbf16>
    tpu.vector_store %arg23[%c16_216, %c48_217], %294 {strides = array<i32>} : memref<32x64xbf16, #tpu.memory_space<vmem>>, vector<16x16xbf16>,
    %c0_218 = arith.constant 0 : index
    %c0_219 = arith.constant 0 : index
    %296 = vector.load %arg23[%c0_218, %c0_219] : memref<32x64xbf16, #tpu.memory_space<vmem>>, vector<32x64xbf16>
    %c1_220 = arith.constant 1 : index
    %c0_221 = arith.constant 0 : index
    %c0_222 = arith.constant 0 : index
    %297 = vector.load %arg7[%c1_220, %c0_221, %c0_222] : memref<2x64x64xbf16, #tpu.memory_space<vmem>>, vector<1x64x64xbf16>
    %298 = vector.shape_cast %297 : vector<1x64x64xbf16> to vector<64x64xbf16>
    %cst_223 = arith.constant dense<0.000000e+00> : vector<32x64xf32>
    %299 = tpu.matmul %296, %298, %cst_223 {dimension_numbers = #tpu.dot_dimension_numbers<[1], [0], [0], [1], [0, 0, 1, 1], [], []>} : vector<32x64xbf16>, vector<64x64xbf16>, vector<32x64xf32> -> vector<32x64xf32>
    %300 = arith.addf %179, %299 : vector<32x64xf32>
    %c1_224 = arith.constant 1 : index
    %c0_225 = arith.constant 0 : index
    %c0_226 = arith.constant 0 : index
    %301 = vector.load %arg8[%c1_224, %c0_225, %c0_226] : memref<2x1x64xf32, #tpu.memory_space<vmem>>, vector<1x1x64xf32>
    %302 = vector.shape_cast %301 : vector<1x1x64xf32> to vector<1x64xf32>
    %303 = vector.broadcast %302 : vector<1x64xf32> to vector<32x64xf32>
    %304 = arith.addf %300, %303 : vector<32x64xf32>
    %c1_227 = arith.constant 1 : index
    %c0_228 = arith.constant 0 : index
    %c0_229 = arith.constant 0 : index
    %305 = vector.load %arg9[%c1_227, %c0_228, %c0_229] : memref<2x1x64xf32, #tpu.memory_space<vmem>>, vector<1x1x64xf32>
    %306 = vector.shape_cast %305 : vector<1x1x64xf32> to vector<1x64xf32>
    %c1_230 = arith.constant 1 : index
    %c0_231 = arith.constant 0 : index
    %c0_232 = arith.constant 0 : index
    %307 = vector.load %arg10[%c1_230, %c0_231, %c0_232] : memref<2x1x64xf32, #tpu.memory_space<vmem>>, vector<1x1x64xf32>
    %308 = vector.shape_cast %307 : vector<1x1x64xf32> to vector<1x64xf32>
    %cst_233 = arith.constant dense<0.000000e+00> : vector<32xf32>
    %309 = vector.multi_reduction <add>, %304, %cst_233 [1] : vector<32x64xf32> to vector<32xf32>
    %310 = vector.shape_cast %309 : vector<32xf32> to vector<32x1xf32>
    %cst_234 = arith.constant 6.400000e+01 : f32
    %311 = vector.broadcast %cst_234 : f32 to vector<32x1xf32>
    %312 = arith.divf %310, %311 : vector<32x1xf32>
    %313 = vector.broadcast %312 : vector<32x1xf32> to vector<32x64xf32>
    %314 = arith.subf %304, %313 : vector<32x64xf32>
    %315 = arith.mulf %314, %314 : vector<32x64xf32>
    %cst_235 = arith.constant dense<0.000000e+00> : vector<32xf32>
    %316 = vector.multi_reduction <add>, %315, %cst_235 [1] : vector<32x64xf32> to vector<32xf32>
    %317 = vector.shape_cast %316 : vector<32xf32> to vector<32x1xf32>
    %cst_236 = arith.constant 6.400000e+01 : f32
    %318 = vector.broadcast %cst_236 : f32 to vector<32x1xf32>
    %319 = arith.divf %317, %318 : vector<32x1xf32>
    %cst_237 = arith.constant 9.99999974E-6 : f32
    %320 = vector.broadcast %cst_237 : f32 to vector<32x1xf32>
    %321 = arith.addf %319, %320 : vector<32x1xf32>
    %322 = math.rsqrt %321 : vector<32x1xf32>
    %323 = vector.broadcast %322 : vector<32x1xf32> to vector<32x64xf32>
    %324 = arith.mulf %314, %323 : vector<32x64xf32>
    %325 = vector.broadcast %306 : vector<1x64xf32> to vector<32x64xf32>
    %326 = arith.mulf %324, %325 : vector<32x64xf32>
    %327 = vector.broadcast %308 : vector<1x64xf32> to vector<32x64xf32>
    %328 = arith.addf %326, %327 : vector<32x64xf32>
    %c1_238 = arith.constant 1 : index
    %c0_239 = arith.constant 0 : index
    %c0_240 = arith.constant 0 : index
    %329 = vector.load %arg11[%c1_238, %c0_239, %c0_240] : memref<2x64x256xbf16, #tpu.memory_space<vmem>>, vector<1x64x256xbf16>
    %330 = vector.shape_cast %329 : vector<1x64x256xbf16> to vector<64x256xbf16>
    %331 = arith.truncf %328 : vector<32x64xf32> to vector<32x64xbf16>
    %cst_241 = arith.constant dense<0.000000e+00> : vector<32x256xf32>
    %332 = tpu.matmul %331, %330, %cst_241 {dimension_numbers = #tpu.dot_dimension_numbers<[1], [0], [0], [1], [0, 0, 1, 1], [], []>} : vector<32x64xbf16>, vector<64x256xbf16>, vector<32x256xf32> -> vector<32x256xf32>
    %c1_242 = arith.constant 1 : index
    %c0_243 = arith.constant 0 : index
    %c0_244 = arith.constant 0 : index
    %333 = vector.load %arg12[%c1_242, %c0_243, %c0_244] : memref<2x1x256xf32, #tpu.memory_space<vmem>>, vector<1x1x256xf32>
    %334 = vector.shape_cast %333 : vector<1x1x256xf32> to vector<1x256xf32>
    %335 = vector.broadcast %334 : vector<1x256xf32> to vector<32x256xf32>
    %336 = arith.addf %332, %335 : vector<32x256xf32>
    %cst_245 = arith.constant 5.000000e-01 : f32
    %337 = vector.broadcast %cst_245 : f32 to vector<32x256xf32>
    %338 = arith.mulf %337, %336 : vector<32x256xf32>
    %cst_246 = arith.constant 4.471500e-02 : f32
    %339 = vector.broadcast %cst_246 : f32 to vector<32x256xf32>
    %340 = arith.mulf %339, %336 : vector<32x256xf32>
    %341 = arith.mulf %340, %336 : vector<32x256xf32>
    %342 = arith.mulf %341, %336 : vector<32x256xf32>
    %343 = arith.addf %336, %342 : vector<32x256xf32>
    %cst_247 = arith.constant 0.797884583 : f32
    %344 = vector.broadcast %cst_247 : f32 to vector<32x256xf32>
    %345 = arith.mulf %344, %343 : vector<32x256xf32>
    %346 = math.tanh %345 : vector<32x256xf32>
    %cst_248 = arith.constant 1.000000e+00 : f32
    %347 = vector.broadcast %cst_248 : f32 to vector<32x256xf32>
    %348 = arith.addf %347, %346 : vector<32x256xf32>
    %349 = arith.mulf %338, %348 : vector<32x256xf32>
    %c1_249 = arith.constant 1 : index
    %c0_250 = arith.constant 0 : index
    %c0_251 = arith.constant 0 : index
    %350 = vector.load %arg13[%c1_249, %c0_250, %c0_251] : memref<2x256x64xbf16, #tpu.memory_space<vmem>>, vector<1x256x64xbf16>
    %351 = vector.shape_cast %350 : vector<1x256x64xbf16> to vector<256x64xbf16>
    %352 = arith.truncf %349 : vector<32x256xf32> to vector<32x256xbf16>
    %cst_252 = arith.constant dense<0.000000e+00> : vector<32x64xf32>
    %353 = tpu.matmul %352, %351, %cst_252 {dimension_numbers = #tpu.dot_dimension_numbers<[1], [0], [0], [1], [0, 0, 1, 1], [], []>} : vector<32x256xbf16>, vector<256x64xbf16>, vector<32x64xf32> -> vector<32x64xf32>
    %354 = arith.addf %304, %353 : vector<32x64xf32>
    %c1_253 = arith.constant 1 : index
    %c0_254 = arith.constant 0 : index
    %c0_255 = arith.constant 0 : index
    %355 = vector.load %arg14[%c1_253, %c0_254, %c0_255] : memref<2x1x64xf32, #tpu.memory_space<vmem>>, vector<1x1x64xf32>
    %356 = vector.shape_cast %355 : vector<1x1x64xf32> to vector<1x64xf32>
    %357 = vector.broadcast %356 : vector<1x64xf32> to vector<32x64xf32>
    %358 = arith.addf %354, %357 : vector<32x64xf32>
    %c0_256 = arith.constant 0 : index
    %c0_257 = arith.constant 0 : index
    %359 = vector.load %arg15[%c0_256, %c0_257] : memref<1x64xf32, #tpu.memory_space<vmem>>, vector<1x64xf32>
    %c0_258 = arith.constant 0 : index
    %c0_259 = arith.constant 0 : index
    %360 = vector.load %arg16[%c0_258, %c0_259] : memref<1x64xf32, #tpu.memory_space<vmem>>, vector<1x64xf32>
    %cst_260 = arith.constant dense<0.000000e+00> : vector<32xf32>
    %361 = vector.multi_reduction <add>, %358, %cst_260 [1] : vector<32x64xf32> to vector<32xf32>
    %362 = vector.shape_cast %361 : vector<32xf32> to vector<32x1xf32>
    %cst_261 = arith.constant 6.400000e+01 : f32
    %363 = vector.broadcast %cst_261 : f32 to vector<32x1xf32>
    %364 = arith.divf %362, %363 : vector<32x1xf32>
    %365 = vector.broadcast %364 : vector<32x1xf32> to vector<32x64xf32>
    %366 = arith.subf %358, %365 : vector<32x64xf32>
    %367 = arith.mulf %366, %366 : vector<32x64xf32>
    %cst_262 = arith.constant dense<0.000000e+00> : vector<32xf32>
    %368 = vector.multi_reduction <add>, %367, %cst_262 [1] : vector<32x64xf32> to vector<32xf32>
    %369 = vector.shape_cast %368 : vector<32xf32> to vector<32x1xf32>
    %cst_263 = arith.constant 6.400000e+01 : f32
    %370 = vector.broadcast %cst_263 : f32 to vector<32x1xf32>
    %371 = arith.divf %369, %370 : vector<32x1xf32>
    %cst_264 = arith.constant 9.99999974E-6 : f32
    %372 = vector.broadcast %cst_264 : f32 to vector<32x1xf32>
    %373 = arith.addf %371, %372 : vector<32x1xf32>
    %374 = math.rsqrt %373 : vector<32x1xf32>
    %375 = vector.broadcast %374 : vector<32x1xf32> to vector<32x64xf32>
    %376 = arith.mulf %366, %375 : vector<32x64xf32>
    %377 = vector.broadcast %359 : vector<1x64xf32> to vector<32x64xf32>
    %378 = arith.mulf %376, %377 : vector<32x64xf32>
    %379 = vector.broadcast %360 : vector<1x64xf32> to vector<32x64xf32>
    %380 = arith.addf %378, %379 : vector<32x64xf32>
    %c0_265 = arith.constant 0 : index
    %c0_266 = arith.constant 0 : index
    %381 = vector.load %arg17[%c0_265, %c0_266] : memref<64x128xbf16, #tpu.memory_space<vmem>>, vector<64x128xbf16>
    %382 = arith.truncf %380 : vector<32x64xf32> to vector<32x64xbf16>
    %cst_267 = arith.constant dense<0.000000e+00> : vector<32x128xf32>
    %383 = tpu.matmul %382, %381, %cst_267 {dimension_numbers = #tpu.dot_dimension_numbers<[1], [0], [0], [1], [0, 0, 1, 1], [], []>} : vector<32x64xbf16>, vector<64x128xbf16>, vector<32x128xf32> -> vector<32x128xf32>
    %c0_268 = arith.constant 0 : index
    %c0_269 = arith.constant 0 : index
    %384 = vector.load %arg18[%c0_268, %c0_269] : memref<1x128xf32, #tpu.memory_space<vmem>>, vector<1x128xf32>
    %385 = vector.broadcast %384 : vector<1x128xf32> to vector<32x128xf32>
    %386 = arith.addf %383, %385 : vector<32x128xf32>
    %387 = vector.extract_strided_slice %386 {offsets = [8, 0], sizes = [8, 128], strides = [1, 1]} : vector<32x128xf32> to vector<8x128xf32>
    %c0_270 = arith.constant 0 : index
    %c0_271 = arith.constant 0 : index
    %388 = vector.load %arg19[%c0_270, %c0_271] : memref<16x128xf32, #tpu.memory_space<vmem>>, vector<8x128xf32>
    tpu.vector_store %arg19[%c0_270, %c0_271], %387 {strides = array<i32>} : memref<16x128xf32, #tpu.memory_space<vmem>>, vector<8x128xf32>,
    %389 = vector.extract_strided_slice %386 {offsets = [24, 0], sizes = [8, 128], strides = [1, 1]} : vector<32x128xf32> to vector<8x128xf32>
    %c8 = arith.constant 8 : index
    %c0_272 = arith.constant 0 : index
    %390 = vector.load %arg19[%c8, %c0_272] : memref<16x128xf32, #tpu.memory_space<vmem>>, vector<8x128xf32>
    tpu.vector_store %arg19[%c8, %c0_272], %389 {strides = array<i32>} : memref<16x128xf32, #tpu.memory_space<vmem>>, vector<8x128xf32>,
    return
  }
  func.func @transform_0(%arg0: i32) -> (i32, i32) {
    %c0_i32 = arith.constant 0 : i32
    %c0_i32_0 = arith.constant 0 : i32
    return %arg0, %c0_i32 : i32, i32
  }
  func.func @transform_1(%arg0: i32) -> (i32, i32) {
    %c0_i32 = arith.constant 0 : i32
    %c0_i32_0 = arith.constant 0 : i32
    %c0_i32_1 = arith.constant 0 : i32
    return %c0_i32, %c0_i32_0 : i32, i32
  }
  func.func @transform_2(%arg0: i32) -> (i32, i32, i32) {
    %c0_i32 = arith.constant 0 : i32
    %c0_i32_0 = arith.constant 0 : i32
    %c0_i32_1 = arith.constant 0 : i32
    %c0_i32_2 = arith.constant 0 : i32
    return %c0_i32, %c0_i32_0, %c0_i32_1 : i32, i32, i32
  }
  func.func @transform_3(%arg0: i32) -> (i32, i32, i32) {
    %c0_i32 = arith.constant 0 : i32
    %c0_i32_0 = arith.constant 0 : i32
    %c0_i32_1 = arith.constant 0 : i32
    %c0_i32_2 = arith.constant 0 : i32
    return %c0_i32, %c0_i32_0, %c0_i32_1 : i32, i32, i32
  }
  func.func @transform_4(%arg0: i32) -> (i32, i32, i32) {
    %c0_i32 = arith.constant 0 : i32
    %c0_i32_0 = arith.constant 0 : i32
    %c0_i32_1 = arith.constant 0 : i32
    %c0_i32_2 = arith.constant 0 : i32
    return %c0_i32, %c0_i32_0, %c0_i32_1 : i32, i32, i32
  }
  func.func @transform_5(%arg0: i32) -> (i32, i32, i32) {
    %c0_i32 = arith.constant 0 : i32
    %c0_i32_0 = arith.constant 0 : i32
    %c0_i32_1 = arith.constant 0 : i32
    %c0_i32_2 = arith.constant 0 : i32
    return %c0_i32, %c0_i32_0, %c0_i32_1 : i32, i32, i32
  }
  func.func @transform_6(%arg0: i32) -> (i32, i32, i32) {
    %c0_i32 = arith.constant 0 : i32
    %c0_i32_0 = arith.constant 0 : i32
    %c0_i32_1 = arith.constant 0 : i32
    %c0_i32_2 = arith.constant 0 : i32
    return %c0_i32, %c0_i32_0, %c0_i32_1 : i32, i32, i32
  }
  func.func @transform_7(%arg0: i32) -> (i32, i32, i32) {
    %c0_i32 = arith.constant 0 : i32
    %c0_i32_0 = arith.constant 0 : i32
    %c0_i32_1 = arith.constant 0 : i32
    %c0_i32_2 = arith.constant 0 : i32
    return %c0_i32, %c0_i32_0, %c0_i32_1 : i32, i32, i32
  }
  func.func @transform_8(%arg0: i32) -> (i32, i32, i32) {
    %c0_i32 = arith.constant 0 : i32
    %c0_i32_0 = arith.constant 0 : i32
    %c0_i32_1 = arith.constant 0 : i32
    %c0_i32_2 = arith.constant 0 : i32
    return %c0_i32, %c0_i32_0, %c0_i32_1 : i32, i32, i32
  }
  func.func @transform_9(%arg0: i32) -> (i32, i32, i32) {
    %c0_i32 = arith.constant 0 : i32
    %c0_i32_0 = arith.constant 0 : i32
    %c0_i32_1 = arith.constant 0 : i32
    %c0_i32_2 = arith.constant 0 : i32
    return %c0_i32, %c0_i32_0, %c0_i32_1 : i32, i32, i32
  }
  func.func @transform_10(%arg0: i32) -> (i32, i32, i32) {
    %c0_i32 = arith.constant 0 : i32
    %c0_i32_0 = arith.constant 0 : i32
    %c0_i32_1 = arith.constant 0 : i32
    %c0_i32_2 = arith.constant 0 : i32
    return %c0_i32, %c0_i32_0, %c0_i32_1 : i32, i32, i32
  }
  func.func @transform_11(%arg0: i32) -> (i32, i32, i32) {
    %c0_i32 = arith.constant 0 : i32
    %c0_i32_0 = arith.constant 0 : i32
    %c0_i32_1 = arith.constant 0 : i32
    %c0_i32_2 = arith.constant 0 : i32
    return %c0_i32, %c0_i32_0, %c0_i32_1 : i32, i32, i32
  }
  func.func @transform_12(%arg0: i32) -> (i32, i32, i32) {
    %c0_i32 = arith.constant 0 : i32
    %c0_i32_0 = arith.constant 0 : i32
    %c0_i32_1 = arith.constant 0 : i32
    %c0_i32_2 = arith.constant 0 : i32
    return %c0_i32, %c0_i32_0, %c0_i32_1 : i32, i32, i32
  }
  func.func @transform_13(%arg0: i32) -> (i32, i32, i32) {
    %c0_i32 = arith.constant 0 : i32
    %c0_i32_0 = arith.constant 0 : i32
    %c0_i32_1 = arith.constant 0 : i32
    %c0_i32_2 = arith.constant 0 : i32
    return %c0_i32, %c0_i32_0, %c0_i32_1 : i32, i32, i32
  }
  func.func @transform_14(%arg0: i32) -> (i32, i32) {
    %c0_i32 = arith.constant 0 : i32
    %c0_i32_0 = arith.constant 0 : i32
    %c0_i32_1 = arith.constant 0 : i32
    return %c0_i32, %c0_i32_0 : i32, i32
  }
  func.func @transform_15(%arg0: i32) -> (i32, i32) {
    %c0_i32 = arith.constant 0 : i32
    %c0_i32_0 = arith.constant 0 : i32
    %c0_i32_1 = arith.constant 0 : i32
    return %c0_i32, %c0_i32_0 : i32, i32
  }
  func.func @transform_16(%arg0: i32) -> (i32, i32) {
    %c0_i32 = arith.constant 0 : i32
    %c0_i32_0 = arith.constant 0 : i32
    %c0_i32_1 = arith.constant 0 : i32
    return %c0_i32, %c0_i32_0 : i32, i32
  }
  func.func @transform_17(%arg0: i32) -> (i32, i32) {
    %c0_i32 = arith.constant 0 : i32
    %c0_i32_0 = arith.constant 0 : i32
    %c0_i32_1 = arith.constant 0 : i32
    return %c0_i32, %c0_i32_0 : i32, i32
  }
  func.func @transform_18(%arg0: i32) -> (i32, i32) {
    %c0_i32 = arith.constant 0 : i32
    %c0_i32_0 = arith.constant 0 : i32
    return %arg0, %c0_i32 : i32, i32
  }
}

</mosaic_0001>

<llo_original>
// kernel: chatbot_forward.1
$region0: #{chatbot_forward.1}
  #allocation0 [shape = 'u32[]', space=smem, size = 0x4, offset = 0x4, fixed_abs, tag = 'smem constant byte address 0x4 - core index']
  #allocation1 [shape = 'u32[144,128]{1,0:T(1,128)}', space=vmem, size = 0x12000, scoped, tag = 'internal scratch']
  #allocation2 [shape = 'bf16[128,16]{1,0:T(16,128)(2,1)}', space=vmem, size = 0x8000, scoped, tag = 'scratch operand']
  #allocation3 [shape = 'bf16[128,16]{1,0:T(16,128)(2,1)}', space=vmem, size = 0x8000, scoped, tag = 'scratch operand']
  #allocation4 [shape = 'bf16[128,16]{1,0:T(16,128)(2,1)}', space=vmem, size = 0x8000, scoped, tag = 'scratch operand']
  #allocation5 [shape = 'bf16[32,64]{1,0:T(16,128)(2,1)}', space=vmem, size = 0x2000, scoped, tag = 'scratch operand']
  %s0 = inlined_call_operand.vmem [shape: f32[32,64], index: 0, kind: input, shape index: {}]
  %s1 = inlined_call_operand.vmem [shape: f32[128,128], index: 1, kind: input, shape index: {}]
  %s2 = inlined_call_operand.vmem [shape: f32[2,1,64], index: 2, kind: input, shape index: {}]
  %s3 = inlined_call_operand.vmem [shape: f32[2,1,64], index: 3, kind: input, shape index: {}]
  %s4 = inlined_call_operand.vmem [shape: bf16[2,64,192], index: 4, kind: input, shape index: {}]
  %s5 = inlined_call_operand.vmem [shape: f32[2,1,192], index: 5, kind: input, shape index: {}]
  %s6 = inlined_call_operand.vmem [shape: bf16[2,64,64], index: 6, kind: input, shape index: {}]
  %s7 = inlined_call_operand.vmem [shape: f32[2,1,64], index: 7, kind: input, shape index: {}]
  %s8 = inlined_call_operand.vmem [shape: f32[2,1,64], index: 8, kind: input, shape index: {}]
  %s9 = inlined_call_operand.vmem [shape: f32[2,1,64], index: 9, kind: input, shape index: {}]
  %s10 = inlined_call_operand.vmem [shape: bf16[2,64,256], index: 10, kind: input, shape index: {}]
  %s11 = inlined_call_operand.vmem [shape: f32[2,1,256], index: 11, kind: input, shape index: {}]
  %s12 = inlined_call_operand.vmem [shape: bf16[2,256,64], index: 12, kind: input, shape index: {}]
  %s13 = inlined_call_operand.vmem [shape: f32[2,1,64], index: 13, kind: input, shape index: {}]
  %s14 = inlined_call_operand.vmem [shape: f32[1,64], index: 14, kind: input, shape index: {}]
  %s15 = inlined_call_operand.vmem [shape: f32[1,64], index: 15, kind: input, shape index: {}]
  %s16 = inlined_call_operand.vmem [shape: bf16[64,128], index: 16, kind: input, shape index: {}]
  %s17 = inlined_call_operand.vmem [shape: f32[1,128], index: 17, kind: input, shape index: {}]
  %s18 = inlined_call_operand.vmem [shape: f32[16,128], index: 18, kind: output, shape index: {}]
  %s19 = sld [smem:[#allocation0]]
  $region82: #{chatbot_forward.1} parent=0
    _
  %s21 = ssub.s32 1, %s19
  %s22 = scalar_select 0, %s21, %s19
  // Predicated region
  $region2: #{chatbot_forward.1} parent=0 // pred_check
    _
  $region3: #{chatbot_forward.1} parent=0 // pred_check_branch
    %24 = sbr.rel (0) target = $region5
  $region4: #{chatbot_forward.1} parent=0 // pred_region
    _
  $region5: #{chatbot_forward.1} parent=0 // pred_fallthru
    _
  // Predicated region
  $region6: #{chatbot_forward.1} parent=0 // pred_check
    _
  $region7: #{chatbot_forward.1} parent=0 // pred_check_branch
    %26 = sbr.rel (0) target = $region9
  $region8: #{chatbot_forward.1} parent=0 // pred_region
    _
  $region9: #{chatbot_forward.1} parent=0 // pred_fallthru
    _
  // Predicated region
  $region10: #{chatbot_forward.1} parent=0 // pred_check
    _
  $region11: #{chatbot_forward.1} parent=0 // pred_check_branch
    %28 = sbr.rel (0) target = $region13
  $region12: #{chatbot_forward.1} parent=0 // pred_region
    _
  $region13: #{chatbot_forward.1} parent=0 // pred_fallthru
    _
  // Predicated region
  $region14: #{chatbot_forward.1} parent=0 // pred_check
    _
  $region15: #{chatbot_forward.1} parent=0 // pred_check_branch
    %30 = sbr.rel (0) target = $region17
  $region16: #{chatbot_forward.1} parent=0 // pred_region
    _
  $region17: #{chatbot_forward.1} parent=0 // pred_fallthru
    _
  // Predicated region
  $region18: #{chatbot_forward.1} parent=0 // pred_check
    _
  $region19: #{chatbot_forward.1} parent=0 // pred_check_branch
    %32 = sbr.rel (0) target = $region21
  $region20: #{chatbot_forward.1} parent=0 // pred_region
    _
  $region21: #{chatbot_forward.1} parent=0 // pred_fallthru
    _
  // Predicated region
  $region22: #{chatbot_forward.1} parent=0 // pred_check
    _
  $region23: #{chatbot_forward.1} parent=0 // pred_check_branch
    %34 = sbr.rel (0) target = $region25
  $region24: #{chatbot_forward.1} parent=0 // pred_region
    _
  $region25: #{chatbot_forward.1} parent=0 // pred_fallthru
    _
  // Predicated region
  $region26: #{chatbot_forward.1} parent=0 // pred_check
    _
  $region27: #{chatbot_forward.1} parent=0 // pred_check_branch
    %36 = sbr.rel (0) target = $region29
  $region28: #{chatbot_forward.1} parent=0 // pred_region
    _
  $region29: #{chatbot_forward.1} parent=0 // pred_fallthru
    _
  // Predicated region
  $region30: #{chatbot_forward.1} parent=0 // pred_check
    _
  $region31: #{chatbot_forward.1} parent=0 // pred_check_branch
    %38 = sbr.rel (0) target = $region33
  $region32: #{chatbot_forward.1} parent=0 // pred_region
    _
  $region33: #{chatbot_forward.1} parent=0 // pred_fallthru
    _
  // Predicated region
  $region34: #{chatbot_forward.1} parent=0 // pred_check
    _
  $region35: #{chatbot_forward.1} parent=0 // pred_check_branch
    %40 = sbr.rel (0) target = $region37
  $region36: #{chatbot_forward.1} parent=0 // pred_region
    _
  $region37: #{chatbot_forward.1} parent=0 // pred_fallthru
    _
  // Predicated region
  $region38: #{chatbot_forward.1} parent=0 // pred_check
    _
  $region39: #{chatbot_forward.1} parent=0 // pred_check_branch
    %42 = sbr.rel (0) target = $region41
  $region40: #{chatbot_forward.1} parent=0 // pred_region
    _
  $region41: #{chatbot_forward.1} parent=0 // pred_fallthru
    _
  // Predicated region
  $region42: #{chatbot_forward.1} parent=0 // pred_check
    _
  $region43: #{chatbot_forward.1} parent=0 // pred_check_branch
    %44 = sbr.rel (0) target = $region45
  $region44: #{chatbot_forward.1} parent=0 // pred_region
    _
  $region45: #{chatbot_forward.1} parent=0 // pred_fallthru
    _
  // Predicated region
  $region46: #{chatbot_forward.1} parent=0 // pred_check
    _
  $region47: #{chatbot_forward.1} parent=0 // pred_check_branch
    %46 = sbr.rel (0) target = $region49
  $region48: #{chatbot_forward.1} parent=0 // pred_region
    _
  $region49: #{chatbot_forward.1} parent=0 // pred_fallthru
    _
  // Predicated region
  $region50: #{chatbot_forward.1} parent=0 // pred_check
    _
  $region51: #{chatbot_forward.1} parent=0 // pred_check_branch
    %48 = sbr.rel (0) target = $region53
  $region52: #{chatbot_forward.1} parent=0 // pred_region
    _
  $region53: #{chatbot_forward.1} parent=0 // pred_fallthru
    _
  // Predicated region
  $region54: #{chatbot_forward.1} parent=0 // pred_check
    _
  $region55: #{chatbot_forward.1} parent=0 // pred_check_branch
    %50 = sbr.rel (0) target = $region57
  $region56: #{chatbot_forward.1} parent=0 // pred_region
    _
  $region57: #{chatbot_forward.1} parent=0 // pred_fallthru
    _
  // Predicated region
  $region58: #{chatbot_forward.1} parent=0 // pred_check
    _
  $region59: #{chatbot_forward.1} parent=0 // pred_check_branch
    %52 = sbr.rel (0) target = $region61
  $region60: #{chatbot_forward.1} parent=0 // pred_region
    _
  $region61: #{chatbot_forward.1} parent=0 // pred_fallthru
    _
  // Predicated region
  $region62: #{chatbot_forward.1} parent=0 // pred_check
    _
  $region63: #{chatbot_forward.1} parent=0 // pred_check_branch
    %54 = sbr.rel (0) target = $region65
  $region64: #{chatbot_forward.1} parent=0 // pred_region
    _
  $region65: #{chatbot_forward.1} parent=0 // pred_fallthru
    _
  // Predicated region
  $region66: #{chatbot_forward.1} parent=0 // pred_check
    _
  $region67: #{chatbot_forward.1} parent=0 // pred_check_branch
    %56 = sbr.rel (0) target = $region69
  $region68: #{chatbot_forward.1} parent=0 // pred_region
    _
  $region69: #{chatbot_forward.1} parent=0 // pred_fallthru
    _
  // Predicated region
  $region70: #{chatbot_forward.1} parent=0 // pred_check
    _
  $region71: #{chatbot_forward.1} parent=0 // pred_check_branch
    %58 = sbr.rel (0) target = $region73
  $region72: #{chatbot_forward.1} parent=0 // pred_region
    _
  $region73: #{chatbot_forward.1} parent=0 // pred_fallthru
    _
  %v60 = vld [vmem:[%s0] sm:$0xff]
  %v61 = vld [vmem:[%s0 + $0x8] sm:$0xff]
  %v62 = vld [vmem:[%s0 + $0x10] sm:$0xff]
  %v63 = vld [vmem:[%s0 + $0x18] sm:$0xff]
  %v64 = vld [vmem:[%s2] sm:$0x1]
  %v65 = vld [vmem:[%s3] sm:$0x1]
  %vm66 = vcmask 523264
  %v67 = vsel %vm66, %v60, 0.0
  %68 = vadd.xlane.f32.xlu0 %v67
  %v69 = vpop.xlane.xlu0 %68
  %v70 = vsel %vm66, %v61, 0.0
  %71 = vadd.xlane.f32.xlu0 %v70
  %v72 = vpop.xlane.xlu0 %71
  %v73 = vsel %vm66, %v62, 0.0
  %74 = vadd.xlane.f32.xlu0 %v73
  %v75 = vpop.xlane.xlu0 %74
  %v76 = vsel %vm66, %v63, 0.0
  %77 = vadd.xlane.f32.xlu0 %v76
  %v78 = vpop.xlane.xlu0 %77
  %v79 = vrcp.pop 64.0
  %v80 = vmul.f32 %v69, %v79
  %v81 = vmul.f32 %v72, %v79
  %v82 = vmul.f32 %v75, %v79
  %v83 = vmul.f32 %v78, %v79
  %v84 = vsub.f32 %v60, %v80
  %v85 = vsub.f32 %v61, %v81
  %v86 = vsub.f32 %v62, %v82
  %v87 = vsub.f32 %v63, %v83
  %v88 = vmul.f32 %v84, %v84
  %v89 = vmul.f32 %v85, %v85
  %v90 = vmul.f32 %v86, %v86
  %v91 = vmul.f32 %v87, %v87
  %v92 = vsel %vm66, %v88, 0.0
  %93 = vadd.xlane.f32.xlu0 %v92
  %v94 = vpop.xlane.xlu0 %93
  %v95 = vsel %vm66, %v89, 0.0
  %96 = vadd.xlane.f32.xlu0 %v95
  %v97 = vpop.xlane.xlu0 %96
  %v98 = vsel %vm66, %v90, 0.0
  %99 = vadd.xlane.f32.xlu0 %v98
  %v100 = vpop.xlane.xlu0 %99
  %v101 = vsel %vm66, %v91, 0.0
  %102 = vadd.xlane.f32.xlu0 %v101
  %v103 = vpop.xlane.xlu0 %102
  %v104 = vmul.f32 %v94, %v79
  %v105 = vmul.f32 %v97, %v79
  %v106 = vmul.f32 %v100, %v79
  %v107 = vmul.f32 %v103, %v79
  %v108 = vadd.f32 %v104, 1e-05
  %v109 = vadd.f32 %v105, 1e-05
  %v110 = vadd.f32 %v106, 1e-05
  %v111 = vadd.f32 %v107, 1e-05
  %v112 = vrsqrt.pop %v108
  %v113 = vrsqrt.pop %v109
  %v114 = vrsqrt.pop %v110
  %v115 = vrsqrt.pop %v111
  %v116 = vmul.f32 %v84, %v112
  %v117 = vmul.f32 %v85, %v113
  %v118 = vmul.f32 %v86, %v114
  %v119 = vmul.f32 %v87, %v115
  %v121 = vlaneseq
  %v122 = vshrl.u32 %v121, 7
  %v123 = vsub.s32 0, %v122
  %v124 = vrot.slane %v64, %v123
  %v126 = vmul.f32 %v116, %v124
  %v127 = vmul.f32 %v117, %v124
  %v128 = vmul.f32 %v118, %v124
  %v129 = vmul.f32 %v119, %v124
  %v131 = vlaneseq
  %v132 = vshrl.u32 %v131, 7
  %v133 = vsub.s32 0, %v132
  %v134 = vrot.slane %v65, %v133
  %v136 = vadd.f32 %v126, %v134
  %v137 = vadd.f32 %v127, %v134
  %v138 = vadd.f32 %v128, %v134
  %v139 = vadd.f32 %v129, %v134
  %v140 = vld [vmem:[%s4] sm:$0xff]
  %v141 = vld [vmem:[%s4 + $0x8] sm:$0xff]
  %v142 = vld [vmem:[%s4 + $0x10] sm:$0xff]
  %v143 = vld [vmem:[%s4 + $0x18] sm:$0xff]
  %v144 = vld [vmem:[%s4 + $0x20] sm:$0xff]
  %v145 = vld [vmem:[%s4 + $0x28] sm:$0xff]
  %v146 = vld [vmem:[%s4 + $0x30] sm:$0xff]
  %v147 = vld [vmem:[%s4 + $0x38] sm:$0xff]
  %v148 = vpack.c.bf16 %v137, %v136
  %v149 = vpack.c.bf16 %v139, %v138
  %v150 = vld [vmem:[%s5] sm:$0x3]
  %v152 = vlaneseq
  %v153 = vshrl.u32 %v152, 7
  %v154 = vsub.s32 0, %v153
  %v155 = vrot.slane %v150, %v154
  %v156 = vlaneseq
  %v157 = vshrl.u32 %v156, 7
  %v158 = vsub.s32 1, %v157
  %v159 = vrot.slane %v150, %v158
  %v170 = vunpack.c.l.b16 %v140
  %v171 = vunpack.c.h.b16 %v140
  %v172 = vunpack.c.l.b16 %v141
  %v173 = vunpack.c.h.b16 %v141
  %v174 = vunpack.c.l.b16 %v142
  %v175 = vunpack.c.h.b16 %v142
  %v176 = vunpack.c.l.b16 %v143
  %v177 = vunpack.c.h.b16 %v143
  %v178 = vunpack.c.l.b16 %v144
  %v179 = vunpack.c.h.b16 %v144
  %v180 = vunpack.c.l.b16 %v145
  %v181 = vunpack.c.h.b16 %v145
  %v182 = vunpack.c.l.b16 %v146
  %v183 = vunpack.c.h.b16 %v146
  %v184 = vunpack.c.l.b16 %v147
  %v185 = vunpack.c.h.b16 %v147
  %v186 = vpack.c.b16 %v172, %v170
  %v187 = vpack.c.b16 %v173, %v171
  %v188 = vpack.c.b16 %v176, %v174
  %v189 = vpack.c.b16 %v177, %v175
  %v190 = vpack.c.b16 %v180, %v178
  %v191 = vpack.c.b16 %v181, %v179
  %v192 = vpack.c.b16 %v184, %v182
  %v193 = vpack.c.b16 %v185, %v183
  %v203 = vsel %vm66, %v148, 0
  %v206 = vsel %vm66, %v149, 0
  %208 = vmatprep.subr.bf16.mxu0 %v187
  %209 = vmatpush1.bf16.msra.mxu0 %v186
  %210 = vmatprep.subr.bf16.mxu0 %v189
  %211 = vmatpush1.bf16.msra.mxu0 %v188
  %212 = vmatprep.subr.bf16.mxu0 %v191
  %213 = vmatpush1.bf16.msra.mxu0 %v190
  %214 = vmatprep.subr.bf16.mxu0 %v193
  %215 = vmatpush1.bf16.msra.mxu0 %v192
  %216 = vmatprep.subr.bf16.mxu0 0
  %217 = vmatpush1.bf16.msra.mxu0 0
  %218 = vmatprep.subr.bf16.mxu0 0
  %219 = vmatpush1.bf16.msra.mxu0 0
  %220 = vmatprep.subr.bf16.mxu0 0
  %221 = vmatpush1.bf16.msra.mxu0 0
  %222 = vmatprep.subr.bf16.mxu0 0
  %223 = vmatpush1.bf16.msra.mxu0 0
  %224 = vmatprep.subr.bf16.mxu0 0
  %225 = vmatpush1.bf16.msra.mxu0 0
  %226 = vmatprep.subr.bf16.mxu0 0
  %227 = vmatpush1.bf16.msra.mxu0 0
  %228 = vmatprep.subr.bf16.mxu0 0
  %229 = vmatpush1.bf16.msra.mxu0 0
  %230 = vmatprep.subr.bf16.mxu0 0
  %231 = vmatpush1.bf16.msra.mxu0 0
  %232 = vmatprep.subr.bf16.mxu0 0
  %233 = vmatpush1.bf16.msra.mxu0 0
  %234 = vmatprep.subr.bf16.mxu0 0
  %235 = vmatpush1.bf16.msra.mxu0 0
  %236 = vmatprep.subr.bf16.mxu0 0
  %237 = vmatpush1.bf16.msra.mxu0 0
  %238 = vmatprep.subr.bf16.mxu0 0
  %239 = vmatpush1.bf16.msra.mxu0 0
  %240 = vmatprep.mubr.bf16.mxu0 0
  %241 = vmatmul.mubr.bf16.gmra.mrb[0].mxu0 %v203
  %v242 = vpop.f32.mrb[0].mxu0
  %v243 = vadd.f32 %v155, %v242
  %v244 = vpop.f32.mrb[0].mxu0
  %v245 = vadd.f32 %v159, %v244
  %v246 = vpop.f32.mrb[0].mxu0
  %v247 = vadd.f32 %v155, %v246
  %v248 = vpop.f32.mrb[0].mxu0
  %v249 = vadd.f32 %v159, %v248
  %250 = vmatprep.mubr.bf16.mxu0 0
  %251 = vmatmul.mubr.bf16.gmra.mrb[0].mxu0 %v206
  %v252 = vpop.f32.mrb[0].mxu0
  %v253 = vadd.f32 %v155, %v252
  %v254 = vpop.f32.mrb[0].mxu0
  %v255 = vadd.f32 %v159, %v254
  %v256 = vpop.f32.mrb[0].mxu0
  %v257 = vadd.f32 %v155, %v256
  %v258 = vpop.f32.mrb[0].mxu0
  %v259 = vadd.f32 %v159, %v258
  %260 = vdwg.mxu0
  %v261 = vpack.c.bf16 %v247, %v243
  %v262 = vpack.c.bf16 %v249, %v245
  %v263 = vpack.c.bf16 %v257, %v253
  %v264 = vpack.c.bf16 %v259, %v255
  %vm265 = vcmask 130048
  %266 = vst.msk [vmem:[#allocation2] sm:$0xff] %vm265, %v261
  %268 = vrot.lane.b32.xlu0 %v261, 64
  %v269 = vpop.permute.xlu0 %268
  %271 = vst.msk [vmem:[#allocation3] sm:$0xff] %vm265, %v269
  %272 = vst.msk [vmem:[#allocation4] sm:$0xff] %vm265, %v262
  %273 = vrot.lane.b32.xlu0 %v261, 112
  %v274 = vpop.permute.xlu0 %273
  %276 = vst.msk [vmem:[#allocation2 + $0x8] sm:$0xff] %vm265, %v274
  %277 = vrot.lane.b32.xlu0 %v261, 48
  %v278 = vpop.permute.xlu0 %277
  %280 = vst.msk [vmem:[#allocation3 + $0x8] sm:$0xff] %vm265, %v278
  %282 = vrot.lane.b32.xlu0 %v262, 112
  %v283 = vpop.permute.xlu0 %282
  %285 = vst.msk [vmem:[#allocation4 + $0x8] sm:$0xff] %vm265, %v283
  %286 = vrot.lane.b32.xlu0 %v261, 96
  %v287 = vpop.permute.xlu0 %286
  %289 = vst.msk [vmem:[#allocation2 + $0x10] sm:$0xff] %vm265, %v287
  %290 = vrot.lane.b32.xlu0 %v261, 32
  %v291 = vpop.permute.xlu0 %290
  %293 = vst.msk [vmem:[#allocation3 + $0x10] sm:$0xff] %vm265, %v291
  %294 = vrot.lane.b32.xlu0 %v262, 96
  %v295 = vpop.permute.xlu0 %294
  %297 = vst.msk [vmem:[#allocation4 + $0x10] sm:$0xff] %vm265, %v295
  %298 = vrot.lane.b32.xlu0 %v261, 80
  %v299 = vpop.permute.xlu0 %298
  %301 = vst.msk [vmem:[#allocation2 + $0x18] sm:$0xff] %vm265, %v299
  %302 = vrot.lane.b32.xlu0 %v261, 16
  %v303 = vpop.permute.xlu0 %302
  %305 = vst.msk [vmem:[#allocation3 + $0x18] sm:$0xff] %vm265, %v303
  %306 = vrot.lane.b32.xlu0 %v262, 80
  %v307 = vpop.permute.xlu0 %306
  %309 = vst.msk [vmem:[#allocation4 + $0x18] sm:$0xff] %vm265, %v307
  %310 = vst.msk [vmem:[#allocation2 + $0x20] sm:$0xff] %vm265, %v263
  %312 = vrot.lane.b32.xlu0 %v263, 64
  %v313 = vpop.permute.xlu0 %312
  %315 = vst.msk [vmem:[#allocation3 + $0x20] sm:$0xff] %vm265, %v313
  %316 = vst.msk [vmem:[#allocation4 + $0x20] sm:$0xff] %vm265, %v264
  %317 = vrot.lane.b32.xlu0 %v263, 112
  %v318 = vpop.permute.xlu0 %317
  %320 = vst.msk [vmem:[#allocation2 + $0x28] sm:$0xff] %vm265, %v318
  %321 = vrot.lane.b32.xlu0 %v263, 48
  %v322 = vpop.permute.xlu0 %321
  %324 = vst.msk [vmem:[#allocation3 + $0x28] sm:$0xff] %vm265, %v322
  %326 = vrot.lane.b32.xlu0 %v264, 112
  %v327 = vpop.permute.xlu0 %326
  %329 = vst.msk [vmem:[#allocation4 + $0x28] sm:$0xff] %vm265, %v327
  %330 = vrot.lane.b32.xlu0 %v263, 96
  %v331 = vpop.permute.xlu0 %330
  %333 = vst.msk [vmem:[#allocation2 + $0x30] sm:$0xff] %vm265, %v331
  %334 = vrot.lane.b32.xlu0 %v263, 32
  %v335 = vpop.permute.xlu0 %334
  %337 = vst.msk [vmem:[#allocation3 + $0x30] sm:$0xff] %vm265, %v335
  %338 = vrot.lane.b32.xlu0 %v264, 96
  %v339 = vpop.permute.xlu0 %338
  %341 = vst.msk [vmem:[#allocation4 + $0x30] sm:$0xff] %vm265, %v339
  %342 = vrot.lane.b32.xlu0 %v263, 80
  %v343 = vpop.permute.xlu0 %342
  %345 = vst.msk [vmem:[#allocation2 + $0x38] sm:$0xff] %vm265, %v343
  %346 = vrot.lane.b32.xlu0 %v263, 16
  %v347 = vpop.permute.xlu0 %346
  %349 = vst.msk [vmem:[#allocation3 + $0x38] sm:$0xff] %vm265, %v347
  %350 = vrot.lane.b32.xlu0 %v264, 80
  %v351 = vpop.permute.xlu0 %350
  %353 = vst.msk [vmem:[#allocation4 + $0x38] sm:$0xff] %vm265, %v351
  %v354 = vld [vmem:[#allocation2] sm:$0xff]
  %v355 = vld [vmem:[#allocation2 + $0x8] sm:$0xff]
  %v356 = vld [vmem:[#allocation2 + $0x10] sm:$0xff]
  %v357 = vld [vmem:[#allocation2 + $0x18] sm:$0xff]
  %v358 = vld [vmem:[#allocation2 + $0x20] sm:$0xff]
  %v359 = vld [vmem:[#allocation2 + $0x28] sm:$0xff]
  %v360 = vld [vmem:[#allocation2 + $0x30] sm:$0xff]
  %v361 = vld [vmem:[#allocation2 + $0x38] sm:$0xff]
  %v362 = vld [vmem:[#allocation3] sm:$0xff]
  %v363 = vld [vmem:[#allocation3 + $0x8] sm:$0xff]
  %v364 = vld [vmem:[#allocation3 + $0x10] sm:$0xff]
  %v365 = vld [vmem:[#allocation3 + $0x18] sm:$0xff]
  %v366 = vld [vmem:[#allocation3 + $0x20] sm:$0xff]
  %v367 = vld [vmem:[#allocation3 + $0x28] sm:$0xff]
  %v368 = vld [vmem:[#allocation3 + $0x30] sm:$0xff]
  %v369 = vld [vmem:[#allocation3 + $0x38] sm:$0xff]
  %v370 = vld [vmem:[%s1] sm:$0xff]
  %v371 = vld [vmem:[%s1 + $0x8] sm:$0xff]
  %v372 = vld [vmem:[%s1 + $0x10] sm:$0xff]
  %v373 = vld [vmem:[%s1 + $0x18] sm:$0xff]
  %v374 = vld [vmem:[%s1 + $0x20] sm:$0xff]
  %v375 = vld [vmem:[%s1 + $0x28] sm:$0xff]
  %v376 = vld [vmem:[%s1 + $0x30] sm:$0xff]
  %v377 = vld [vmem:[%s1 + $0x38] sm:$0xff]
  %v378 = vld [vmem:[%s1 + $0x40] sm:$0xff]
  %v379 = vld [vmem:[%s1 + $0x48] sm:$0xff]
  %v380 = vld [vmem:[%s1 + $0x50] sm:$0xff]
  %v381 = vld [vmem:[%s1 + $0x58] sm:$0xff]
  %v382 = vld [vmem:[%s1 + $0x60] sm:$0xff]
  %v383 = vld [vmem:[%s1 + $0x68] sm:$0xff]
  %v384 = vld [vmem:[%s1 + $0x70] sm:$0xff]
  %v385 = vld [vmem:[%s1 + $0x78] sm:$0xff]
  %v387 = vsel %vm265, %v354, 0
  %v390 = vsel %vm265, %v355, 0
  %v393 = vsel %vm265, %v356, 0
  %v396 = vsel %vm265, %v357, 0
  %v399 = vsel %vm265, %v358, 0
  %v402 = vsel %vm265, %v359, 0
  %v405 = vsel %vm265, %v360, 0
  %v408 = vsel %vm265, %v361, 0
  %v411 = vsel %vm265, %v362, 0
  %v414 = vsel %vm265, %v363, 0
  %v417 = vsel %vm265, %v364, 0
  %v420 = vsel %vm265, %v365, 0
  %v423 = vsel %vm265, %v366, 0
  %v426 = vsel %vm265, %v367, 0
  %v429 = vsel %vm265, %v368, 0
  %v432 = vsel %vm265, %v369, 0
  %434 = vmatprep.subr.bf16.mxu0 0
  %435 = vmatpush1.bf16.xpose.msra.mxu0 %v411
  %436 = vmatprep.subr.bf16.mxu0 0
  %437 = vmatpush1.bf16.xpose.msra.mxu0 %v414
  %438 = vmatprep.subr.bf16.mxu0 0
  %439 = vmatpush1.bf16.xpose.msra.mxu0 %v417
  %440 = vmatprep.subr.bf16.mxu0 0
  %441 = vmatpush1.bf16.xpose.msra.mxu0 %v420
  %442 = vmatprep.subr.bf16.mxu0 0
  %443 = vmatpush1.bf16.xpose.msra.mxu0 %v423
  %444 = vmatprep.subr.bf16.mxu0 0
  %445 = vmatpush1.bf16.xpose.msra.mxu0 %v426
  %446 = vmatprep.subr.bf16.mxu0 0
  %447 = vmatpush1.bf16.xpose.msra.mxu0 %v429
  %448 = vmatprep.subr.bf16.mxu0 0
  %449 = vmatpush1.bf16.xpose.msra.mxu0 %v432
  %450 = vmatprep.subr.bf16.mxu0 0
  %451 = vmatpush1.bf16.xpose.msra.mxu0 0
  %452 = vmatprep.subr.bf16.mxu0 0
  %453 = vmatpush1.bf16.xpose.msra.mxu0 0
  %454 = vmatprep.subr.bf16.mxu0 0
  %455 = vmatpush1.bf16.xpose.msra.mxu0 0
  %456 = vmatprep.subr.bf16.mxu0 0
  %457 = vmatpush1.bf16.xpose.msra.mxu0 0
  %458 = vmatprep.subr.bf16.mxu0 0
  %459 = vmatpush1.bf16.xpose.msra.mxu0 0
  %460 = vmatprep.subr.bf16.mxu0 0
  %461 = vmatpush1.bf16.xpose.msra.mxu0 0
  %462 = vmatprep.subr.bf16.mxu0 0
  %463 = vmatpush1.bf16.xpose.msra.mxu0 0
  %464 = vmatprep.subr.bf16.mxu0 0
  %465 = vmatpush1.bf16.xpose.msra.mxu0 0
  %466 = vmatprep.mubr.bf16.mxu0 0
  %467 = vmatmul.mubr.bf16.gmra.mrb[0].mxu0 %v387
  %v468 = vpop.f32.mrb[0].mxu0
  %v469 = vadd.f32 %v370, %v468
  %v470 = vpop.f32.mrb[0].mxu0
  %v471 = vpop.f32.mrb[0].mxu0
  %v472 = vadd.f32 %v371, %v471
  %v473 = vpop.f32.mrb[0].mxu0
  %474 = vmatprep.mubr.bf16.mxu0 0
  %475 = vmatmul.mubr.bf16.gmra.mrb[0].mxu0 %v390
  %v476 = vpop.f32.mrb[0].mxu0
  %v477 = vadd.f32 %v372, %v476
  %v478 = vpop.f32.mrb[0].mxu0
  %v479 = vpop.f32.mrb[0].mxu0
  %v480 = vadd.f32 %v373, %v479
  %v481 = vpop.f32.mrb[0].mxu0
  %482 = vmatprep.mubr.bf16.mxu0 0
  %483 = vmatmul.mubr.bf16.gmra.mrb[0].mxu0 %v393
  %v484 = vpop.f32.mrb[0].mxu0
  %v485 = vadd.f32 %v374, %v484
  %v486 = vpop.f32.mrb[0].mxu0
  %v487 = vpop.f32.mrb[0].mxu0
  %v488 = vadd.f32 %v375, %v487
  %v489 = vpop.f32.mrb[0].mxu0
  %490 = vmatprep.mubr.bf16.mxu0 0
  %491 = vmatmul.mubr.bf16.gmra.mrb[0].mxu0 %v396
  %v492 = vpop.f32.mrb[0].mxu0
  %v493 = vadd.f32 %v376, %v492
  %v494 = vpop.f32.mrb[0].mxu0
  %v495 = vpop.f32.mrb[0].mxu0
  %v496 = vadd.f32 %v377, %v495
  %v497 = vpop.f32.mrb[0].mxu0
  %498 = vmatprep.mubr.bf16.mxu0 0
  %499 = vmatmul.mubr.bf16.gmra.mrb[0].mxu0 %v399
  %v500 = vpop.f32.mrb[0].mxu0
  %v501 = vadd.f32 %v378, %v500
  %v502 = vpop.f32.mrb[0].mxu0
  %v503 = vpop.f32.mrb[0].mxu0
  %v504 = vadd.f32 %v379, %v503
  %v505 = vpop.f32.mrb[0].mxu0
  %506 = vmatprep.mubr.bf16.mxu0 0
  %507 = vmatmul.mubr.bf16.gmra.mrb[0].mxu0 %v402
  %v508 = vpop.f32.mrb[0].mxu0
  %v509 = vadd.f32 %v380, %v508
  %v510 = vpop.f32.mrb[0].mxu0
  %v511 = vpop.f32.mrb[0].mxu0
  %v512 = vadd.f32 %v381, %v511
  %v513 = vpop.f32.mrb[0].mxu0
  %514 = vmatprep.mubr.bf16.mxu0 0
  %515 = vmatmul.mubr.bf16.gmra.mrb[0].mxu0 %v405
  %v516 = vpop.f32.mrb[0].mxu0
  %v517 = vadd.f32 %v382, %v516
  %v518 = vpop.f32.mrb[0].mxu0
  %v519 = vpop.f32.mrb[0].mxu0
  %v520 = vadd.f32 %v383, %v519
  %v521 = vpop.f32.mrb[0].mxu0
  %522 = vmatprep.mubr.bf16.mxu0 0
  %523 = vmatmul.mubr.bf16.gmra.mrb[0].mxu0 %v408
  %v524 = vpop.f32.mrb[0].mxu0
  %v525 = vadd.f32 %v384, %v524
  %v526 = vpop.f32.mrb[0].mxu0
  %v527 = vpop.f32.mrb[0].mxu0
  %v528 = vadd.f32 %v385, %v527
  %v529 = vpop.f32.mrb[0].mxu0
  %530 = vdwg.mxu0
  %531 = vmax.xlane.f32.xlu0 %v469
  %v532 = vpop.xlane.xlu0 %531
  %533 = vmax.xlane.f32.xlu0 %v472
  %v534 = vpop.xlane.xlu0 %533
  %535 = vmax.xlane.f32.xlu0 %v477
  %v536 = vpop.xlane.xlu0 %535
  %537 = vmax.xlane.f32.xlu0 %v480
  %v538 = vpop.xlane.xlu0 %537
  %539 = vmax.xlane.f32.xlu0 %v485
  %v540 = vpop.xlane.xlu0 %539
  %541 = vmax.xlane.f32.xlu0 %v488
  %v542 = vpop.xlane.xlu0 %541
  %543 = vmax.xlane.f32.xlu0 %v493
  %v544 = vpop.xlane.xlu0 %543
  %545 = vmax.xlane.f32.xlu0 %v496
  %v546 = vpop.xlane.xlu0 %545
  %547 = vmax.xlane.f32.xlu0 %v501
  %v548 = vpop.xlane.xlu0 %547
  %549 = vmax.xlane.f32.xlu0 %v504
  %v550 = vpop.xlane.xlu0 %549
  %551 = vmax.xlane.f32.xlu0 %v509
  %v552 = vpop.xlane.xlu0 %551
  %553 = vmax.xlane.f32.xlu0 %v512
  %v554 = vpop.xlane.xlu0 %553
  %555 = vmax.xlane.f32.xlu0 %v517
  %v556 = vpop.xlane.xlu0 %555
  %557 = vmax.xlane.f32.xlu0 %v520
  %v558 = vpop.xlane.xlu0 %557
  %559 = vmax.xlane.f32.xlu0 %v525
  %v560 = vpop.xlane.xlu0 %559
  %561 = vmax.xlane.f32.xlu0 %v528
  %v562 = vpop.xlane.xlu0 %561
  %v563 = vsub.f32 %v469, %v532
  %v564 = vsub.f32 %v472, %v534
  %v565 = vsub.f32 %v477, %v536
  %v566 = vsub.f32 %v480, %v538
  %v567 = vsub.f32 %v485, %v540
  %v568 = vsub.f32 %v488, %v542
  %v569 = vsub.f32 %v493, %v544
  %v570 = vsub.f32 %v496, %v546
  %v571 = vsub.f32 %v501, %v548
  %v572 = vsub.f32 %v504, %v550
  %v573 = vsub.f32 %v509, %v552
  %v574 = vsub.f32 %v512, %v554
  %v575 = vsub.f32 %v517, %v556
  %v576 = vsub.f32 %v520, %v558
  %v577 = vsub.f32 %v525, %v560
  %v578 = vsub.f32 %v528, %v562
  %v579 = vmul.f32 %v563, 1.442695
  %v580 = vpow.pop %v579
  %v581 = vmul.f32 %v564, 1.442695
  %v582 = vpow.pop %v581
  %v583 = vmul.f32 %v565, 1.442695
  %v584 = vpow.pop %v583
  %v585 = vmul.f32 %v566, 1.442695
  %v586 = vpow.pop %v585
  %v587 = vmul.f32 %v567, 1.442695
  %v588 = vpow.pop %v587
  %v589 = vmul.f32 %v568, 1.442695
  %v590 = vpow.pop %v589
  %v591 = vmul.f32 %v569, 1.442695
  %v592 = vpow.pop %v591
  %v593 = vmul.f32 %v570, 1.442695
  %v594 = vpow.pop %v593
  %v595 = vmul.f32 %v571, 1.442695
  %v596 = vpow.pop %v595
  %v597 = vmul.f32 %v572, 1.442695
  %v598 = vpow.pop %v597
  %v599 = vmul.f32 %v573, 1.442695
  %v600 = vpow.pop %v599
  %v601 = vmul.f32 %v574, 1.442695
  %v602 = vpow.pop %v601
  %v603 = vmul.f32 %v575, 1.442695
  %v604 = vpow.pop %v603
  %v605 = vmul.f32 %v576, 1.442695
  %v606 = vpow.pop %v605
  %v607 = vmul.f32 %v577, 1.442695
  %v608 = vpow.pop %v607
  %v609 = vmul.f32 %v578, 1.442695
  %v610 = vpow.pop %v609
  %611 = vadd.xlane.f32.xlu0 %v580
  %v612 = vpop.xlane.xlu0 %611
  %613 = vadd.xlane.f32.xlu0 %v582
  %v614 = vpop.xlane.xlu0 %613
  %615 = vadd.xlane.f32.xlu0 %v584
  %v616 = vpop.xlane.xlu0 %615
  %617 = vadd.xlane.f32.xlu0 %v586
  %v618 = vpop.xlane.xlu0 %617
  %619 = vadd.xlane.f32.xlu0 %v588
  %v620 = vpop.xlane.xlu0 %619
  %621 = vadd.xlane.f32.xlu0 %v590
  %v622 = vpop.xlane.xlu0 %621
  %623 = vadd.xlane.f32.xlu0 %v592
  %v624 = vpop.xlane.xlu0 %623
  %625 = vadd.xlane.f32.xlu0 %v594
  %v626 = vpop.xlane.xlu0 %625
  %627 = vadd.xlane.f32.xlu0 %v596
  %v628 = vpop.xlane.xlu0 %627
  %629 = vadd.xlane.f32.xlu0 %v598
  %v630 = vpop.xlane.xlu0 %629
  %631 = vadd.xlane.f32.xlu0 %v600
  %v632 = vpop.xlane.xlu0 %631
  %633 = vadd.xlane.f32.xlu0 %v602
  %v634 = vpop.xlane.xlu0 %633
  %635 = vadd.xlane.f32.xlu0 %v604
  %v636 = vpop.xlane.xlu0 %635
  %637 = vadd.xlane.f32.xlu0 %v606
  %v638 = vpop.xlane.xlu0 %637
  %639 = vadd.xlane.f32.xlu0 %v608
  %v640 = vpop.xlane.xlu0 %639
  %641 = vadd.xlane.f32.xlu0 %v610
  %v642 = vpop.xlane.xlu0 %641
  %v643 = vrcp.pop %v612
  %v644 = vrcp.pop %v614
  %v645 = vrcp.pop %v616
  %v646 = vrcp.pop %v618
  %v647 = vrcp.pop %v620
  %v648 = vrcp.pop %v622
  %v649 = vrcp.pop %v624
  %v650 = vrcp.pop %v626
  %v651 = vrcp.pop %v628
  %v652 = vrcp.pop %v630
  %v653 = vrcp.pop %v632
  %v654 = vrcp.pop %v634
  %v655 = vrcp.pop %v636
  %v656 = vrcp.pop %v638
  %v657 = vrcp.pop %v640
  %v658 = vrcp.pop %v642
  %v659 = vmul.f32 %v580, %v643
  %v660 = vmul.f32 %v582, %v644
  %v661 = vmul.f32 %v584, %v645
  %v662 = vmul.f32 %v586, %v646
  %v663 = vmul.f32 %v588, %v647
  %v664 = vmul.f32 %v590, %v648
  %v665 = vmul.f32 %v592, %v649
  %v666 = vmul.f32 %v594, %v650
  %v667 = vmul.f32 %v596, %v651
  %v668 = vmul.f32 %v598, %v652
  %v669 = vmul.f32 %v600, %v653
  %v670 = vmul.f32 %v602, %v654
  %v671 = vmul.f32 %v604, %v655
  %v672 = vmul.f32 %v606, %v656
  %v673 = vmul.f32 %v608, %v657
  %v674 = vmul.f32 %v610, %v658
  %v675 = vld [vmem:[#allocation4] sm:$0xff]
  %v676 = vld [vmem:[#allocation4 + $0x8] sm:$0xff]
  %v677 = vld [vmem:[#allocation4 + $0x10] sm:$0xff]
  %v678 = vld [vmem:[#allocation4 + $0x18] sm:$0xff]
  %v679 = vld [vmem:[#allocation4 + $0x20] sm:$0xff]
  %v680 = vld [vmem:[#allocation4 + $0x28] sm:$0xff]
  %v681 = vld [vmem:[#allocation4 + $0x30] sm:$0xff]
  %v682 = vld [vmem:[#allocation4 + $0x38] sm:$0xff]
  %v683 = vpack.c.bf16 %v660, %v659
  %v684 = vpack.c.bf16 %v662, %v661
  %v685 = vpack.c.bf16 %v664, %v663
  %v686 = vpack.c.bf16 %v666, %v665
  %v687 = vpack.c.bf16 %v668, %v667
  %v688 = vpack.c.bf16 %v670, %v669
  %v689 = vpack.c.bf16 %v672, %v671
  %v690 = vpack.c.bf16 %v674, %v673
  %691 = vmatprep.subr.bf16.mxu0 0
  %692 = vmatpush1.bf16.msra.mxu0 %v675
  %693 = vmatprep.subr.bf16.mxu0 0
  %694 = vmatpush1.bf16.msra.mxu0 %v676
  %695 = vmatprep.subr.bf16.mxu0 0
  %696 = vmatpush1.bf16.msra.mxu0 %v677
  %697 = vmatprep.subr.bf16.mxu0 0
  %698 = vmatpush1.bf16.msra.mxu0 %v678
  %699 = vmatprep.subr.bf16.mxu0 0
  %700 = vmatpush1.bf16.msra.mxu0 %v679
  %701 = vmatprep.subr.bf16.mxu0 0
  %702 = vmatpush1.bf16.msra.mxu0 %v680
  %703 = vmatprep.subr.bf16.mxu0 0
  %704 = vmatpush1.bf16.msra.mxu0 %v681
  %705 = vmatprep.subr.bf16.mxu0 0
  %706 = vmatpush1.bf16.msra.mxu0 %v682
  %707 = vmatprep.subr.bf16.mxu0 0
  %708 = vmatpush1.bf16.msra.mxu0 0
  %709 = vmatprep.subr.bf16.mxu0 0
  %710 = vmatpush1.bf16.msra.mxu0 0
  %711 = vmatprep.subr.bf16.mxu0 0
  %712 = vmatpush1.bf16.msra.mxu0 0
  %713 = vmatprep.subr.bf16.mxu0 0
  %714 = vmatpush1.bf16.msra.mxu0 0
  %715 = vmatprep.subr.bf16.mxu0 0
  %716 = vmatpush1.bf16.msra.mxu0 0
  %717 = vmatprep.subr.bf16.mxu0 0
  %718 = vmatpush1.bf16.msra.mxu0 0
  %719 = vmatprep.subr.bf16.mxu0 0
  %720 = vmatpush1.bf16.msra.mxu0 0
  %721 = vmatprep.subr.bf16.mxu0 0
  %722 = vmatpush1.bf16.msra.mxu0 0
  %723 = vmatprep.mubr.bf16.mxu0 0
  %724 = vmatmul.mubr.bf16.gmra.mrb[0].mxu0 %v683
  %v725 = vpop.f32.mrb[0].mxu0
  %v726 = vadd.f32 0.0, %v725
  %v727 = vpop.f32.mrb[0].mxu0
  %v728 = vpop.f32.mrb[0].mxu0
  %v729 = vadd.f32 0.0, %v728
  %v730 = vpop.f32.mrb[0].mxu0
  %731 = vmatprep.mubr.bf16.mxu0 0
  %732 = vmatmul.mubr.bf16.gmra.mrb[0].mxu0 %v684
  %v733 = vpop.f32.mrb[0].mxu0
  %v734 = vadd.f32 0.0, %v733
  %v735 = vpop.f32.mrb[0].mxu0
  %v736 = vpop.f32.mrb[0].mxu0
  %v737 = vadd.f32 0.0, %v736
  %v738 = vpop.f32.mrb[0].mxu0
  %739 = vmatprep.mubr.bf16.mxu0 0
  %740 = vmatmul.mubr.bf16.gmra.mrb[0].mxu0 %v685
  %v741 = vpop.f32.mrb[0].mxu0
  %v742 = vadd.f32 0.0, %v741
  %v743 = vpop.f32.mrb[0].mxu0
  %v744 = vpop.f32.mrb[0].mxu0
  %v745 = vadd.f32 0.0, %v744
  %v746 = vpop.f32.mrb[0].mxu0
  %747 = vmatprep.mubr.bf16.mxu0 0
  %748 = vmatmul.mubr.bf16.gmra.mrb[0].mxu0 %v686
  %v749 = vpop.f32.mrb[0].mxu0
  %v750 = vadd.f32 0.0, %v749
  %v751 = vpop.f32.mrb[0].mxu0
  %v752 = vpop.f32.mrb[0].mxu0
  %v753 = vadd.f32 0.0, %v752
  %v754 = vpop.f32.mrb[0].mxu0
  %755 = vmatprep.mubr.bf16.mxu0 0
  %756 = vmatmul.mubr.bf16.gmra.mrb[0].mxu0 %v687
  %v757 = vpop.f32.mrb[0].mxu0
  %v758 = vadd.f32 0.0, %v757
  %v759 = vpop.f32.mrb[0].mxu0
  %v760 = vpop.f32.mrb[0].mxu0
  %v761 = vadd.f32 0.0, %v760
  %v762 = vpop.f32.mrb[0].mxu0
  %763 = vmatprep.mubr.bf16.mxu0 0
  %764 = vmatmul.mubr.bf16.gmra.mrb[0].mxu0 %v688
  %v765 = vpop.f32.mrb[0].mxu0
  %v766 = vadd.f32 0.0, %v765
  %v767 = vpop.f32.mrb[0].mxu0
  %v768 = vpop.f32.mrb[0].mxu0
  %v769 = vadd.f32 0.0, %v768
  %v770 = vpop.f32.mrb[0].mxu0
  %771 = vmatprep.mubr.bf16.mxu0 0
  %772 = vmatmul.mubr.bf16.gmra.mrb[0].mxu0 %v689
  %v773 = vpop.f32.mrb[0].mxu0
  %v774 = vadd.f32 0.0, %v773
  %v775 = vpop.f32.mrb[0].mxu0
  %v776 = vpop.f32.mrb[0].mxu0
  %v777 = vadd.f32 0.0, %v776
  %v778 = vpop.f32.mrb[0].mxu0
  %779 = vmatprep.mubr.bf16.mxu0 0
  %780 = vmatmul.mubr.bf16.gmra.mrb[0].mxu0 %v690
  %v781 = vpop.f32.mrb[0].mxu0
  %v782 = vadd.f32 0.0, %v781
  %v783 = vpop.f32.mrb[0].mxu0
  %v784 = vpop.f32.mrb[0].mxu0
  %v785 = vadd.f32 0.0, %v784
  %v786 = vpop.f32.mrb[0].mxu0
  %787 = vdwg.mxu0
  %v788 = vpack.c.bf16 %v729, %v726
  %v789 = vpack.c.bf16 %v737, %v734
  %v790 = vpack.c.bf16 %v745, %v742
  %v791 = vpack.c.bf16 %v753, %v750
  %v792 = vpack.c.bf16 %v761, %v758
  %v793 = vpack.c.bf16 %v769, %v766
  %v794 = vpack.c.bf16 %v777, %v774
  %v795 = vpack.c.bf16 %v785, %v782
  %796 = vst.msk [vmem:[#allocation5] sm:$0xff] %vm265, %v788
  %798 = vrot.lane.b32.xlu0 %v789, 16
  %v799 = vpop.permute.xlu0 %798
  %vm801 = vcmask 261248
  %802 = vst.msk [vmem:[#allocation5] sm:$0xff] %vm801, %v799
  %804 = vrot.lane.b32.xlu0 %v790, 32
  %v805 = vpop.permute.xlu0 %804
  %vm807 = vcmask 392448
  %808 = vst.msk [vmem:[#allocation5] sm:$0xff] %vm807, %v805
  %810 = vrot.lane.b32.xlu0 %v791, 48
  %v811 = vpop.permute.xlu0 %810
  %vm813 = vcmask 523648
  %814 = vst.msk [vmem:[#allocation5] sm:$0xff] %vm813, %v811
  %815 = vst.msk [vmem:[#allocation5 + $0x8] sm:$0xff] %vm265, %v792
  %817 = vrot.lane.b32.xlu0 %v793, 16
  %v818 = vpop.permute.xlu0 %817
  %820 = vst.msk [vmem:[#allocation5 + $0x8] sm:$0xff] %vm801, %v818
  %822 = vrot.lane.b32.xlu0 %v794, 32
  %v823 = vpop.permute.xlu0 %822
  %825 = vst.msk [vmem:[#allocation5 + $0x8] sm:$0xff] %vm807, %v823
  %827 = vrot.lane.b32.xlu0 %v795, 48
  %v828 = vpop.permute.xlu0 %827
  %830 = vst.msk [vmem:[#allocation5 + $0x8] sm:$0xff] %vm813, %v828
  %v831 = vld [vmem:[#allocation5] sm:$0xff]
  %v832 = vld [vmem:[#allocation5 + $0x8] sm:$0xff]
  %v833 = vld [vmem:[%s6] sm:$0xf]
  %v834 = vld [vmem:[%s6 + $0x4] sm:$0xf]
  %v835 = vld [vmem:[%s6 + $0x8] sm:$0xf]
  %v836 = vld [vmem:[%s6 + $0xc] sm:$0xf]
  %v837 = vld [vmem:[%s6 + $0x10] sm:$0xf]
  %v838 = vld [vmem:[%s6 + $0x14] sm:$0xf]
  %v839 = vld [vmem:[%s6 + $0x18] sm:$0xf]
  %v840 = vld [vmem:[%s6 + $0x1c] sm:$0xf]
  %v849 = vunpack.c.l.b16 %v833
  %v850 = vunpack.c.l.b16 %v834
  %v851 = vunpack.c.l.b16 %v835
  %v852 = vunpack.c.l.b16 %v836
  %v853 = vunpack.c.l.b16 %v837
  %v854 = vunpack.c.l.b16 %v838
  %v855 = vunpack.c.l.b16 %v839
  %v856 = vunpack.c.l.b16 %v840
  %v857 = vpack.c.b16 %v850, %v849
  %v858 = vpack.c.b16 %v852, %v851
  %v859 = vpack.c.b16 %v854, %v853
  %v860 = vpack.c.b16 %v856, %v855
  %v866 = vsel %vm66, %v831, 0
  %v869 = vsel %vm66, %v832, 0
  %871 = vmatprep.subr.bf16.mxu0 0
  %872 = vmatpush1.bf16.msra.mxu0 %v857
  %873 = vmatprep.subr.bf16.mxu0 0
  %874 = vmatpush1.bf16.msra.mxu0 %v858
  %875 = vmatprep.subr.bf16.mxu0 0
  %876 = vmatpush1.bf16.msra.mxu0 %v859
  %877 = vmatprep.subr.bf16.mxu0 0
  %878 = vmatpush1.bf16.msra.mxu0 %v860
  %879 = vmatprep.subr.bf16.mxu0 0
  %880 = vmatpush1.bf16.msra.mxu0 0
  %881 = vmatprep.subr.bf16.mxu0 0
  %882 = vmatpush1.bf16.msra.mxu0 0
  %883 = vmatprep.subr.bf16.mxu0 0
  %884 = vmatpush1.bf16.msra.mxu0 0
  %885 = vmatprep.subr.bf16.mxu0 0
  %886 = vmatpush1.bf16.msra.mxu0 0
  %887 = vmatprep.subr.bf16.mxu0 0
  %888 = vmatpush1.bf16.msra.mxu0 0
  %889 = vmatprep.subr.bf16.mxu0 0
  %890 = vmatpush1.bf16.msra.mxu0 0
  %891 = vmatprep.subr.bf16.mxu0 0
  %892 = vmatpush1.bf16.msra.mxu0 0
  %893 = vmatprep.subr.bf16.mxu0 0
  %894 = vmatpush1.bf16.msra.mxu0 0
  %895 = vmatprep.subr.bf16.mxu0 0
  %896 = vmatpush1.bf16.msra.mxu0 0
  %897 = vmatprep.subr.bf16.mxu0 0
  %898 = vmatpush1.bf16.msra.mxu0 0
  %899 = vmatprep.subr.bf16.mxu0 0
  %900 = vmatpush1.bf16.msra.mxu0 0
  %901 = vmatprep.subr.bf16.mxu0 0
  %902 = vmatpush1.bf16.msra.mxu0 0
  %903 = vmatprep.mubr.bf16.mxu0 0
  %904 = vmatmul.mubr.bf16.gmra.mrb[0].mxu0 %v866
  %v905 = vpop.f32.mrb[0].mxu0
  %v906 = vadd.f32 0.0, %v905
  %v907 = vpop.f32.mrb[0].mxu0
  %v908 = vpop.f32.mrb[0].mxu0
  %v909 = vadd.f32 0.0, %v908
  %v910 = vpop.f32.mrb[0].mxu0
  %911 = vmatprep.mubr.bf16.mxu0 0
  %912 = vmatmul.mubr.bf16.gmra.mrb[0].mxu0 %v869
  %v913 = vpop.f32.mrb[0].mxu0
  %v914 = vadd.f32 0.0, %v913
  %v915 = vpop.f32.mrb[0].mxu0
  %v916 = vpop.f32.mrb[0].mxu0
  %v917 = vadd.f32 0.0, %v916
  %v918 = vpop.f32.mrb[0].mxu0
  %919 = vdwg.mxu0
  %v920 = vadd.f32 %v60, %v906
  %v921 = vadd.f32 %v61, %v909
  %v922 = vadd.f32 %v62, %v914
  %v923 = vadd.f32 %v63, %v917
  %v924 = vld [vmem:[%s7] sm:$0x1]
  %v926 = vlaneseq
  %v927 = vshrl.u32 %v926, 7
  %v928 = vsub.s32 0, %v927
  %v929 = vrot.slane %v924, %v928
  %v931 = vadd.f32 %v920, %v929
  %v932 = vadd.f32 %v921, %v929
  %v933 = vadd.f32 %v922, %v929
  %v934 = vadd.f32 %v923, %v929
  %v935 = vld [vmem:[%s8] sm:$0x1]
  %v936 = vld [vmem:[%s9] sm:$0x1]
  %v937 = vsel %vm66, %v931, 0.0
  %938 = vadd.xlane.f32.xlu0 %v937
  %v939 = vpop.xlane.xlu0 %938
  %v940 = vsel %vm66, %v932, 0.0
  %941 = vadd.xlane.f32.xlu0 %v940
  %v942 = vpop.xlane.xlu0 %941
  %v943 = vsel %vm66, %v933, 0.0
  %944 = vadd.xlane.f32.xlu0 %v943
  %v945 = vpop.xlane.xlu0 %944
  %v946 = vsel %vm66, %v934, 0.0
  %947 = vadd.xlane.f32.xlu0 %v946
  %v948 = vpop.xlane.xlu0 %947
  %v949 = vmul.f32 %v939, %v79
  %v950 = vmul.f32 %v942, %v79
  %v951 = vmul.f32 %v945, %v79
  %v952 = vmul.f32 %v948, %v79
  %v953 = vsub.f32 %v931, %v949
  %v954 = vsub.f32 %v932, %v950
  %v955 = vsub.f32 %v933, %v951
  %v956 = vsub.f32 %v934, %v952
  %v957 = vmul.f32 %v953, %v953
  %v958 = vmul.f32 %v954, %v954
  %v959 = vmul.f32 %v955, %v955
  %v960 = vmul.f32 %v956, %v956
  %v961 = vsel %vm66, %v957, 0.0
  %962 = vadd.xlane.f32.xlu0 %v961
  %v963 = vpop.xlane.xlu0 %962
  %v964 = vsel %vm66, %v958, 0.0
  %965 = vadd.xlane.f32.xlu0 %v964
  %v966 = vpop.xlane.xlu0 %965
  %v967 = vsel %vm66, %v959, 0.0
  %968 = vadd.xlane.f32.xlu0 %v967
  %v969 = vpop.xlane.xlu0 %968
  %v970 = vsel %vm66, %v960, 0.0
  %971 = vadd.xlane.f32.xlu0 %v970
  %v972 = vpop.xlane.xlu0 %971
  %v973 = vmul.f32 %v963, %v79
  %v974 = vmul.f32 %v966, %v79
  %v975 = vmul.f32 %v969, %v79
  %v976 = vmul.f32 %v972, %v79
  %v977 = vadd.f32 %v973, 1e-05
  %v978 = vadd.f32 %v974, 1e-05
  %v979 = vadd.f32 %v975, 1e-05
  %v980 = vadd.f32 %v976, 1e-05
  %v981 = vrsqrt.pop %v977
  %v982 = vrsqrt.pop %v978
  %v983 = vrsqrt.pop %v979
  %v984 = vrsqrt.pop %v980
  %v985 = vmul.f32 %v953, %v981
  %v986 = vmul.f32 %v954, %v982
  %v987 = vmul.f32 %v955, %v983
  %v988 = vmul.f32 %v956, %v984
  %v990 = vlaneseq
  %v991 = vshrl.u32 %v990, 7
  %v992 = vsub.s32 0, %v991
  %v993 = vrot.slane %v935, %v992
  %v995 = vmul.f32 %v985, %v993
  %v996 = vmul.f32 %v986, %v993
  %v997 = vmul.f32 %v987, %v993
  %v998 = vmul.f32 %v988, %v993
  %v1000 = vlaneseq
  %v1001 = vshrl.u32 %v1000, 7
  %v1002 = vsub.s32 0, %v1001
  %v1003 = vrot.slane %v936, %v1002
  %v1005 = vadd.f32 %v995, %v1003
  %v1006 = vadd.f32 %v996, %v1003
  %v1007 = vadd.f32 %v997, %v1003
  %v1008 = vadd.f32 %v998, %v1003
  %v1009 = vld [vmem:[%s10] sm:$0xff]
  %v1010 = vld [vmem:[%s10 + $0x8] sm:$0xff]
  %v1011 = vld [vmem:[%s10 + $0x10] sm:$0xff]
  %v1012 = vld [vmem:[%s10 + $0x18] sm:$0xff]
  %v1013 = vld [vmem:[%s10 + $0x20] sm:$0xff]
  %v1014 = vld [vmem:[%s10 + $0x28] sm:$0xff]
  %v1015 = vld [vmem:[%s10 + $0x30] sm:$0xff]
  %v1016 = vld [vmem:[%s10 + $0x38] sm:$0xff]
  %v1017 = vpack.c.bf16 %v1006, %v1005
  %v1018 = vpack.c.bf16 %v1008, %v1007
  %v1019 = vld [vmem:[%s11] sm:$0x3]
  %v1021 = vlaneseq
  %v1022 = vshrl.u32 %v1021, 7
  %v1023 = vsub.s32 0, %v1022
  %v1024 = vrot.slane %v1019, %v1023
  %v1025 = vlaneseq
  %v1026 = vshrl.u32 %v1025, 7
  %v1027 = vsub.s32 1, %v1026
  %v1028 = vrot.slane %v1019, %v1027
  %v1039 = vunpack.c.l.b16 %v1009
  %v1040 = vunpack.c.h.b16 %v1009
  %v1041 = vunpack.c.l.b16 %v1010
  %v1042 = vunpack.c.h.b16 %v1010
  %v1043 = vunpack.c.l.b16 %v1011
  %v1044 = vunpack.c.h.b16 %v1011
  %v1045 = vunpack.c.l.b16 %v1012
  %v1046 = vunpack.c.h.b16 %v1012
  %v1047 = vunpack.c.l.b16 %v1013
  %v1048 = vunpack.c.h.b16 %v1013
  %v1049 = vunpack.c.l.b16 %v1014
  %v1050 = vunpack.c.h.b16 %v1014
  %v1051 = vunpack.c.l.b16 %v1015
  %v1052 = vunpack.c.h.b16 %v1015
  %v1053 = vunpack.c.l.b16 %v1016
  %v1054 = vunpack.c.h.b16 %v1016
  %v1055 = vpack.c.b16 %v1041, %v1039
  %v1056 = vpack.c.b16 %v1042, %v1040
  %v1057 = vpack.c.b16 %v1045, %v1043
  %v1058 = vpack.c.b16 %v1046, %v1044
  %v1059 = vpack.c.b16 %v1049, %v1047
  %v1060 = vpack.c.b16 %v1050, %v1048
  %v1061 = vpack.c.b16 %v1053, %v1051
  %v1062 = vpack.c.b16 %v1054, %v1052
  %v1072 = vsel %vm66, %v1017, 0
  %v1075 = vsel %vm66, %v1018, 0
  %1077 = vmatprep.subr.bf16.mxu0 %v1056
  %1078 = vmatpush1.bf16.msra.mxu0 %v1055
  %1079 = vmatprep.subr.bf16.mxu0 %v1058
  %1080 = vmatpush1.bf16.msra.mxu0 %v1057
  %1081 = vmatprep.subr.bf16.mxu0 %v1060
  %1082 = vmatpush1.bf16.msra.mxu0 %v1059
  %1083 = vmatprep.subr.bf16.mxu0 %v1062
  %1084 = vmatpush1.bf16.msra.mxu0 %v1061
  %1085 = vmatprep.subr.bf16.mxu0 0
  %1086 = vmatpush1.bf16.msra.mxu0 0
  %1087 = vmatprep.subr.bf16.mxu0 0
  %1088 = vmatpush1.bf16.msra.mxu0 0
  %1089 = vmatprep.subr.bf16.mxu0 0
  %1090 = vmatpush1.bf16.msra.mxu0 0
  %1091 = vmatprep.subr.bf16.mxu0 0
  %1092 = vmatpush1.bf16.msra.mxu0 0
  %1093 = vmatprep.subr.bf16.mxu0 0
  %1094 = vmatpush1.bf16.msra.mxu0 0
  %1095 = vmatprep.subr.bf16.mxu0 0
  %1096 = vmatpush1.bf16.msra.mxu0 0
  %1097 = vmatprep.subr.bf16.mxu0 0
  %1098 = vmatpush1.bf16.msra.mxu0 0
  %1099 = vmatprep.subr.bf16.mxu0 0
  %1100 = vmatpush1.bf16.msra.mxu0 0
  %1101 = vmatprep.subr.bf16.mxu0 0
  %1102 = vmatpush1.bf16.msra.mxu0 0
  %1103 = vmatprep.subr.bf16.mxu0 0
  %1104 = vmatpush1.bf16.msra.mxu0 0
  %1105 = vmatprep.subr.bf16.mxu0 0
  %1106 = vmatpush1.bf16.msra.mxu0 0
  %1107 = vmatprep.subr.bf16.mxu0 0
  %1108 = vmatpush1.bf16.msra.mxu0 0
  %1109 = vmatprep.mubr.bf16.mxu0 0
  %1110 = vmatmul.mubr.bf16.gmra.mrb[0].mxu0 %v1072
  %v1111 = vpop.f32.mrb[0].mxu0
  %v1112 = vadd.f32 %v1024, %v1111
  %v1113 = vpop.f32.mrb[0].mxu0
  %v1114 = vadd.f32 %v1028, %v1113
  %v1115 = vpop.f32.mrb[0].mxu0
  %v1116 = vadd.f32 %v1024, %v1115
  %v1117 = vpop.f32.mrb[0].mxu0
  %v1118 = vadd.f32 %v1028, %v1117
  %1119 = vmatprep.mubr.bf16.mxu0 0
  %1120 = vmatmul.mubr.bf16.gmra.mrb[0].mxu0 %v1075
  %v1121 = vpop.f32.mrb[0].mxu0
  %v1122 = vadd.f32 %v1024, %v1121
  %v1123 = vpop.f32.mrb[0].mxu0
  %v1124 = vadd.f32 %v1028, %v1123
  %v1125 = vpop.f32.mrb[0].mxu0
  %v1126 = vadd.f32 %v1024, %v1125
  %v1127 = vpop.f32.mrb[0].mxu0
  %v1128 = vadd.f32 %v1028, %v1127
  %1129 = vdwg.mxu0
  %v1130 = vmul.f32 %v1112, 0.5
  %v1131 = vmul.f32 %v1114, 0.5
  %v1132 = vmul.f32 %v1116, 0.5
  %v1133 = vmul.f32 %v1118, 0.5
  %v1134 = vmul.f32 %v1122, 0.5
  %v1135 = vmul.f32 %v1124, 0.5
  %v1136 = vmul.f32 %v1126, 0.5
  %v1137 = vmul.f32 %v1128, 0.5
  %v1138 = vmul.f32 %v1112, 0.044715
  %v1139 = vmul.f32 %v1114, 0.044715
  %v1140 = vmul.f32 %v1116, 0.044715
  %v1141 = vmul.f32 %v1118, 0.044715
  %v1142 = vmul.f32 %v1122, 0.044715
  %v1143 = vmul.f32 %v1124, 0.044715
  %v1144 = vmul.f32 %v1126, 0.044715
  %v1145 = vmul.f32 %v1128, 0.044715
  %v1146 = vmul.f32 %v1138, %v1112
  %v1147 = vmul.f32 %v1139, %v1114
  %v1148 = vmul.f32 %v1140, %v1116
  %v1149 = vmul.f32 %v1141, %v1118
  %v1150 = vmul.f32 %v1142, %v1122
  %v1151 = vmul.f32 %v1143, %v1124
  %v1152 = vmul.f32 %v1144, %v1126
  %v1153 = vmul.f32 %v1145, %v1128
  %v1154 = vmul.f32 %v1146, %v1112
  %v1155 = vmul.f32 %v1147, %v1114
  %v1156 = vmul.f32 %v1148, %v1116
  %v1157 = vmul.f32 %v1149, %v1118
  %v1158 = vmul.f32 %v1150, %v1122
  %v1159 = vmul.f32 %v1151, %v1124
  %v1160 = vmul.f32 %v1152, %v1126
  %v1161 = vmul.f32 %v1153, %v1128
  %v1162 = vadd.f32 %v1112, %v1154
  %v1163 = vadd.f32 %v1114, %v1155
  %v1164 = vadd.f32 %v1116, %v1156
  %v1165 = vadd.f32 %v1118, %v1157
  %v1166 = vadd.f32 %v1122, %v1158
  %v1167 = vadd.f32 %v1124, %v1159
  %v1168 = vadd.f32 %v1126, %v1160
  %v1169 = vadd.f32 %v1128, %v1161
  %v1170 = vmul.f32 %v1162, 0.7978846
  %v1171 = vmul.f32 %v1163, 0.7978846
  %v1172 = vmul.f32 %v1164, 0.7978846
  %v1173 = vmul.f32 %v1165, 0.7978846
  %v1174 = vmul.f32 %v1166, 0.7978846
  %v1175 = vmul.f32 %v1167, 0.7978846
  %v1176 = vmul.f32 %v1168, 0.7978846
  %v1177 = vmul.f32 %v1169, 0.7978846
  %v1178 = vtanh.pop %v1170
  %v1179 = vtanh.pop %v1171
  %v1180 = vtanh.pop %v1172
  %v1181 = vtanh.pop %v1173
  %v1182 = vtanh.pop %v1174
  %v1183 = vtanh.pop %v1175
  %v1184 = vtanh.pop %v1176
  %v1185 = vtanh.pop %v1177
  %v1186 = vadd.f32 %v1178, 1.0
  %v1187 = vadd.f32 %v1179, 1.0
  %v1188 = vadd.f32 %v1180, 1.0
  %v1189 = vadd.f32 %v1181, 1.0
  %v1190 = vadd.f32 %v1182, 1.0
  %v1191 = vadd.f32 %v1183, 1.0
  %v1192 = vadd.f32 %v1184, 1.0
  %v1193 = vadd.f32 %v1185, 1.0
  %v1194 = vmul.f32 %v1130, %v1186
  %v1195 = vmul.f32 %v1131, %v1187
  %v1196 = vmul.f32 %v1132, %v1188
  %v1197 = vmul.f32 %v1133, %v1189
  %v1198 = vmul.f32 %v1134, %v1190
  %v1199 = vmul.f32 %v1135, %v1191
  %v1200 = vmul.f32 %v1136, %v1192
  %v1201 = vmul.f32 %v1137, %v1193
  %v1202 = vld [vmem:[%s12] sm:$0xf]
  %v1203 = vld [vmem:[%s12 + $0x4] sm:$0xf]
  %v1204 = vld [vmem:[%s12 + $0x8] sm:$0xf]
  %v1205 = vld [vmem:[%s12 + $0xc] sm:$0xf]
  %v1206 = vld [vmem:[%s12 + $0x10] sm:$0xf]
  %v1207 = vld [vmem:[%s12 + $0x14] sm:$0xf]
  %v1208 = vld [vmem:[%s12 + $0x18] sm:$0xf]
  %v1209 = vld [vmem:[%s12 + $0x1c] sm:$0xf]
  %v1210 = vld [vmem:[%s12 + $0x20] sm:$0xf]
  %v1211 = vld [vmem:[%s12 + $0x24] sm:$0xf]
  %v1212 = vld [vmem:[%s12 + $0x28] sm:$0xf]
  %v1213 = vld [vmem:[%s12 + $0x2c] sm:$0xf]
  %v1214 = vld [vmem:[%s12 + $0x30] sm:$0xf]
  %v1215 = vld [vmem:[%s12 + $0x34] sm:$0xf]
  %v1216 = vld [vmem:[%s12 + $0x38] sm:$0xf]
  %v1217 = vld [vmem:[%s12 + $0x3c] sm:$0xf]
  %v1218 = vld [vmem:[%s12 + $0x40] sm:$0xf]
  %v1219 = vld [vmem:[%s12 + $0x44] sm:$0xf]
  %v1220 = vld [vmem:[%s12 + $0x48] sm:$0xf]
  %v1221 = vld [vmem:[%s12 + $0x4c] sm:$0xf]
  %v1222 = vld [vmem:[%s12 + $0x50] sm:$0xf]
  %v1223 = vld [vmem:[%s12 + $0x54] sm:$0xf]
  %v1224 = vld [vmem:[%s12 + $0x58] sm:$0xf]
  %v1225 = vld [vmem:[%s12 + $0x5c] sm:$0xf]
  %v1226 = vld [vmem:[%s12 + $0x60] sm:$0xf]
  %v1227 = vld [vmem:[%s12 + $0x64] sm:$0xf]
  %v1228 = vld [vmem:[%s12 + $0x68] sm:$0xf]
  %v1229 = vld [vmem:[%s12 + $0x6c] sm:$0xf]
  %v1230 = vld [vmem:[%s12 + $0x70] sm:$0xf]
  %v1231 = vld [vmem:[%s12 + $0x74] sm:$0xf]
  %v1232 = vld [vmem:[%s12 + $0x78] sm:$0xf]
  %v1233 = vld [vmem:[%s12 + $0x7c] sm:$0xf]
  %v1234 = vpack.c.bf16 %v1196, %v1194
  %v1235 = vpack.c.bf16 %v1197, %v1195
  %v1236 = vpack.c.bf16 %v1200, %v1198
  %v1237 = vpack.c.bf16 %v1201, %v1199
  %v1270 = vunpack.c.l.b16 %v1202
  %v1271 = vunpack.c.l.b16 %v1203
  %v1272 = vunpack.c.l.b16 %v1204
  %v1273 = vunpack.c.l.b16 %v1205
  %v1274 = vunpack.c.l.b16 %v1206
  %v1275 = vunpack.c.l.b16 %v1207
  %v1276 = vunpack.c.l.b16 %v1208
  %v1277 = vunpack.c.l.b16 %v1209
  %v1278 = vunpack.c.l.b16 %v1210
  %v1279 = vunpack.c.l.b16 %v1211
  %v1280 = vunpack.c.l.b16 %v1212
  %v1281 = vunpack.c.l.b16 %v1213
  %v1282 = vunpack.c.l.b16 %v1214
  %v1283 = vunpack.c.l.b16 %v1215
  %v1284 = vunpack.c.l.b16 %v1216
  %v1285 = vunpack.c.l.b16 %v1217
  %v1286 = vunpack.c.l.b16 %v1218
  %v1287 = vunpack.c.l.b16 %v1219
  %v1288 = vunpack.c.l.b16 %v1220
  %v1289 = vunpack.c.l.b16 %v1221
  %v1290 = vunpack.c.l.b16 %v1222
  %v1291 = vunpack.c.l.b16 %v1223
  %v1292 = vunpack.c.l.b16 %v1224
  %v1293 = vunpack.c.l.b16 %v1225
  %v1294 = vunpack.c.l.b16 %v1226
  %v1295 = vunpack.c.l.b16 %v1227
  %v1296 = vunpack.c.l.b16 %v1228
  %v1297 = vunpack.c.l.b16 %v1229
  %v1298 = vunpack.c.l.b16 %v1230
  %v1299 = vunpack.c.l.b16 %v1231
  %v1300 = vunpack.c.l.b16 %v1232
  %v1301 = vunpack.c.l.b16 %v1233
  %v1302 = vpack.c.b16 %v1271, %v1270
  %v1303 = vpack.c.b16 %v1273, %v1272
  %v1304 = vpack.c.b16 %v1275, %v1274
  %v1305 = vpack.c.b16 %v1277, %v1276
  %v1306 = vpack.c.b16 %v1279, %v1278
  %v1307 = vpack.c.b16 %v1281, %v1280
  %v1308 = vpack.c.b16 %v1283, %v1282
  %v1309 = vpack.c.b16 %v1285, %v1284
  %v1310 = vpack.c.b16 %v1287, %v1286
  %v1311 = vpack.c.b16 %v1289, %v1288
  %v1312 = vpack.c.b16 %v1291, %v1290
  %v1313 = vpack.c.b16 %v1293, %v1292
  %v1314 = vpack.c.b16 %v1295, %v1294
  %v1315 = vpack.c.b16 %v1297, %v1296
  %v1316 = vpack.c.b16 %v1299, %v1298
  %v1317 = vpack.c.b16 %v1301, %v1300
  %1334 = vmatprep.subr.bf16.mxu0 0
  %1335 = vmatpush1.bf16.msra.mxu0 %v1302
  %1336 = vmatprep.subr.bf16.mxu0 0
  %1337 = vmatpush1.bf16.msra.mxu0 %v1303
  %1338 = vmatprep.subr.bf16.mxu0 0
  %1339 = vmatpush1.bf16.msra.mxu0 %v1304
  %1340 = vmatprep.subr.bf16.mxu0 0
  %1341 = vmatpush1.bf16.msra.mxu0 %v1305
  %1342 = vmatprep.subr.bf16.mxu0 0
  %1343 = vmatpush1.bf16.msra.mxu0 %v1306
  %1344 = vmatprep.subr.bf16.mxu0 0
  %1345 = vmatpush1.bf16.msra.mxu0 %v1307
  %1346 = vmatprep.subr.bf16.mxu0 0
  %1347 = vmatpush1.bf16.msra.mxu0 %v1308
  %1348 = vmatprep.subr.bf16.mxu0 0
  %1349 = vmatpush1.bf16.msra.mxu0 %v1309
  %1350 = vmatprep.subr.bf16.mxu0 0
  %1351 = vmatpush1.bf16.msra.mxu0 %v1310
  %1352 = vmatprep.subr.bf16.mxu0 0
  %1353 = vmatpush1.bf16.msra.mxu0 %v1311
  %1354 = vmatprep.subr.bf16.mxu0 0
  %1355 = vmatpush1.bf16.msra.mxu0 %v1312
  %1356 = vmatprep.subr.bf16.mxu0 0
  %1357 = vmatpush1.bf16.msra.mxu0 %v1313
  %1358 = vmatprep.subr.bf16.mxu0 0
  %1359 = vmatpush1.bf16.msra.mxu0 %v1314
  %1360 = vmatprep.subr.bf16.mxu0 0
  %1361 = vmatpush1.bf16.msra.mxu0 %v1315
  %1362 = vmatprep.subr.bf16.mxu0 0
  %1363 = vmatpush1.bf16.msra.mxu0 %v1316
  %1364 = vmatprep.subr.bf16.mxu0 0
  %1365 = vmatpush1.bf16.msra.mxu0 %v1317
  %1366 = vmatprep.mubr.bf16.mxu0 %v1235
  %1367 = vmatmul.mubr.bf16.gmra.mrb[0].mxu0 %v1234
  %v1368 = vpop.f32.mrb[0].mxu0
  %v1369 = vadd.f32 0.0, %v1368
  %v1370 = vpop.f32.mrb[0].mxu0
  %v1371 = vpop.f32.mrb[0].mxu0
  %v1372 = vadd.f32 0.0, %v1371
  %v1373 = vpop.f32.mrb[0].mxu0
  %1374 = vmatprep.mubr.bf16.mxu0 %v1237
  %1375 = vmatmul.mubr.bf16.gmra.mrb[0].mxu0 %v1236
  %v1376 = vpop.f32.mrb[0].mxu0
  %v1377 = vadd.f32 0.0, %v1376
  %v1378 = vpop.f32.mrb[0].mxu0
  %v1379 = vpop.f32.mrb[0].mxu0
  %v1380 = vadd.f32 0.0, %v1379
  %v1381 = vpop.f32.mrb[0].mxu0
  %1382 = vdwg.mxu0
  %v1383 = vadd.f32 %v931, %v1369
  %v1384 = vadd.f32 %v932, %v1372
  %v1385 = vadd.f32 %v933, %v1377
  %v1386 = vadd.f32 %v934, %v1380
  %v1387 = vld [vmem:[%s13] sm:$0x1]
  %v1389 = vlaneseq
  %v1390 = vshrl.u32 %v1389, 7
  %v1391 = vsub.s32 0, %v1390
  %v1392 = vrot.slane %v1387, %v1391
  %v1394 = vadd.f32 %v1383, %v1392
  %v1395 = vadd.f32 %v1384, %v1392
  %v1396 = vadd.f32 %v1385, %v1392
  %v1397 = vadd.f32 %v1386, %v1392
  %s1398 = scalar_lea.vmem %s2, 1
  %v1399 = vld [vmem:[%s1398] sm:$0x1]
  %s1400 = scalar_lea.vmem %s3, 1
  %v1401 = vld [vmem:[%s1400] sm:$0x1]
  %v1402 = vsel %vm66, %v1394, 0.0
  %1403 = vadd.xlane.f32.xlu0 %v1402
  %v1404 = vpop.xlane.xlu0 %1403
  %v1405 = vsel %vm66, %v1395, 0.0
  %1406 = vadd.xlane.f32.xlu0 %v1405
  %v1407 = vpop.xlane.xlu0 %1406
  %v1408 = vsel %vm66, %v1396, 0.0
  %1409 = vadd.xlane.f32.xlu0 %v1408
  %v1410 = vpop.xlane.xlu0 %1409
  %v1411 = vsel %vm66, %v1397, 0.0
  %1412 = vadd.xlane.f32.xlu0 %v1411
  %v1413 = vpop.xlane.xlu0 %1412
  %v1414 = vmul.f32 %v1404, %v79
  %v1415 = vmul.f32 %v1407, %v79
  %v1416 = vmul.f32 %v1410, %v79
  %v1417 = vmul.f32 %v1413, %v79
  %v1418 = vsub.f32 %v1394, %v1414
  %v1419 = vsub.f32 %v1395, %v1415
  %v1420 = vsub.f32 %v1396, %v1416
  %v1421 = vsub.f32 %v1397, %v1417
  %v1422 = vmul.f32 %v1418, %v1418
  %v1423 = vmul.f32 %v1419, %v1419
  %v1424 = vmul.f32 %v1420, %v1420
  %v1425 = vmul.f32 %v1421, %v1421
  %v1426 = vsel %vm66, %v1422, 0.0
  %1427 = vadd.xlane.f32.xlu0 %v1426
  %v1428 = vpop.xlane.xlu0 %1427
  %v1429 = vsel %vm66, %v1423, 0.0
  %1430 = vadd.xlane.f32.xlu0 %v1429
  %v1431 = vpop.xlane.xlu0 %1430
  %v1432 = vsel %vm66, %v1424, 0.0
  %1433 = vadd.xlane.f32.xlu0 %v1432
  %v1434 = vpop.xlane.xlu0 %1433
  %v1435 = vsel %vm66, %v1425, 0.0
  %1436 = vadd.xlane.f32.xlu0 %v1435
  %v1437 = vpop.xlane.xlu0 %1436
  %v1438 = vmul.f32 %v1428, %v79
  %v1439 = vmul.f32 %v1431, %v79
  %v1440 = vmul.f32 %v1434, %v79
  %v1441 = vmul.f32 %v1437, %v79
  %v1442 = vadd.f32 %v1438, 1e-05
  %v1443 = vadd.f32 %v1439, 1e-05
  %v1444 = vadd.f32 %v1440, 1e-05
  %v1445 = vadd.f32 %v1441, 1e-05
  %v1446 = vrsqrt.pop %v1442
  %v1447 = vrsqrt.pop %v1443
  %v1448 = vrsqrt.pop %v1444
  %v1449 = vrsqrt.pop %v1445
  %v1450 = vmul.f32 %v1418, %v1446
  %v1451 = vmul.f32 %v1419, %v1447
  %v1452 = vmul.f32 %v1420, %v1448
  %v1453 = vmul.f32 %v1421, %v1449
  %v1455 = vlaneseq
  %v1456 = vshrl.u32 %v1455, 7
  %v1457 = vsub.s32 0, %v1456
  %v1458 = vrot.slane %v1399, %v1457
  %v1460 = vmul.f32 %v1450, %v1458
  %v1461 = vmul.f32 %v1451, %v1458
  %v1462 = vmul.f32 %v1452, %v1458
  %v1463 = vmul.f32 %v1453, %v1458
  %v1465 = vlaneseq
  %v1466 = vshrl.u32 %v1465, 7
  %v1467 = vsub.s32 0, %v1466
  %v1468 = vrot.slane %v1401, %v1467
  %v1470 = vadd.f32 %v1460, %v1468
  %v1471 = vadd.f32 %v1461, %v1468
  %v1472 = vadd.f32 %v1462, %v1468
  %v1473 = vadd.f32 %v1463, %v1468
  %s1474 = scalar_lea.vmem %s4, 64
  %v1475 = vld [vmem:[%s1474] sm:$0xff]
  %v1476 = vld [vmem:[%s1474 + $0x8] sm:$0xff]
  %v1477 = vld [vmem:[%s1474 + $0x10] sm:$0xff]
  %v1478 = vld [vmem:[%s1474 + $0x18] sm:$0xff]
  %v1479 = vld [vmem:[%s1474 + $0x20] sm:$0xff]
  %v1480 = vld [vmem:[%s1474 + $0x28] sm:$0xff]
  %v1481 = vld [vmem:[%s1474 + $0x30] sm:$0xff]
  %v1482 = vld [vmem:[%s1474 + $0x38] sm:$0xff]
  %v1483 = vpack.c.bf16 %v1471, %v1470
  %v1484 = vpack.c.bf16 %v1473, %v1472
  %s1485 = scalar_lea.vmem %s5, 2
  %v1486 = vld [vmem:[%s1485] sm:$0x3]
  %v1488 = vlaneseq
  %v1489 = vshrl.u32 %v1488, 7
  %v1490 = vsub.s32 0, %v1489
  %v1491 = vrot.slane %v1486, %v1490
  %v1492 = vlaneseq
  %v1493 = vshrl.u32 %v1492, 7
  %v1494 = vsub.s32 1, %v1493
  %v1495 = vrot.slane %v1486, %v1494
  %v1506 = vunpack.c.l.b16 %v1475
  %v1507 = vunpack.c.h.b16 %v1475
  %v1508 = vunpack.c.l.b16 %v1476
  %v1509 = vunpack.c.h.b16 %v1476
  %v1510 = vunpack.c.l.b16 %v1477
  %v1511 = vunpack.c.h.b16 %v1477
  %v1512 = vunpack.c.l.b16 %v1478
  %v1513 = vunpack.c.h.b16 %v1478
  %v1514 = vunpack.c.l.b16 %v1479
  %v1515 = vunpack.c.h.b16 %v1479
  %v1516 = vunpack.c.l.b16 %v1480
  %v1517 = vunpack.c.h.b16 %v1480
  %v1518 = vunpack.c.l.b16 %v1481
  %v1519 = vunpack.c.h.b16 %v1481
  %v1520 = vunpack.c.l.b16 %v1482
  %v1521 = vunpack.c.h.b16 %v1482
  %v1522 = vpack.c.b16 %v1508, %v1506
  %v1523 = vpack.c.b16 %v1509, %v1507
  %v1524 = vpack.c.b16 %v1512, %v1510
  %v1525 = vpack.c.b16 %v1513, %v1511
  %v1526 = vpack.c.b16 %v1516, %v1514
  %v1527 = vpack.c.b16 %v1517, %v1515
  %v1528 = vpack.c.b16 %v1520, %v1518
  %v1529 = vpack.c.b16 %v1521, %v1519
  %v1539 = vsel %vm66, %v1483, 0
  %v1542 = vsel %vm66, %v1484, 0
  %1544 = vmatprep.subr.bf16.mxu0 %v1523
  %1545 = vmatpush1.bf16.msra.mxu0 %v1522
  %1546 = vmatprep.subr.bf16.mxu0 %v1525
  %1547 = vmatpush1.bf16.msra.mxu0 %v1524
  %1548 = vmatprep.subr.bf16.mxu0 %v1527
  %1549 = vmatpush1.bf16.msra.mxu0 %v1526
  %1550 = vmatprep.subr.bf16.mxu0 %v1529
  %1551 = vmatpush1.bf16.msra.mxu0 %v1528
  %1552 = vmatprep.subr.bf16.mxu0 0
  %1553 = vmatpush1.bf16.msra.mxu0 0
  %1554 = vmatprep.subr.bf16.mxu0 0
  %1555 = vmatpush1.bf16.msra.mxu0 0
  %1556 = vmatprep.subr.bf16.mxu0 0
  %1557 = vmatpush1.bf16.msra.mxu0 0
  %1558 = vmatprep.subr.bf16.mxu0 0
  %1559 = vmatpush1.bf16.msra.mxu0 0
  %1560 = vmatprep.subr.bf16.mxu0 0
  %1561 = vmatpush1.bf16.msra.mxu0 0
  %1562 = vmatprep.subr.bf16.mxu0 0
  %1563 = vmatpush1.bf16.msra.mxu0 0
  %1564 = vmatprep.subr.bf16.mxu0 0
  %1565 = vmatpush1.bf16.msra.mxu0 0
  %1566 = vmatprep.subr.bf16.mxu0 0
  %1567 = vmatpush1.bf16.msra.mxu0 0
  %1568 = vmatprep.subr.bf16.mxu0 0
  %1569 = vmatpush1.bf16.msra.mxu0 0
  %1570 = vmatprep.subr.bf16.mxu0 0
  %1571 = vmatpush1.bf16.msra.mxu0 0
  %1572 = vmatprep.subr.bf16.mxu0 0
  %1573 = vmatpush1.bf16.msra.mxu0 0
  %1574 = vmatprep.subr.bf16.mxu0 0
  %1575 = vmatpush1.bf16.msra.mxu0 0
  %1576 = vmatprep.mubr.bf16.mxu0 0
  %1577 = vmatmul.mubr.bf16.gmra.mrb[0].mxu0 %v1539
  %v1578 = vpop.f32.mrb[0].mxu0
  %v1579 = vadd.f32 %v1491, %v1578
  %v1580 = vpop.f32.mrb[0].mxu0
  %v1581 = vadd.f32 %v1495, %v1580
  %v1582 = vpop.f32.mrb[0].mxu0
  %v1583 = vadd.f32 %v1491, %v1582
  %v1584 = vpop.f32.mrb[0].mxu0
  %v1585 = vadd.f32 %v1495, %v1584
  %1586 = vmatprep.mubr.bf16.mxu0 0
  %1587 = vmatmul.mubr.bf16.gmra.mrb[0].mxu0 %v1542
  %v1588 = vpop.f32.mrb[0].mxu0
  %v1589 = vadd.f32 %v1491, %v1588
  %v1590 = vpop.f32.mrb[0].mxu0
  %v1591 = vadd.f32 %v1495, %v1590
  %v1592 = vpop.f32.mrb[0].mxu0
  %v1593 = vadd.f32 %v1491, %v1592
  %v1594 = vpop.f32.mrb[0].mxu0
  %v1595 = vadd.f32 %v1495, %v1594
  %1596 = vdwg.mxu0
  %v1597 = vpack.c.bf16 %v1583, %v1579
  %v1598 = vpack.c.bf16 %v1585, %v1581
  %v1599 = vpack.c.bf16 %v1593, %v1589
  %v1600 = vpack.c.bf16 %v1595, %v1591
  %1601 = vst.msk [vmem:[#allocation2] sm:$0xff] %vm265, %v1597
  %1603 = vrot.lane.b32.xlu0 %v1597, 64
  %v1604 = vpop.permute.xlu0 %1603
  %1606 = vst.msk [vmem:[#allocation3] sm:$0xff] %vm265, %v1604
  %1607 = vst.msk [vmem:[#allocation4] sm:$0xff] %vm265, %v1598
  %1608 = vrot.lane.b32.xlu0 %v1597, 112
  %v1609 = vpop.permute.xlu0 %1608
  %1611 = vst.msk [vmem:[#allocation2 + $0x8] sm:$0xff] %vm265, %v1609
  %1612 = vrot.lane.b32.xlu0 %v1597, 48
  %v1613 = vpop.permute.xlu0 %1612
  %1615 = vst.msk [vmem:[#allocation3 + $0x8] sm:$0xff] %vm265, %v1613
  %1617 = vrot.lane.b32.xlu0 %v1598, 112
  %v1618 = vpop.permute.xlu0 %1617
  %1620 = vst.msk [vmem:[#allocation4 + $0x8] sm:$0xff] %vm265, %v1618
  %1621 = vrot.lane.b32.xlu0 %v1597, 96
  %v1622 = vpop.permute.xlu0 %1621
  %1624 = vst.msk [vmem:[#allocation2 + $0x10] sm:$0xff] %vm265, %v1622
  %1625 = vrot.lane.b32.xlu0 %v1597, 32
  %v1626 = vpop.permute.xlu0 %1625
  %1628 = vst.msk [vmem:[#allocation3 + $0x10] sm:$0xff] %vm265, %v1626
  %1629 = vrot.lane.b32.xlu0 %v1598, 96
  %v1630 = vpop.permute.xlu0 %1629
  %1632 = vst.msk [vmem:[#allocation4 + $0x10] sm:$0xff] %vm265, %v1630
  %1633 = vrot.lane.b32.xlu0 %v1597, 80
  %v1634 = vpop.permute.xlu0 %1633
  %1636 = vst.msk [vmem:[#allocation2 + $0x18] sm:$0xff] %vm265, %v1634
  %1637 = vrot.lane.b32.xlu0 %v1597, 16
  %v1638 = vpop.permute.xlu0 %1637
  %1640 = vst.msk [vmem:[#allocation3 + $0x18] sm:$0xff] %vm265, %v1638
  %1641 = vrot.lane.b32.xlu0 %v1598, 80
  %v1642 = vpop.permute.xlu0 %1641
  %1644 = vst.msk [vmem:[#allocation4 + $0x18] sm:$0xff] %vm265, %v1642
  %1645 = vst.msk [vmem:[#allocation2 + $0x20] sm:$0xff] %vm265, %v1599
  %1647 = vrot.lane.b32.xlu0 %v1599, 64
  %v1648 = vpop.permute.xlu0 %1647
  %1650 = vst.msk [vmem:[#allocation3 + $0x20] sm:$0xff] %vm265, %v1648
  %1651 = vst.msk [vmem:[#allocation4 + $0x20] sm:$0xff] %vm265, %v1600
  %1652 = vrot.lane.b32.xlu0 %v1599, 112
  %v1653 = vpop.permute.xlu0 %1652
  %1655 = vst.msk [vmem:[#allocation2 + $0x28] sm:$0xff] %vm265, %v1653
  %1656 = vrot.lane.b32.xlu0 %v1599, 48
  %v1657 = vpop.permute.xlu0 %1656
  %1659 = vst.msk [vmem:[#allocation3 + $0x28] sm:$0xff] %vm265, %v1657
  %1661 = vrot.lane.b32.xlu0 %v1600, 112
  %v1662 = vpop.permute.xlu0 %1661
  %1664 = vst.msk [vmem:[#allocation4 + $0x28] sm:$0xff] %vm265, %v1662
  %1665 = vrot.lane.b32.xlu0 %v1599, 96
  %v1666 = vpop.permute.xlu0 %1665
  %1668 = vst.msk [vmem:[#allocation2 + $0x30] sm:$0xff] %vm265, %v1666
  %1669 = vrot.lane.b32.xlu0 %v1599, 32
  %v1670 = vpop.permute.xlu0 %1669
  %1672 = vst.msk [vmem:[#allocation3 + $0x30] sm:$0xff] %vm265, %v1670
  %1673 = vrot.lane.b32.xlu0 %v1600, 96
  %v1674 = vpop.permute.xlu0 %1673
  %1676 = vst.msk [vmem:[#allocation4 + $0x30] sm:$0xff] %vm265, %v1674
  %1677 = vrot.lane.b32.xlu0 %v1599, 80
  %v1678 = vpop.permute.xlu0 %1677
  %1680 = vst.msk [vmem:[#allocation2 + $0x38] sm:$0xff] %vm265, %v1678
  %1681 = vrot.lane.b32.xlu0 %v1599, 16
  %v1682 = vpop.permute.xlu0 %1681
  %1684 = vst.msk [vmem:[#allocation3 + $0x38] sm:$0xff] %vm265, %v1682
  %1685 = vrot.lane.b32.xlu0 %v1600, 80
  %v1686 = vpop.permute.xlu0 %1685
  %1688 = vst.msk [vmem:[#allocation4 + $0x38] sm:$0xff] %vm265, %v1686
  %v1689 = vld [vmem:[#allocation2] sm:$0xff]
  %v1690 = vld [vmem:[#allocation2 + $0x8] sm:$0xff]
  %v1691 = vld [vmem:[#allocation2 + $0x10] sm:$0xff]
  %v1692 = vld [vmem:[#allocation2 + $0x18] sm:$0xff]
  %v1693 = vld [vmem:[#allocation2 + $0x20] sm:$0xff]
  %v1694 = vld [vmem:[#allocation2 + $0x28] sm:$0xff]
  %v1695 = vld [vmem:[#allocation2 + $0x30] sm:$0xff]
  %v1696 = vld [vmem:[#allocation2 + $0x38] sm:$0xff]
  %v1697 = vld [vmem:[#allocation3] sm:$0xff]
  %v1698 = vld [vmem:[#allocation3 + $0x8] sm:$0xff]
  %v1699 = vld [vmem:[#allocation3 + $0x10] sm:$0xff]
  %v1700 = vld [vmem:[#allocation3 + $0x18] sm:$0xff]
  %v1701 = vld [vmem:[#allocation3 + $0x20] sm:$0xff]
  %v1702 = vld [vmem:[#allocation3 + $0x28] sm:$0xff]
  %v1703 = vld [vmem:[#allocation3 + $0x30] sm:$0xff]
  %v1704 = vld [vmem:[#allocation3 + $0x38] sm:$0xff]
  %v1705 = vld [vmem:[%s1] sm:$0xff]
  %v1706 = vld [vmem:[%s1 + $0x8] sm:$0xff]
  %v1707 = vld [vmem:[%s1 + $0x10] sm:$0xff]
  %v1708 = vld [vmem:[%s1 + $0x18] sm:$0xff]
  %v1709 = vld [vmem:[%s1 + $0x20] sm:$0xff]
  %v1710 = vld [vmem:[%s1 + $0x28] sm:$0xff]
  %v1711 = vld [vmem:[%s1 + $0x30] sm:$0xff]
  %v1712 = vld [vmem:[%s1 + $0x38] sm:$0xff]
  %v1713 = vld [vmem:[%s1 + $0x40] sm:$0xff]
  %v1714 = vld [vmem:[%s1 + $0x48] sm:$0xff]
  %v1715 = vld [vmem:[%s1 + $0x50] sm:$0xff]
  %v1716 = vld [vmem:[%s1 + $0x58] sm:$0xff]
  %v1717 = vld [vmem:[%s1 + $0x60] sm:$0xff]
  %v1718 = vld [vmem:[%s1 + $0x68] sm:$0xff]
  %v1719 = vld [vmem:[%s1 + $0x70] sm:$0xff]
  %v1720 = vld [vmem:[%s1 + $0x78] sm:$0xff]
  %v1722 = vsel %vm265, %v1689, 0
  %v1725 = vsel %vm265, %v1690, 0
  %v1728 = vsel %vm265, %v1691, 0
  %v1731 = vsel %vm265, %v1692, 0
  %v1734 = vsel %vm265, %v1693, 0
  %v1737 = vsel %vm265, %v1694, 0
  %v1740 = vsel %vm265, %v1695, 0
  %v1743 = vsel %vm265, %v1696, 0
  %v1746 = vsel %vm265, %v1697, 0
  %v1749 = vsel %vm265, %v1698, 0
  %v1752 = vsel %vm265, %v1699, 0
  %v1755 = vsel %vm265, %v1700, 0
  %v1758 = vsel %vm265, %v1701, 0
  %v1761 = vsel %vm265, %v1702, 0
  %v1764 = vsel %vm265, %v1703, 0
  %v1767 = vsel %vm265, %v1704, 0
  %1769 = vmatprep.subr.bf16.mxu0 0
  %1770 = vmatpush1.bf16.xpose.msra.mxu0 %v1746
  %1771 = vmatprep.subr.bf16.mxu0 0
  %1772 = vmatpush1.bf16.xpose.msra.mxu0 %v1749
  %1773 = vmatprep.subr.bf16.mxu0 0
  %1774 = vmatpush1.bf16.xpose.msra.mxu0 %v1752
  %1775 = vmatprep.subr.bf16.mxu0 0
  %1776 = vmatpush1.bf16.xpose.msra.mxu0 %v1755
  %1777 = vmatprep.subr.bf16.mxu0 0
  %1778 = vmatpush1.bf16.xpose.msra.mxu0 %v1758
  %1779 = vmatprep.subr.bf16.mxu0 0
  %1780 = vmatpush1.bf16.xpose.msra.mxu0 %v1761
  %1781 = vmatprep.subr.bf16.mxu0 0
  %1782 = vmatpush1.bf16.xpose.msra.mxu0 %v1764
  %1783 = vmatprep.subr.bf16.mxu0 0
  %1784 = vmatpush1.bf16.xpose.msra.mxu0 %v1767
  %1785 = vmatprep.subr.bf16.mxu0 0
  %1786 = vmatpush1.bf16.xpose.msra.mxu0 0
  %1787 = vmatprep.subr.bf16.mxu0 0
  %1788 = vmatpush1.bf16.xpose.msra.mxu0 0
  %1789 = vmatprep.subr.bf16.mxu0 0
  %1790 = vmatpush1.bf16.xpose.msra.mxu0 0
  %1791 = vmatprep.subr.bf16.mxu0 0
  %1792 = vmatpush1.bf16.xpose.msra.mxu0 0
  %1793 = vmatprep.subr.bf16.mxu0 0
  %1794 = vmatpush1.bf16.xpose.msra.mxu0 0
  %1795 = vmatprep.subr.bf16.mxu0 0
  %1796 = vmatpush1.bf16.xpose.msra.mxu0 0
  %1797 = vmatprep.subr.bf16.mxu0 0
  %1798 = vmatpush1.bf16.xpose.msra.mxu0 0
  %1799 = vmatprep.subr.bf16.mxu0 0
  %1800 = vmatpush1.bf16.xpose.msra.mxu0 0
  %1801 = vmatprep.mubr.bf16.mxu0 0
  %1802 = vmatmul.mubr.bf16.gmra.mrb[0].mxu0 %v1722
  %v1803 = vpop.f32.mrb[0].mxu0
  %v1804 = vadd.f32 %v1705, %v1803
  %v1805 = vpop.f32.mrb[0].mxu0
  %v1806 = vpop.f32.mrb[0].mxu0
  %v1807 = vadd.f32 %v1706, %v1806
  %v1808 = vpop.f32.mrb[0].mxu0
  %1809 = vmatprep.mubr.bf16.mxu0 0
  %1810 = vmatmul.mubr.bf16.gmra.mrb[0].mxu0 %v1725
  %v1811 = vpop.f32.mrb[0].mxu0
  %v1812 = vadd.f32 %v1707, %v1811
  %v1813 = vpop.f32.mrb[0].mxu0
  %v1814 = vpop.f32.mrb[0].mxu0
  %v1815 = vadd.f32 %v1708, %v1814
  %v1816 = vpop.f32.mrb[0].mxu0
  %1817 = vmatprep.mubr.bf16.mxu0 0
  %1818 = vmatmul.mubr.bf16.gmra.mrb[0].mxu0 %v1728
  %v1819 = vpop.f32.mrb[0].mxu0
  %v1820 = vadd.f32 %v1709, %v1819
  %v1821 = vpop.f32.mrb[0].mxu0
  %v1822 = vpop.f32.mrb[0].mxu0
  %v1823 = vadd.f32 %v1710, %v1822
  %v1824 = vpop.f32.mrb[0].mxu0
  %1825 = vmatprep.mubr.bf16.mxu0 0
  %1826 = vmatmul.mubr.bf16.gmra.mrb[0].mxu0 %v1731
  %v1827 = vpop.f32.mrb[0].mxu0
  %v1828 = vadd.f32 %v1711, %v1827
  %v1829 = vpop.f32.mrb[0].mxu0
  %v1830 = vpop.f32.mrb[0].mxu0
  %v1831 = vadd.f32 %v1712, %v1830
  %v1832 = vpop.f32.mrb[0].mxu0
  %1833 = vmatprep.mubr.bf16.mxu0 0
  %1834 = vmatmul.mubr.bf16.gmra.mrb[0].mxu0 %v1734
  %v1835 = vpop.f32.mrb[0].mxu0
  %v1836 = vadd.f32 %v1713, %v1835
  %v1837 = vpop.f32.mrb[0].mxu0
  %v1838 = vpop.f32.mrb[0].mxu0
  %v1839 = vadd.f32 %v1714, %v1838
  %v1840 = vpop.f32.mrb[0].mxu0
  %1841 = vmatprep.mubr.bf16.mxu0 0
  %1842 = vmatmul.mubr.bf16.gmra.mrb[0].mxu0 %v1737
  %v1843 = vpop.f32.mrb[0].mxu0
  %v1844 = vadd.f32 %v1715, %v1843
  %v1845 = vpop.f32.mrb[0].mxu0
  %v1846 = vpop.f32.mrb[0].mxu0
  %v1847 = vadd.f32 %v1716, %v1846
  %v1848 = vpop.f32.mrb[0].mxu0
  %1849 = vmatprep.mubr.bf16.mxu0 0
  %1850 = vmatmul.mubr.bf16.gmra.mrb[0].mxu0 %v1740
  %v1851 = vpop.f32.mrb[0].mxu0
  %v1852 = vadd.f32 %v1717, %v1851
  %v1853 = vpop.f32.mrb[0].mxu0
  %v1854 = vpop.f32.mrb[0].mxu0
  %v1855 = vadd.f32 %v1718, %v1854
  %v1856 = vpop.f32.mrb[0].mxu0
  %1857 = vmatprep.mubr.bf16.mxu0 0
  %1858 = vmatmul.mubr.bf16.gmra.mrb[0].mxu0 %v1743
  %v1859 = vpop.f32.mrb[0].mxu0
  %v1860 = vadd.f32 %v1719, %v1859
  %v1861 = vpop.f32.mrb[0].mxu0
  %v1862 = vpop.f32.mrb[0].mxu0
  %v1863 = vadd.f32 %v1720, %v1862
  %v1864 = vpop.f32.mrb[0].mxu0
  %1865 = vdwg.mxu0
  %1866 = vmax.xlane.f32.xlu0 %v1804
  %v1867 = vpop.xlane.xlu0 %1866
  %1868 = vmax.xlane.f32.xlu0 %v1807
  %v1869 = vpop.xlane.xlu0 %1868
  %1870 = vmax.xlane.f32.xlu0 %v1812
  %v1871 = vpop.xlane.xlu0 %1870
  %1872 = vmax.xlane.f32.xlu0 %v1815
  %v1873 = vpop.xlane.xlu0 %1872
  %1874 = vmax.xlane.f32.xlu0 %v1820
  %v1875 = vpop.xlane.xlu0 %1874
  %1876 = vmax.xlane.f32.xlu0 %v1823
  %v1877 = vpop.xlane.xlu0 %1876
  %1878 = vmax.xlane.f32.xlu0 %v1828
  %v1879 = vpop.xlane.xlu0 %1878
  %1880 = vmax.xlane.f32.xlu0 %v1831
  %v1881 = vpop.xlane.xlu0 %1880
  %1882 = vmax.xlane.f32.xlu0 %v1836
  %v1883 = vpop.xlane.xlu0 %1882
  %1884 = vmax.xlane.f32.xlu0 %v1839
  %v1885 = vpop.xlane.xlu0 %1884
  %1886 = vmax.xlane.f32.xlu0 %v1844
  %v1887 = vpop.xlane.xlu0 %1886
  %1888 = vmax.xlane.f32.xlu0 %v1847
  %v1889 = vpop.xlane.xlu0 %1888
  %1890 = vmax.xlane.f32.xlu0 %v1852
  %v1891 = vpop.xlane.xlu0 %1890
  %1892 = vmax.xlane.f32.xlu0 %v1855
  %v1893 = vpop.xlane.xlu0 %1892
  %1894 = vmax.xlane.f32.xlu0 %v1860
  %v1895 = vpop.xlane.xlu0 %1894
  %1896 = vmax.xlane.f32.xlu0 %v1863
  %v1897 = vpop.xlane.xlu0 %1896
  %v1898 = vsub.f32 %v1804, %v1867
  %v1899 = vsub.f32 %v1807, %v1869
  %v1900 = vsub.f32 %v1812, %v1871
  %v1901 = vsub.f32 %v1815, %v1873
  %v1902 = vsub.f32 %v1820, %v1875
  %v1903 = vsub.f32 %v1823, %v1877
  %v1904 = vsub.f32 %v1828, %v1879
  %v1905 = vsub.f32 %v1831, %v1881
  %v1906 = vsub.f32 %v1836, %v1883
  %v1907 = vsub.f32 %v1839, %v1885
  %v1908 = vsub.f32 %v1844, %v1887
  %v1909 = vsub.f32 %v1847, %v1889
  %v1910 = vsub.f32 %v1852, %v1891
  %v1911 = vsub.f32 %v1855, %v1893
  %v1912 = vsub.f32 %v1860, %v1895
  %v1913 = vsub.f32 %v1863, %v1897
  %v1914 = vmul.f32 %v1898, 1.442695
  %v1915 = vpow.pop %v1914
  %v1916 = vmul.f32 %v1899, 1.442695
  %v1917 = vpow.pop %v1916
  %v1918 = vmul.f32 %v1900, 1.442695
  %v1919 = vpow.pop %v1918
  %v1920 = vmul.f32 %v1901, 1.442695
  %v1921 = vpow.pop %v1920
  %v1922 = vmul.f32 %v1902, 1.442695
  %v1923 = vpow.pop %v1922
  %v1924 = vmul.f32 %v1903, 1.442695
  %v1925 = vpow.pop %v1924
  %v1926 = vmul.f32 %v1904, 1.442695
  %v1927 = vpow.pop %v1926
  %v1928 = vmul.f32 %v1905, 1.442695
  %v1929 = vpow.pop %v1928
  %v1930 = vmul.f32 %v1906, 1.442695
  %v1931 = vpow.pop %v1930
  %v1932 = vmul.f32 %v1907, 1.442695
  %v1933 = vpow.pop %v1932
  %v1934 = vmul.f32 %v1908, 1.442695
  %v1935 = vpow.pop %v1934
  %v1936 = vmul.f32 %v1909, 1.442695
  %v1937 = vpow.pop %v1936
  %v1938 = vmul.f32 %v1910, 1.442695
  %v1939 = vpow.pop %v1938
  %v1940 = vmul.f32 %v1911, 1.442695
  %v1941 = vpow.pop %v1940
  %v1942 = vmul.f32 %v1912, 1.442695
  %v1943 = vpow.pop %v1942
  %v1944 = vmul.f32 %v1913, 1.442695
  %v1945 = vpow.pop %v1944
  %1946 = vadd.xlane.f32.xlu0 %v1915
  %v1947 = vpop.xlane.xlu0 %1946
  %1948 = vadd.xlane.f32.xlu0 %v1917
  %v1949 = vpop.xlane.xlu0 %1948
  %1950 = vadd.xlane.f32.xlu0 %v1919
  %v1951 = vpop.xlane.xlu0 %1950
  %1952 = vadd.xlane.f32.xlu0 %v1921
  %v1953 = vpop.xlane.xlu0 %1952
  %1954 = vadd.xlane.f32.xlu0 %v1923
  %v1955 = vpop.xlane.xlu0 %1954
  %1956 = vadd.xlane.f32.xlu0 %v1925
  %v1957 = vpop.xlane.xlu0 %1956
  %1958 = vadd.xlane.f32.xlu0 %v1927
  %v1959 = vpop.xlane.xlu0 %1958
  %1960 = vadd.xlane.f32.xlu0 %v1929
  %v1961 = vpop.xlane.xlu0 %1960
  %1962 = vadd.xlane.f32.xlu0 %v1931
  %v1963 = vpop.xlane.xlu0 %1962
  %1964 = vadd.xlane.f32.xlu0 %v1933
  %v1965 = vpop.xlane.xlu0 %1964
  %1966 = vadd.xlane.f32.xlu0 %v1935
  %v1967 = vpop.xlane.xlu0 %1966
  %1968 = vadd.xlane.f32.xlu0 %v1937
  %v1969 = vpop.xlane.xlu0 %1968
  %1970 = vadd.xlane.f32.xlu0 %v1939
  %v1971 = vpop.xlane.xlu0 %1970
  %1972 = vadd.xlane.f32.xlu0 %v1941
  %v1973 = vpop.xlane.xlu0 %1972
  %1974 = vadd.xlane.f32.xlu0 %v1943
  %v1975 = vpop.xlane.xlu0 %1974
  %1976 = vadd.xlane.f32.xlu0 %v1945
  %v1977 = vpop.xlane.xlu0 %1976
  %v1978 = vrcp.pop %v1947
  %v1979 = vrcp.pop %v1949
  %v1980 = vrcp.pop %v1951
  %v1981 = vrcp.pop %v1953
  %v1982 = vrcp.pop %v1955
  %v1983 = vrcp.pop %v1957
  %v1984 = vrcp.pop %v1959
  %v1985 = vrcp.pop %v1961
  %v1986 = vrcp.pop %v1963
  %v1987 = vrcp.pop %v1965
  %v1988 = vrcp.pop %v1967
  %v1989 = vrcp.pop %v1969
  %v1990 = vrcp.pop %v1971
  %v1991 = vrcp.pop %v1973
  %v1992 = vrcp.pop %v1975
  %v1993 = vrcp.pop %v1977
  %v1994 = vmul.f32 %v1915, %v1978
  %v1995 = vmul.f32 %v1917, %v1979
  %v1996 = vmul.f32 %v1919, %v1980
  %v1997 = vmul.f32 %v1921, %v1981
  %v1998 = vmul.f32 %v1923, %v1982
  %v1999 = vmul.f32 %v1925, %v1983
  %v2000 = vmul.f32 %v1927, %v1984
  %v2001 = vmul.f32 %v1929, %v1985
  %v2002 = vmul.f32 %v1931, %v1986
  %v2003 = vmul.f32 %v1933, %v1987
  %v2004 = vmul.f32 %v1935, %v1988
  %v2005 = vmul.f32 %v1937, %v1989
  %v2006 = vmul.f32 %v1939, %v1990
  %v2007 = vmul.f32 %v1941, %v1991
  %v2008 = vmul.f32 %v1943, %v1992
  %v2009 = vmul.f32 %v1945, %v1993
  %v2010 = vld [vmem:[#allocation4] sm:$0xff]
  %v2011 = vld [vmem:[#allocation4 + $0x8] sm:$0xff]
  %v2012 = vld [vmem:[#allocation4 + $0x10] sm:$0xff]
  %v2013 = vld [vmem:[#allocation4 + $0x18] sm:$0xff]
  %v2014 = vld [vmem:[#allocation4 + $0x20] sm:$0xff]
  %v2015 = vld [vmem:[#allocation4 + $0x28] sm:$0xff]
  %v2016 = vld [vmem:[#allocation4 + $0x30] sm:$0xff]
  %v2017 = vld [vmem:[#allocation4 + $0x38] sm:$0xff]
  %v2018 = vpack.c.bf16 %v1995, %v1994
  %v2019 = vpack.c.bf16 %v1997, %v1996
  %v2020 = vpack.c.bf16 %v1999, %v1998
  %v2021 = vpack.c.bf16 %v2001, %v2000
  %v2022 = vpack.c.bf16 %v2003, %v2002
  %v2023 = vpack.c.bf16 %v2005, %v2004
  %v2024 = vpack.c.bf16 %v2007, %v2006
  %v2025 = vpack.c.bf16 %v2009, %v2008
  %2026 = vmatprep.subr.bf16.mxu0 0
  %2027 = vmatpush1.bf16.msra.mxu0 %v2010
  %2028 = vmatprep.subr.bf16.mxu0 0
  %2029 = vmatpush1.bf16.msra.mxu0 %v2011
  %2030 = vmatprep.subr.bf16.mxu0 0
  %2031 = vmatpush1.bf16.msra.mxu0 %v2012
  %2032 = vmatprep.subr.bf16.mxu0 0
  %2033 = vmatpush1.bf16.msra.mxu0 %v2013
  %2034 = vmatprep.subr.bf16.mxu0 0
  %2035 = vmatpush1.bf16.msra.mxu0 %v2014
  %2036 = vmatprep.subr.bf16.mxu0 0
  %2037 = vmatpush1.bf16.msra.mxu0 %v2015
  %2038 = vmatprep.subr.bf16.mxu0 0
  %2039 = vmatpush1.bf16.msra.mxu0 %v2016
  %2040 = vmatprep.subr.bf16.mxu0 0
  %2041 = vmatpush1.bf16.msra.mxu0 %v2017
  %2042 = vmatprep.subr.bf16.mxu0 0
  %2043 = vmatpush1.bf16.msra.mxu0 0
  %2044 = vmatprep.subr.bf16.mxu0 0
  %2045 = vmatpush1.bf16.msra.mxu0 0
  %2046 = vmatprep.subr.bf16.mxu0 0
  %2047 = vmatpush1.bf16.msra.mxu0 0
  %2048 = vmatprep.subr.bf16.mxu0 0
  %2049 = vmatpush1.bf16.msra.mxu0 0
  %2050 = vmatprep.subr.bf16.mxu0 0
  %2051 = vmatpush1.bf16.msra.mxu0 0
  %2052 = vmatprep.subr.bf16.mxu0 0
  %2053 = vmatpush1.bf16.msra.mxu0 0
  %2054 = vmatprep.subr.bf16.mxu0 0
  %2055 = vmatpush1.bf16.msra.mxu0 0
  %2056 = vmatprep.subr.bf16.mxu0 0
  %2057 = vmatpush1.bf16.msra.mxu0 0
  %2058 = vmatprep.mubr.bf16.mxu0 0
  %2059 = vmatmul.mubr.bf16.gmra.mrb[0].mxu0 %v2018
  %v2060 = vpop.f32.mrb[0].mxu0
  %v2061 = vadd.f32 0.0, %v2060
  %v2062 = vpop.f32.mrb[0].mxu0
  %v2063 = vpop.f32.mrb[0].mxu0
  %v2064 = vadd.f32 0.0, %v2063
  %v2065 = vpop.f32.mrb[0].mxu0
  %2066 = vmatprep.mubr.bf16.mxu0 0
  %2067 = vmatmul.mubr.bf16.gmra.mrb[0].mxu0 %v2019
  %v2068 = vpop.f32.mrb[0].mxu0
  %v2069 = vadd.f32 0.0, %v2068
  %v2070 = vpop.f32.mrb[0].mxu0
  %v2071 = vpop.f32.mrb[0].mxu0
  %v2072 = vadd.f32 0.0, %v2071
  %v2073 = vpop.f32.mrb[0].mxu0
  %2074 = vmatprep.mubr.bf16.mxu0 0
  %2075 = vmatmul.mubr.bf16.gmra.mrb[0].mxu0 %v2020
  %v2076 = vpop.f32.mrb[0].mxu0
  %v2077 = vadd.f32 0.0, %v2076
  %v2078 = vpop.f32.mrb[0].mxu0
  %v2079 = vpop.f32.mrb[0].mxu0
  %v2080 = vadd.f32 0.0, %v2079
  %v2081 = vpop.f32.mrb[0].mxu0
  %2082 = vmatprep.mubr.bf16.mxu0 0
  %2083 = vmatmul.mubr.bf16.gmra.mrb[0].mxu0 %v2021
  %v2084 = vpop.f32.mrb[0].mxu0
  %v2085 = vadd.f32 0.0, %v2084
  %v2086 = vpop.f32.mrb[0].mxu0
  %v2087 = vpop.f32.mrb[0].mxu0
  %v2088 = vadd.f32 0.0, %v2087
  %v2089 = vpop.f32.mrb[0].mxu0
  %2090 = vmatprep.mubr.bf16.mxu0 0
  %2091 = vmatmul.mubr.bf16.gmra.mrb[0].mxu0 %v2022
  %v2092 = vpop.f32.mrb[0].mxu0
  %v2093 = vadd.f32 0.0, %v2092
  %v2094 = vpop.f32.mrb[0].mxu0
  %v2095 = vpop.f32.mrb[0].mxu0
  %v2096 = vadd.f32 0.0, %v2095
  %v2097 = vpop.f32.mrb[0].mxu0
  %2098 = vmatprep.mubr.bf16.mxu0 0
  %2099 = vmatmul.mubr.bf16.gmra.mrb[0].mxu0 %v2023
  %v2100 = vpop.f32.mrb[0].mxu0
  %v2101 = vadd.f32 0.0, %v2100
  %v2102 = vpop.f32.mrb[0].mxu0
  %v2103 = vpop.f32.mrb[0].mxu0
  %v2104 = vadd.f32 0.0, %v2103
  %v2105 = vpop.f32.mrb[0].mxu0
  %2106 = vmatprep.mubr.bf16.mxu0 0
  %2107 = vmatmul.mubr.bf16.gmra.mrb[0].mxu0 %v2024
  %v2108 = vpop.f32.mrb[0].mxu0
  %v2109 = vadd.f32 0.0, %v2108
  %v2110 = vpop.f32.mrb[0].mxu0
  %v2111 = vpop.f32.mrb[0].mxu0
  %v2112 = vadd.f32 0.0, %v2111
  %v2113 = vpop.f32.mrb[0].mxu0
  %2114 = vmatprep.mubr.bf16.mxu0 0
  %2115 = vmatmul.mubr.bf16.gmra.mrb[0].mxu0 %v2025
  %v2116 = vpop.f32.mrb[0].mxu0
  %v2117 = vadd.f32 0.0, %v2116
  %v2118 = vpop.f32.mrb[0].mxu0
  %v2119 = vpop.f32.mrb[0].mxu0
  %v2120 = vadd.f32 0.0, %v2119
  %v2121 = vpop.f32.mrb[0].mxu0
  %2122 = vdwg.mxu0
  %v2123 = vpack.c.bf16 %v2064, %v2061
  %v2124 = vpack.c.bf16 %v2072, %v2069
  %v2125 = vpack.c.bf16 %v2080, %v2077
  %v2126 = vpack.c.bf16 %v2088, %v2085
  %v2127 = vpack.c.bf16 %v2096, %v2093
  %v2128 = vpack.c.bf16 %v2104, %v2101
  %v2129 = vpack.c.bf16 %v2112, %v2109
  %v2130 = vpack.c.bf16 %v2120, %v2117
  %2131 = vst.msk [vmem:[#allocation5] sm:$0xff] %vm265, %v2123
  %2133 = vrot.lane.b32.xlu0 %v2124, 16
  %v2134 = vpop.permute.xlu0 %2133
  %2136 = vst.msk [vmem:[#allocation5] sm:$0xff] %vm801, %v2134
  %2138 = vrot.lane.b32.xlu0 %v2125, 32
  %v2139 = vpop.permute.xlu0 %2138
  %2141 = vst.msk [vmem:[#allocation5] sm:$0xff] %vm807, %v2139
  %2143 = vrot.lane.b32.xlu0 %v2126, 48
  %v2144 = vpop.permute.xlu0 %2143
  %2146 = vst.msk [vmem:[#allocation5] sm:$0xff] %vm813, %v2144
  %2147 = vst.msk [vmem:[#allocation5 + $0x8] sm:$0xff] %vm265, %v2127
  %2149 = vrot.lane.b32.xlu0 %v2128, 16
  %v2150 = vpop.permute.xlu0 %2149
  %2152 = vst.msk [vmem:[#allocation5 + $0x8] sm:$0xff] %vm801, %v2150
  %2154 = vrot.lane.b32.xlu0 %v2129, 32
  %v2155 = vpop.permute.xlu0 %2154
  %2157 = vst.msk [vmem:[#allocation5 + $0x8] sm:$0xff] %vm807, %v2155
  %2159 = vrot.lane.b32.xlu0 %v2130, 48
  %v2160 = vpop.permute.xlu0 %2159
  %2162 = vst.msk [vmem:[#allocation5 + $0x8] sm:$0xff] %vm813, %v2160
  %v2163 = vld [vmem:[#allocation5] sm:$0xff]
  %v2164 = vld [vmem:[#allocation5 + $0x8] sm:$0xff]
  %s2165 = scalar_lea.vmem %s6, 32
  %v2166 = vld [vmem:[%s2165] sm:$0xf]
  %v2167 = vld [vmem:[%s2165 + $0x4] sm:$0xf]
  %v2168 = vld [vmem:[%s2165 + $0x8] sm:$0xf]
  %v2169 = vld [vmem:[%s2165 + $0xc] sm:$0xf]
  %v2170 = vld [vmem:[%s2165 + $0x10] sm:$0xf]
  %v2171 = vld [vmem:[%s2165 + $0x14] sm:$0xf]
  %v2172 = vld [vmem:[%s2165 + $0x18] sm:$0xf]
  %v2173 = vld [vmem:[%s2165 + $0x1c] sm:$0xf]
  %v2182 = vunpack.c.l.b16 %v2166
  %v2183 = vunpack.c.l.b16 %v2167
  %v2184 = vunpack.c.l.b16 %v2168
  %v2185 = vunpack.c.l.b16 %v2169
  %v2186 = vunpack.c.l.b16 %v2170
  %v2187 = vunpack.c.l.b16 %v2171
  %v2188 = vunpack.c.l.b16 %v2172
  %v2189 = vunpack.c.l.b16 %v2173
  %v2190 = vpack.c.b16 %v2183, %v2182
  %v2191 = vpack.c.b16 %v2185, %v2184
  %v2192 = vpack.c.b16 %v2187, %v2186
  %v2193 = vpack.c.b16 %v2189, %v2188
  %v2199 = vsel %vm66, %v2163, 0
  %v2202 = vsel %vm66, %v2164, 0
  %2204 = vmatprep.subr.bf16.mxu0 0
  %2205 = vmatpush1.bf16.msra.mxu0 %v2190
  %2206 = vmatprep.subr.bf16.mxu0 0
  %2207 = vmatpush1.bf16.msra.mxu0 %v2191
  %2208 = vmatprep.subr.bf16.mxu0 0
  %2209 = vmatpush1.bf16.msra.mxu0 %v2192
  %2210 = vmatprep.subr.bf16.mxu0 0
  %2211 = vmatpush1.bf16.msra.mxu0 %v2193
  %2212 = vmatprep.subr.bf16.mxu0 0
  %2213 = vmatpush1.bf16.msra.mxu0 0
  %2214 = vmatprep.subr.bf16.mxu0 0
  %2215 = vmatpush1.bf16.msra.mxu0 0
  %2216 = vmatprep.subr.bf16.mxu0 0
  %2217 = vmatpush1.bf16.msra.mxu0 0
  %2218 = vmatprep.subr.bf16.mxu0 0
  %2219 = vmatpush1.bf16.msra.mxu0 0
  %2220 = vmatprep.subr.bf16.mxu0 0
  %2221 = vmatpush1.bf16.msra.mxu0 0
  %2222 = vmatprep.subr.bf16.mxu0 0
  %2223 = vmatpush1.bf16.msra.mxu0 0
  %2224 = vmatprep.subr.bf16.mxu0 0
  %2225 = vmatpush1.bf16.msra.mxu0 0
  %2226 = vmatprep.subr.bf16.mxu0 0
  %2227 = vmatpush1.bf16.msra.mxu0 0
  %2228 = vmatprep.subr.bf16.mxu0 0
  %2229 = vmatpush1.bf16.msra.mxu0 0
  %2230 = vmatprep.subr.bf16.mxu0 0
  %2231 = vmatpush1.bf16.msra.mxu0 0
  %2232 = vmatprep.subr.bf16.mxu0 0
  %2233 = vmatpush1.bf16.msra.mxu0 0
  %2234 = vmatprep.subr.bf16.mxu0 0
  %2235 = vmatpush1.bf16.msra.mxu0 0
  %2236 = vmatprep.mubr.bf16.mxu0 0
  %2237 = vmatmul.mubr.bf16.gmra.mrb[0].mxu0 %v2199
  %v2238 = vpop.f32.mrb[0].mxu0
  %v2239 = vadd.f32 0.0, %v2238
  %v2240 = vpop.f32.mrb[0].mxu0
  %v2241 = vpop.f32.mrb[0].mxu0
  %v2242 = vadd.f32 0.0, %v2241
  %v2243 = vpop.f32.mrb[0].mxu0
  %2244 = vmatprep.mubr.bf16.mxu0 0
  %2245 = vmatmul.mubr.bf16.gmra.mrb[0].mxu0 %v2202
  %v2246 = vpop.f32.mrb[0].mxu0
  %v2247 = vadd.f32 0.0, %v2246
  %v2248 = vpop.f32.mrb[0].mxu0
  %v2249 = vpop.f32.mrb[0].mxu0
  %v2250 = vadd.f32 0.0, %v2249
  %v2251 = vpop.f32.mrb[0].mxu0
  %2252 = vdwg.mxu0
  %v2253 = vadd.f32 %v1394, %v2239
  %v2254 = vadd.f32 %v1395, %v2242
  %v2255 = vadd.f32 %v1396, %v2247
  %v2256 = vadd.f32 %v1397, %v2250
  %s2257 = scalar_lea.vmem %s7, 1
  %v2258 = vld [vmem:[%s2257] sm:$0x1]
  %v2260 = vlaneseq
  %v2261 = vshrl.u32 %v2260, 7
  %v2262 = vsub.s32 0, %v2261
  %v2263 = vrot.slane %v2258, %v2262
  %v2265 = vadd.f32 %v2253, %v2263
  %v2266 = vadd.f32 %v2254, %v2263
  %v2267 = vadd.f32 %v2255, %v2263
  %v2268 = vadd.f32 %v2256, %v2263
  %s2269 = scalar_lea.vmem %s8, 1
  %v2270 = vld [vmem:[%s2269] sm:$0x1]
  %s2271 = scalar_lea.vmem %s9, 1
  %v2272 = vld [vmem:[%s2271] sm:$0x1]
  %v2273 = vsel %vm66, %v2265, 0.0
  %2274 = vadd.xlane.f32.xlu0 %v2273
  %v2275 = vpop.xlane.xlu0 %2274
  %v2276 = vsel %vm66, %v2266, 0.0
  %2277 = vadd.xlane.f32.xlu0 %v2276
  %v2278 = vpop.xlane.xlu0 %2277
  %v2279 = vsel %vm66, %v2267, 0.0
  %2280 = vadd.xlane.f32.xlu0 %v2279
  %v2281 = vpop.xlane.xlu0 %2280
  %v2282 = vsel %vm66, %v2268, 0.0
  %2283 = vadd.xlane.f32.xlu0 %v2282
  %v2284 = vpop.xlane.xlu0 %2283
  %v2285 = vmul.f32 %v2275, %v79
  %v2286 = vmul.f32 %v2278, %v79
  %v2287 = vmul.f32 %v2281, %v79
  %v2288 = vmul.f32 %v2284, %v79
  %v2289 = vsub.f32 %v2265, %v2285
  %v2290 = vsub.f32 %v2266, %v2286
  %v2291 = vsub.f32 %v2267, %v2287
  %v2292 = vsub.f32 %v2268, %v2288
  %v2293 = vmul.f32 %v2289, %v2289
  %v2294 = vmul.f32 %v2290, %v2290
  %v2295 = vmul.f32 %v2291, %v2291
  %v2296 = vmul.f32 %v2292, %v2292
  %v2297 = vsel %vm66, %v2293, 0.0
  %2298 = vadd.xlane.f32.xlu0 %v2297
  %v2299 = vpop.xlane.xlu0 %2298
  %v2300 = vsel %vm66, %v2294, 0.0
  %2301 = vadd.xlane.f32.xlu0 %v2300
  %v2302 = vpop.xlane.xlu0 %2301
  %v2303 = vsel %vm66, %v2295, 0.0
  %2304 = vadd.xlane.f32.xlu0 %v2303
  %v2305 = vpop.xlane.xlu0 %2304
  %v2306 = vsel %vm66, %v2296, 0.0
  %2307 = vadd.xlane.f32.xlu0 %v2306
  %v2308 = vpop.xlane.xlu0 %2307
  %v2309 = vmul.f32 %v2299, %v79
  %v2310 = vmul.f32 %v2302, %v79
  %v2311 = vmul.f32 %v2305, %v79
  %v2312 = vmul.f32 %v2308, %v79
  %v2313 = vadd.f32 %v2309, 1e-05
  %v2314 = vadd.f32 %v2310, 1e-05
  %v2315 = vadd.f32 %v2311, 1e-05
  %v2316 = vadd.f32 %v2312, 1e-05
  %v2317 = vrsqrt.pop %v2313
  %v2318 = vrsqrt.pop %v2314
  %v2319 = vrsqrt.pop %v2315
  %v2320 = vrsqrt.pop %v2316
  %v2321 = vmul.f32 %v2289, %v2317
  %v2322 = vmul.f32 %v2290, %v2318
  %v2323 = vmul.f32 %v2291, %v2319
  %v2324 = vmul.f32 %v2292, %v2320
  %v2326 = vlaneseq
  %v2327 = vshrl.u32 %v2326, 7
  %v2328 = vsub.s32 0, %v2327
  %v2329 = vrot.slane %v2270, %v2328
  %v2331 = vmul.f32 %v2321, %v2329
  %v2332 = vmul.f32 %v2322, %v2329
  %v2333 = vmul.f32 %v2323, %v2329
  %v2334 = vmul.f32 %v2324, %v2329
  %v2336 = vlaneseq
  %v2337 = vshrl.u32 %v2336, 7
  %v2338 = vsub.s32 0, %v2337
  %v2339 = vrot.slane %v2272, %v2338
  %v2341 = vadd.f32 %v2331, %v2339
  %v2342 = vadd.f32 %v2332, %v2339
  %v2343 = vadd.f32 %v2333, %v2339
  %v2344 = vadd.f32 %v2334, %v2339
  %s2345 = scalar_lea.vmem %s10, 64
  %v2346 = vld [vmem:[%s2345] sm:$0xff]
  %v2347 = vld [vmem:[%s2345 + $0x8] sm:$0xff]
  %v2348 = vld [vmem:[%s2345 + $0x10] sm:$0xff]
  %v2349 = vld [vmem:[%s2345 + $0x18] sm:$0xff]
  %v2350 = vld [vmem:[%s2345 + $0x20] sm:$0xff]
  %v2351 = vld [vmem:[%s2345 + $0x28] sm:$0xff]
  %v2352 = vld [vmem:[%s2345 + $0x30] sm:$0xff]
  %v2353 = vld [vmem:[%s2345 + $0x38] sm:$0xff]
  %v2354 = vpack.c.bf16 %v2342, %v2341
  %v2355 = vpack.c.bf16 %v2344, %v2343
  %s2356 = scalar_lea.vmem %s11, 2
  %v2357 = vld [vmem:[%s2356] sm:$0x3]
  %v2359 = vlaneseq
  %v2360 = vshrl.u32 %v2359, 7
  %v2361 = vsub.s32 0, %v2360
  %v2362 = vrot.slane %v2357, %v2361
  %v2363 = vlaneseq
  %v2364 = vshrl.u32 %v2363, 7
  %v2365 = vsub.s32 1, %v2364
  %v2366 = vrot.slane %v2357, %v2365
  %v2377 = vunpack.c.l.b16 %v2346
  %v2378 = vunpack.c.h.b16 %v2346
  %v2379 = vunpack.c.l.b16 %v2347
  %v2380 = vunpack.c.h.b16 %v2347
  %v2381 = vunpack.c.l.b16 %v2348
  %v2382 = vunpack.c.h.b16 %v2348
  %v2383 = vunpack.c.l.b16 %v2349
  %v2384 = vunpack.c.h.b16 %v2349
  %v2385 = vunpack.c.l.b16 %v2350
  %v2386 = vunpack.c.h.b16 %v2350
  %v2387 = vunpack.c.l.b16 %v2351
  %v2388 = vunpack.c.h.b16 %v2351
  %v2389 = vunpack.c.l.b16 %v2352
  %v2390 = vunpack.c.h.b16 %v2352
  %v2391 = vunpack.c.l.b16 %v2353
  %v2392 = vunpack.c.h.b16 %v2353
  %v2393 = vpack.c.b16 %v2379, %v2377
  %v2394 = vpack.c.b16 %v2380, %v2378
  %v2395 = vpack.c.b16 %v2383, %v2381
  %v2396 = vpack.c.b16 %v2384, %v2382
  %v2397 = vpack.c.b16 %v2387, %v2385
  %v2398 = vpack.c.b16 %v2388, %v2386
  %v2399 = vpack.c.b16 %v2391, %v2389
  %v2400 = vpack.c.b16 %v2392, %v2390
  %v2410 = vsel %vm66, %v2354, 0
  %v2413 = vsel %vm66, %v2355, 0
  %2415 = vmatprep.subr.bf16.mxu0 %v2394
  %2416 = vmatpush1.bf16.msra.mxu0 %v2393
  %2417 = vmatprep.subr.bf16.mxu0 %v2396
  %2418 = vmatpush1.bf16.msra.mxu0 %v2395
  %2419 = vmatprep.subr.bf16.mxu0 %v2398
  %2420 = vmatpush1.bf16.msra.mxu0 %v2397
  %2421 = vmatprep.subr.bf16.mxu0 %v2400
  %2422 = vmatpush1.bf16.msra.mxu0 %v2399
  %2423 = vmatprep.subr.bf16.mxu0 0
  %2424 = vmatpush1.bf16.msra.mxu0 0
  %2425 = vmatprep.subr.bf16.mxu0 0
  %2426 = vmatpush1.bf16.msra.mxu0 0
  %2427 = vmatprep.subr.bf16.mxu0 0
  %2428 = vmatpush1.bf16.msra.mxu0 0
  %2429 = vmatprep.subr.bf16.mxu0 0
  %2430 = vmatpush1.bf16.msra.mxu0 0
  %2431 = vmatprep.subr.bf16.mxu0 0
  %2432 = vmatpush1.bf16.msra.mxu0 0
  %2433 = vmatprep.subr.bf16.mxu0 0
  %2434 = vmatpush1.bf16.msra.mxu0 0
  %2435 = vmatprep.subr.bf16.mxu0 0
  %2436 = vmatpush1.bf16.msra.mxu0 0
  %2437 = vmatprep.subr.bf16.mxu0 0
  %2438 = vmatpush1.bf16.msra.mxu0 0
  %2439 = vmatprep.subr.bf16.mxu0 0
  %2440 = vmatpush1.bf16.msra.mxu0 0
  %2441 = vmatprep.subr.bf16.mxu0 0
  %2442 = vmatpush1.bf16.msra.mxu0 0
  %2443 = vmatprep.subr.bf16.mxu0 0
  %2444 = vmatpush1.bf16.msra.mxu0 0
  %2445 = vmatprep.subr.bf16.mxu0 0
  %2446 = vmatpush1.bf16.msra.mxu0 0
  %2447 = vmatprep.mubr.bf16.mxu0 0
  %2448 = vmatmul.mubr.bf16.gmra.mrb[0].mxu0 %v2410
  %v2449 = vpop.f32.mrb[0].mxu0
  %v2450 = vadd.f32 %v2362, %v2449
  %v2451 = vpop.f32.mrb[0].mxu0
  %v2452 = vadd.f32 %v2366, %v2451
  %v2453 = vpop.f32.mrb[0].mxu0
  %v2454 = vadd.f32 %v2362, %v2453
  %v2455 = vpop.f32.mrb[0].mxu0
  %v2456 = vadd.f32 %v2366, %v2455
  %2457 = vmatprep.mubr.bf16.mxu0 0
  %2458 = vmatmul.mubr.bf16.gmra.mrb[0].mxu0 %v2413
  %v2459 = vpop.f32.mrb[0].mxu0
  %v2460 = vadd.f32 %v2362, %v2459
  %v2461 = vpop.f32.mrb[0].mxu0
  %v2462 = vadd.f32 %v2366, %v2461
  %v2463 = vpop.f32.mrb[0].mxu0
  %v2464 = vadd.f32 %v2362, %v2463
  %v2465 = vpop.f32.mrb[0].mxu0
  %v2466 = vadd.f32 %v2366, %v2465
  %2467 = vdwg.mxu0
  %v2468 = vmul.f32 %v2450, 0.5
  %v2469 = vmul.f32 %v2452, 0.5
  %v2470 = vmul.f32 %v2454, 0.5
  %v2471 = vmul.f32 %v2456, 0.5
  %v2472 = vmul.f32 %v2460, 0.5
  %v2473 = vmul.f32 %v2462, 0.5
  %v2474 = vmul.f32 %v2464, 0.5
  %v2475 = vmul.f32 %v2466, 0.5
  %v2476 = vmul.f32 %v2450, 0.044715
  %v2477 = vmul.f32 %v2452, 0.044715
  %v2478 = vmul.f32 %v2454, 0.044715
  %v2479 = vmul.f32 %v2456, 0.044715
  %v2480 = vmul.f32 %v2460, 0.044715
  %v2481 = vmul.f32 %v2462, 0.044715
  %v2482 = vmul.f32 %v2464, 0.044715
  %v2483 = vmul.f32 %v2466, 0.044715
  %v2484 = vmul.f32 %v2476, %v2450
  %v2485 = vmul.f32 %v2477, %v2452
  %v2486 = vmul.f32 %v2478, %v2454
  %v2487 = vmul.f32 %v2479, %v2456
  %v2488 = vmul.f32 %v2480, %v2460
  %v2489 = vmul.f32 %v2481, %v2462
  %v2490 = vmul.f32 %v2482, %v2464
  %v2491 = vmul.f32 %v2483, %v2466
  %v2492 = vmul.f32 %v2484, %v2450
  %v2493 = vmul.f32 %v2485, %v2452
  %v2494 = vmul.f32 %v2486, %v2454
  %v2495 = vmul.f32 %v2487, %v2456
  %v2496 = vmul.f32 %v2488, %v2460
  %v2497 = vmul.f32 %v2489, %v2462
  %v2498 = vmul.f32 %v2490, %v2464
  %v2499 = vmul.f32 %v2491, %v2466
  %v2500 = vadd.f32 %v2450, %v2492
  %v2501 = vadd.f32 %v2452, %v2493
  %v2502 = vadd.f32 %v2454, %v2494
  %v2503 = vadd.f32 %v2456, %v2495
  %v2504 = vadd.f32 %v2460, %v2496
  %v2505 = vadd.f32 %v2462, %v2497
  %v2506 = vadd.f32 %v2464, %v2498
  %v2507 = vadd.f32 %v2466, %v2499
  %v2508 = vmul.f32 %v2500, 0.7978846
  %v2509 = vmul.f32 %v2501, 0.7978846
  %v2510 = vmul.f32 %v2502, 0.7978846
  %v2511 = vmul.f32 %v2503, 0.7978846
  %v2512 = vmul.f32 %v2504, 0.7978846
  %v2513 = vmul.f32 %v2505, 0.7978846
  %v2514 = vmul.f32 %v2506, 0.7978846
  %v2515 = vmul.f32 %v2507, 0.7978846
  %v2516 = vtanh.pop %v2508
  %v2517 = vtanh.pop %v2509
  %v2518 = vtanh.pop %v2510
  %v2519 = vtanh.pop %v2511
  %v2520 = vtanh.pop %v2512
  %v2521 = vtanh.pop %v2513
  %v2522 = vtanh.pop %v2514
  %v2523 = vtanh.pop %v2515
  %v2524 = vadd.f32 %v2516, 1.0
  %v2525 = vadd.f32 %v2517, 1.0
  %v2526 = vadd.f32 %v2518, 1.0
  %v2527 = vadd.f32 %v2519, 1.0
  %v2528 = vadd.f32 %v2520, 1.0
  %v2529 = vadd.f32 %v2521, 1.0
  %v2530 = vadd.f32 %v2522, 1.0
  %v2531 = vadd.f32 %v2523, 1.0
  %v2532 = vmul.f32 %v2468, %v2524
  %v2533 = vmul.f32 %v2469, %v2525
  %v2534 = vmul.f32 %v2470, %v2526
  %v2535 = vmul.f32 %v2471, %v2527
  %v2536 = vmul.f32 %v2472, %v2528
  %v2537 = vmul.f32 %v2473, %v2529
  %v2538 = vmul.f32 %v2474, %v2530
  %v2539 = vmul.f32 %v2475, %v2531
  %s2540 = scalar_lea.vmem %s12, 128
  %v2541 = vld [vmem:[%s2540] sm:$0xf]
  %v2542 = vld [vmem:[%s2540 + $0x4] sm:$0xf]
  %v2543 = vld [vmem:[%s2540 + $0x8] sm:$0xf]
  %v2544 = vld [vmem:[%s2540 + $0xc] sm:$0xf]
  %v2545 = vld [vmem:[%s2540 + $0x10] sm:$0xf]
  %v2546 = vld [vmem:[%s2540 + $0x14] sm:$0xf]
  %v2547 = vld [vmem:[%s2540 + $0x18] sm:$0xf]
  %v2548 = vld [vmem:[%s2540 + $0x1c] sm:$0xf]
  %v2549 = vld [vmem:[%s2540 + $0x20] sm:$0xf]
  %v2550 = vld [vmem:[%s2540 + $0x24] sm:$0xf]
  %v2551 = vld [vmem:[%s2540 + $0x28] sm:$0xf]
  %v2552 = vld [vmem:[%s2540 + $0x2c] sm:$0xf]
  %v2553 = vld [vmem:[%s2540 + $0x30] sm:$0xf]
  %v2554 = vld [vmem:[%s2540 + $0x34] sm:$0xf]
  %v2555 = vld [vmem:[%s2540 + $0x38] sm:$0xf]
  %v2556 = vld [vmem:[%s2540 + $0x3c] sm:$0xf]
  %v2557 = vld [vmem:[%s2540 + $0x40] sm:$0xf]
  %v2558 = vld [vmem:[%s2540 + $0x44] sm:$0xf]
  %v2559 = vld [vmem:[%s2540 + $0x48] sm:$0xf]
  %v2560 = vld [vmem:[%s2540 + $0x4c] sm:$0xf]
  %v2561 = vld [vmem:[%s2540 + $0x50] sm:$0xf]
  %v2562 = vld [vmem:[%s2540 + $0x54] sm:$0xf]
  %v2563 = vld [vmem:[%s2540 + $0x58] sm:$0xf]
  %v2564 = vld [vmem:[%s2540 + $0x5c] sm:$0xf]
  %v2565 = vld [vmem:[%s2540 + $0x60] sm:$0xf]
  %v2566 = vld [vmem:[%s2540 + $0x64] sm:$0xf]
  %v2567 = vld [vmem:[%s2540 + $0x68] sm:$0xf]
  %v2568 = vld [vmem:[%s2540 + $0x6c] sm:$0xf]
  %v2569 = vld [vmem:[%s2540 + $0x70] sm:$0xf]
  %v2570 = vld [vmem:[%s2540 + $0x74] sm:$0xf]
  %v2571 = vld [vmem:[%s2540 + $0x78] sm:$0xf]
  %v2572 = vld [vmem:[%s2540 + $0x7c] sm:$0xf]
  %v2573 = vpack.c.bf16 %v2534, %v2532
  %v2574 = vpack.c.bf16 %v2535, %v2533
  %v2575 = vpack.c.bf16 %v2538, %v2536
  %v2576 = vpack.c.bf16 %v2539, %v2537
  %v2609 = vunpack.c.l.b16 %v2541
  %v2610 = vunpack.c.l.b16 %v2542
  %v2611 = vunpack.c.l.b16 %v2543
  %v2612 = vunpack.c.l.b16 %v2544
  %v2613 = vunpack.c.l.b16 %v2545
  %v2614 = vunpack.c.l.b16 %v2546
  %v2615 = vunpack.c.l.b16 %v2547
  %v2616 = vunpack.c.l.b16 %v2548
  %v2617 = vunpack.c.l.b16 %v2549
  %v2618 = vunpack.c.l.b16 %v2550
  %v2619 = vunpack.c.l.b16 %v2551
  %v2620 = vunpack.c.l.b16 %v2552
  %v2621 = vunpack.c.l.b16 %v2553
  %v2622 = vunpack.c.l.b16 %v2554
  %v2623 = vunpack.c.l.b16 %v2555
  %v2624 = vunpack.c.l.b16 %v2556
  %v2625 = vunpack.c.l.b16 %v2557
  %v2626 = vunpack.c.l.b16 %v2558
  %v2627 = vunpack.c.l.b16 %v2559
  %v2628 = vunpack.c.l.b16 %v2560
  %v2629 = vunpack.c.l.b16 %v2561
  %v2630 = vunpack.c.l.b16 %v2562
  %v2631 = vunpack.c.l.b16 %v2563
  %v2632 = vunpack.c.l.b16 %v2564
  %v2633 = vunpack.c.l.b16 %v2565
  %v2634 = vunpack.c.l.b16 %v2566
  %v2635 = vunpack.c.l.b16 %v2567
  %v2636 = vunpack.c.l.b16 %v2568
  %v2637 = vunpack.c.l.b16 %v2569
  %v2638 = vunpack.c.l.b16 %v2570
  %v2639 = vunpack.c.l.b16 %v2571
  %v2640 = vunpack.c.l.b16 %v2572
  %v2641 = vpack.c.b16 %v2610, %v2609
  %v2642 = vpack.c.b16 %v2612, %v2611
  %v2643 = vpack.c.b16 %v2614, %v2613
  %v2644 = vpack.c.b16 %v2616, %v2615
  %v2645 = vpack.c.b16 %v2618, %v2617
  %v2646 = vpack.c.b16 %v2620, %v2619
  %v2647 = vpack.c.b16 %v2622, %v2621
  %v2648 = vpack.c.b16 %v2624, %v2623
  %v2649 = vpack.c.b16 %v2626, %v2625
  %v2650 = vpack.c.b16 %v2628, %v2627
  %v2651 = vpack.c.b16 %v2630, %v2629
  %v2652 = vpack.c.b16 %v2632, %v2631
  %v2653 = vpack.c.b16 %v2634, %v2633
  %v2654 = vpack.c.b16 %v2636, %v2635
  %v2655 = vpack.c.b16 %v2638, %v2637
  %v2656 = vpack.c.b16 %v2640, %v2639
  %2673 = vmatprep.subr.bf16.mxu0 0
  %2674 = vmatpush1.bf16.msra.mxu0 %v2641
  %2675 = vmatprep.subr.bf16.mxu0 0
  %2676 = vmatpush1.bf16.msra.mxu0 %v2642
  %2677 = vmatprep.subr.bf16.mxu0 0
  %2678 = vmatpush1.bf16.msra.mxu0 %v2643
  %2679 = vmatprep.subr.bf16.mxu0 0
  %2680 = vmatpush1.bf16.msra.mxu0 %v2644
  %2681 = vmatprep.subr.bf16.mxu0 0
  %2682 = vmatpush1.bf16.msra.mxu0 %v2645
  %2683 = vmatprep.subr.bf16.mxu0 0
  %2684 = vmatpush1.bf16.msra.mxu0 %v2646
  %2685 = vmatprep.subr.bf16.mxu0 0
  %2686 = vmatpush1.bf16.msra.mxu0 %v2647
  %2687 = vmatprep.subr.bf16.mxu0 0
  %2688 = vmatpush1.bf16.msra.mxu0 %v2648
  %2689 = vmatprep.subr.bf16.mxu0 0
  %2690 = vmatpush1.bf16.msra.mxu0 %v2649
  %2691 = vmatprep.subr.bf16.mxu0 0
  %2692 = vmatpush1.bf16.msra.mxu0 %v2650
  %2693 = vmatprep.subr.bf16.mxu0 0
  %2694 = vmatpush1.bf16.msra.mxu0 %v2651
  %2695 = vmatprep.subr.bf16.mxu0 0
  %2696 = vmatpush1.bf16.msra.mxu0 %v2652
  %2697 = vmatprep.subr.bf16.mxu0 0
  %2698 = vmatpush1.bf16.msra.mxu0 %v2653
  %2699 = vmatprep.subr.bf16.mxu0 0
  %2700 = vmatpush1.bf16.msra.mxu0 %v2654
  %2701 = vmatprep.subr.bf16.mxu0 0
  %2702 = vmatpush1.bf16.msra.mxu0 %v2655
  %2703 = vmatprep.subr.bf16.mxu0 0
  %2704 = vmatpush1.bf16.msra.mxu0 %v2656
  %2705 = vmatprep.mubr.bf16.mxu0 %v2574
  %2706 = vmatmul.mubr.bf16.gmra.mrb[0].mxu0 %v2573
  %v2707 = vpop.f32.mrb[0].mxu0
  %v2708 = vadd.f32 0.0, %v2707
  %v2709 = vpop.f32.mrb[0].mxu0
  %v2710 = vpop.f32.mrb[0].mxu0
  %v2711 = vadd.f32 0.0, %v2710
  %v2712 = vpop.f32.mrb[0].mxu0
  %2713 = vmatprep.mubr.bf16.mxu0 %v2576
  %2714 = vmatmul.mubr.bf16.gmra.mrb[0].mxu0 %v2575
  %v2715 = vpop.f32.mrb[0].mxu0
  %v2716 = vadd.f32 0.0, %v2715
  %v2717 = vpop.f32.mrb[0].mxu0
  %v2718 = vpop.f32.mrb[0].mxu0
  %v2719 = vadd.f32 0.0, %v2718
  %v2720 = vpop.f32.mrb[0].mxu0
  %2721 = vdwg.mxu0
  %v2722 = vadd.f32 %v2265, %v2708
  %v2723 = vadd.f32 %v2266, %v2711
  %v2724 = vadd.f32 %v2267, %v2716
  %v2725 = vadd.f32 %v2268, %v2719
  %s2726 = scalar_lea.vmem %s13, 1
  %v2727 = vld [vmem:[%s2726] sm:$0x1]
  %v2729 = vlaneseq
  %v2730 = vshrl.u32 %v2729, 7
  %v2731 = vsub.s32 0, %v2730
  %v2732 = vrot.slane %v2727, %v2731
  %v2734 = vadd.f32 %v2722, %v2732
  %v2735 = vadd.f32 %v2723, %v2732
  %v2736 = vadd.f32 %v2724, %v2732
  %v2737 = vadd.f32 %v2725, %v2732
  %v2738 = vld [vmem:[%s14] sm:$0x1]
  %v2739 = vld [vmem:[%s15] sm:$0x1]
  %v2740 = vsel %vm66, %v2734, 0.0
  %2741 = vadd.xlane.f32.xlu0 %v2740
  %v2742 = vpop.xlane.xlu0 %2741
  %v2743 = vsel %vm66, %v2735, 0.0
  %2744 = vadd.xlane.f32.xlu0 %v2743
  %v2745 = vpop.xlane.xlu0 %2744
  %v2746 = vsel %vm66, %v2736, 0.0
  %2747 = vadd.xlane.f32.xlu0 %v2746
  %v2748 = vpop.xlane.xlu0 %2747
  %v2749 = vsel %vm66, %v2737, 0.0
  %2750 = vadd.xlane.f32.xlu0 %v2749
  %v2751 = vpop.xlane.xlu0 %2750
  %v2752 = vmul.f32 %v2742, %v79
  %v2753 = vmul.f32 %v2745, %v79
  %v2754 = vmul.f32 %v2748, %v79
  %v2755 = vmul.f32 %v2751, %v79
  %v2756 = vsub.f32 %v2734, %v2752
  %v2757 = vsub.f32 %v2735, %v2753
  %v2758 = vsub.f32 %v2736, %v2754
  %v2759 = vsub.f32 %v2737, %v2755
  %v2760 = vmul.f32 %v2756, %v2756
  %v2761 = vmul.f32 %v2757, %v2757
  %v2762 = vmul.f32 %v2758, %v2758
  %v2763 = vmul.f32 %v2759, %v2759
  %v2764 = vsel %vm66, %v2760, 0.0
  %2765 = vadd.xlane.f32.xlu0 %v2764
  %v2766 = vpop.xlane.xlu0 %2765
  %v2767 = vsel %vm66, %v2761, 0.0
  %2768 = vadd.xlane.f32.xlu0 %v2767
  %v2769 = vpop.xlane.xlu0 %2768
  %v2770 = vsel %vm66, %v2762, 0.0
  %2771 = vadd.xlane.f32.xlu0 %v2770
  %v2772 = vpop.xlane.xlu0 %2771
  %v2773 = vsel %vm66, %v2763, 0.0
  %2774 = vadd.xlane.f32.xlu0 %v2773
  %v2775 = vpop.xlane.xlu0 %2774
  %v2776 = vmul.f32 %v2766, %v79
  %v2777 = vmul.f32 %v2769, %v79
  %v2778 = vmul.f32 %v2772, %v79
  %v2779 = vmul.f32 %v2775, %v79
  %v2780 = vadd.f32 %v2776, 1e-05
  %v2781 = vadd.f32 %v2777, 1e-05
  %v2782 = vadd.f32 %v2778, 1e-05
  %v2783 = vadd.f32 %v2779, 1e-05
  %v2784 = vrsqrt.pop %v2780
  %v2785 = vrsqrt.pop %v2781
  %v2786 = vrsqrt.pop %v2782
  %v2787 = vrsqrt.pop %v2783
  %v2788 = vmul.f32 %v2756, %v2784
  %v2789 = vmul.f32 %v2757, %v2785
  %v2790 = vmul.f32 %v2758, %v2786
  %v2791 = vmul.f32 %v2759, %v2787
  %v2793 = vlaneseq
  %v2794 = vshrl.u32 %v2793, 7
  %v2795 = vsub.s32 0, %v2794
  %v2796 = vrot.slane %v2738, %v2795
  %v2798 = vmul.f32 %v2788, %v2796
  %v2799 = vmul.f32 %v2789, %v2796
  %v2800 = vmul.f32 %v2790, %v2796
  %v2801 = vmul.f32 %v2791, %v2796
  %v2803 = vlaneseq
  %v2804 = vshrl.u32 %v2803, 7
  %v2805 = vsub.s32 0, %v2804
  %v2806 = vrot.slane %v2739, %v2805
  %v2808 = vadd.f32 %v2798, %v2806
  %v2809 = vadd.f32 %v2799, %v2806
  %v2810 = vadd.f32 %v2800, %v2806
  %v2811 = vadd.f32 %v2801, %v2806
  %v2812 = vld [vmem:[%s16] sm:$0xf]
  %v2813 = vld [vmem:[%s16 + $0x4] sm:$0xf]
  %v2814 = vld [vmem:[%s16 + $0x8] sm:$0xf]
  %v2815 = vld [vmem:[%s16 + $0xc] sm:$0xf]
  %v2816 = vld [vmem:[%s16 + $0x10] sm:$0xf]
  %v2817 = vld [vmem:[%s16 + $0x14] sm:$0xf]
  %v2818 = vld [vmem:[%s16 + $0x18] sm:$0xf]
  %v2819 = vld [vmem:[%s16 + $0x1c] sm:$0xf]
  %v2820 = vpack.c.bf16 %v2809, %v2808
  %v2821 = vpack.c.bf16 %v2811, %v2810
  %v2822 = vld [vmem:[%s17] sm:$0x1]
  %v2824 = vlaneseq
  %v2825 = vshrl.u32 %v2824, 7
  %v2826 = vsub.s32 0, %v2825
  %v2827 = vrot.slane %v2822, %v2826
  %v2837 = vunpack.c.l.b16 %v2812
  %v2838 = vunpack.c.l.b16 %v2813
  %v2839 = vunpack.c.l.b16 %v2814
  %v2840 = vunpack.c.l.b16 %v2815
  %v2841 = vunpack.c.l.b16 %v2816
  %v2842 = vunpack.c.l.b16 %v2817
  %v2843 = vunpack.c.l.b16 %v2818
  %v2844 = vunpack.c.l.b16 %v2819
  %v2845 = vpack.c.b16 %v2838, %v2837
  %v2846 = vpack.c.b16 %v2840, %v2839
  %v2847 = vpack.c.b16 %v2842, %v2841
  %v2848 = vpack.c.b16 %v2844, %v2843
  %v2854 = vsel %vm66, %v2820, 0
  %v2857 = vsel %vm66, %v2821, 0
  %2859 = vmatprep.subr.bf16.mxu0 0
  %2860 = vmatpush1.bf16.msra.mxu0 %v2845
  %2861 = vmatprep.subr.bf16.mxu0 0
  %2862 = vmatpush1.bf16.msra.mxu0 %v2846
  %2863 = vmatprep.subr.bf16.mxu0 0
  %2864 = vmatpush1.bf16.msra.mxu0 %v2847
  %2865 = vmatprep.subr.bf16.mxu0 0
  %2866 = vmatpush1.bf16.msra.mxu0 %v2848
  %2867 = vmatprep.subr.bf16.mxu0 0
  %2868 = vmatpush1.bf16.msra.mxu0 0
  %2869 = vmatprep.subr.bf16.mxu0 0
  %2870 = vmatpush1.bf16.msra.mxu0 0
  %2871 = vmatprep.subr.bf16.mxu0 0
  %2872 = vmatpush1.bf16.msra.mxu0 0
  %2873 = vmatprep.subr.bf16.mxu0 0
  %2874 = vmatpush1.bf16.msra.mxu0 0
  %2875 = vmatprep.subr.bf16.mxu0 0
  %2876 = vmatpush1.bf16.msra.mxu0 0
  %2877 = vmatprep.subr.bf16.mxu0 0
  %2878 = vmatpush1.bf16.msra.mxu0 0
  %2879 = vmatprep.subr.bf16.mxu0 0
  %2880 = vmatpush1.bf16.msra.mxu0 0
  %2881 = vmatprep.subr.bf16.mxu0 0
  %2882 = vmatpush1.bf16.msra.mxu0 0
  %2883 = vmatprep.subr.bf16.mxu0 0
  %2884 = vmatpush1.bf16.msra.mxu0 0
  %2885 = vmatprep.subr.bf16.mxu0 0
  %2886 = vmatpush1.bf16.msra.mxu0 0
  %2887 = vmatprep.subr.bf16.mxu0 0
  %2888 = vmatpush1.bf16.msra.mxu0 0
  %2889 = vmatprep.subr.bf16.mxu0 0
  %2890 = vmatpush1.bf16.msra.mxu0 0
  %2891 = vmatprep.mubr.bf16.mxu0 0
  %2892 = vmatmul.mubr.bf16.gmra.mrb[0].mxu0 %v2854
  %v2893 = vpop.f32.mrb[0].mxu0
  %v2894 = vpop.f32.mrb[0].mxu0
  %v2895 = vpop.f32.mrb[0].mxu0
  %v2896 = vadd.f32 %v2827, %v2895
  %v2897 = vpop.f32.mrb[0].mxu0
  %2898 = vmatprep.mubr.bf16.mxu0 0
  %2899 = vmatmul.mubr.bf16.gmra.mrb[0].mxu0 %v2857
  %v2900 = vpop.f32.mrb[0].mxu0
  %v2901 = vpop.f32.mrb[0].mxu0
  %v2902 = vpop.f32.mrb[0].mxu0
  %v2903 = vadd.f32 %v2827, %v2902
  %v2904 = vpop.f32.mrb[0].mxu0
  %2905 = vdwg.mxu0
  %2906 = vst [vmem:[%s18] sm:$0xff] %v2896
  %2907 = vst [vmem:[%s18 + $0x8] sm:$0xff] %v2903
  // Predicated region
  $region74: #{chatbot_forward.1} parent=0 // pred_check
    _
  $region75: #{chatbot_forward.1} parent=0 // pred_check_branch
    %2909 = sbr.rel (0) target = $region77
  $region76: #{chatbot_forward.1} parent=0 // pred_region
    _
  $region77: #{chatbot_forward.1} parent=0 // pred_fallthru
    _
  // Predicated region
  $region78: #{chatbot_forward.1} parent=0 // pred_check
    _
  $region79: #{chatbot_forward.1} parent=0 // pred_check_branch
    %2911 = sbr.rel (0) target = $region81
  $region80: #{chatbot_forward.1} parent=0 // pred_region
    _
  $region81: #{chatbot_forward.1} parent=0 // pred_fallthru
    _

</llo_original>
